<compile_context>
chip_gen: v6e
topology: v6e:2x2x1
jax: 0.10.0
libtpu: 0.0.40
codegen_flags: <defaults>
</compile_context>

<pallas_src>
import functools

import jax
import jax.numpy as jnp
from jax import lax
from jax.experimental import pallas as pl
from jax.experimental.pallas import tpu as pltpu


def _attention_kernel(s_ref, c_ref, w1_ref, att_ref):
    # s_ref, c_ref: (N, C, HW)   w1_ref: (Cout, Cin)   att_ref: (N, C, 1)
    x = s_ref[...].astype(jnp.float32) + c_ref[...].astype(jnp.float32)
    g = jnp.mean(x, axis=-1)                                   # GAP -> (N, Cin)
    w1 = w1_ref[...].astype(jnp.float32)                       # (Cout, Cin)

    # 1x1 conv on the pooled vector. K and N are tiny (=C), so keep it on the
    # VPU (broadcast-multiply + lane reduce) instead of a ~1% utilized MXU op.
    t = g[:, None, :] * w1[None, :, :]                         # (N, Cout, Cin)
    p_col = jnp.maximum(jnp.sum(t, axis=-1, keepdims=True), 0.0)     # (N, C, 1)
    p_row = jnp.maximum(jnp.sum(t, axis=-1), 0.0)[:, None, :]        # (N, 1, C)

    # attention_map[n,i,j] = p[n,i] * p[n,j]; softmax over dim 0 (the batch dim)
    # -- that is what nn.Softmax() with dim=None does for a 3-D input in PyTorch.
    a = p_col * p_row                                          # (N, C, C)
    m = jnp.max(a, axis=0, keepdims=True)
    e = jnp.exp(a - m)
    a_sm = e / jnp.sum(e, axis=0, keepdims=True)

    # attention_feature[n,i] = sum_j a_sm[n,i,j] * p[n,j]
    att = jnp.sum(a_sm * p_row, axis=-1, keepdims=True)        # (N, C, 1)
    att_ref[...] = att.astype(att_ref.dtype)


def _conv3x3_scale_kernel(f_ref, w_ref, att_ref, o_ref, xpad_ref, *, height, width):
    # f_ref:   (C, HW)  one batch image, rows flattened (lane dim = HW, 128-mult)
    # w_ref:   (9, Cout, Cin)  conv weight, tap-major (kh*3 + kw)
    # att_ref: (C, 1)   per-channel attention scalar for this batch element
    # o_ref:   (C, HW)
    # xpad_ref:(C, PAD + HW + PAD) zero-padded shift buffer (PAD is lane aligned)
    C, HW = f_ref.shape
    H, W = height, width
    PAD = (xpad_ref.shape[1] - HW) // 2

    x = f_ref[...].astype(jnp.float32)                         # (C, HW)

    xpad_ref[...] = jnp.zeros_like(xpad_ref)
    xpad_ref[:, PAD:PAD + HW] = x                              # aligned data store

    lane = lax.broadcasted_iota(jnp.int32, (1, HW), 1)
    row = lane // W
    col = lane % W

    acc = jnp.zeros((C, HW), jnp.float32)
    for kh in range(3):
        for kw in range(3):
            d = (kh - 1) * W + (kw - 1)                        # static flat offset
            xs = xpad_ref[:, PAD + d:PAD + d + HW]             # (Cin, HW) shifted view
            conds = []
            if kh == 0:
                conds.append(row != 0)                         # needs source row h-1
            if kh == 2:
                conds.append(row != H - 1)                     # needs source row h+1
            if kw == 0:
                conds.append(col != 0)                         # needs source col w-1
            if kw == 2:
                conds.append(col != W - 1)                     # needs source col w+1
            if conds:
                keep = conds[0]
                for cnd in conds[1:]:
                    keep = jnp.logical_and(keep, cnd)
                xs = jnp.where(keep, xs, 0.0)
            w_tap = w_ref[kh * 3 + kw].astype(jnp.float32)     # (Cout, Cin)
            acc = acc + jnp.dot(w_tap, xs, preferred_element_type=jnp.float32)

    att = att_ref[...].astype(jnp.float32)                     # (C, 1) -> lane bcast
    o_ref[...] = (acc * att + x).astype(o_ref.dtype)


def pla_pallas(f, s, c, conv2_weight, p_weight):
    """PLA forward.  f, s, c: (N, C, H, W); conv2_weight: (C, C, 3, 3);
    p_weight: (C, C, 1, 1).  Returns (N, C, H, W)."""
    N, C, H, W = f.shape
    HW = H * W
    PAD = 128  # lane-aligned halo for the shift buffer (>= W + 1)

    # Keep NCHW; flattening spatial dims is a free (contiguous) reshape.
    f_flat = f.reshape(N, C, HW)
    s_flat = s.reshape(N, C, HW)
    c_flat = c.reshape(N, C, HW)
    w1 = p_weight[:, :, 0, 0]                                  # (Cout, Cin)
    w_taps = jnp.transpose(conv2_weight, (2, 3, 0, 1)).reshape(9, C, C)

    # Stage 1: batch-coupled attention scalars (softmax over the batch dim), one
    # grid step over the whole (tiny) problem.
    att = pl.pallas_call(
        _attention_kernel,
        out_shape=jax.ShapeDtypeStruct((N, C, 1), jnp.float32),
        grid_spec=pltpu.PrefetchScalarGridSpec(
            num_scalar_prefetch=0,
            grid=(1,),
            in_specs=[
                pl.BlockSpec((N, C, HW), lambda i: (0, 0, 0)),
                pl.BlockSpec((N, C, HW), lambda i: (0, 0, 0)),
                pl.BlockSpec((C, C), lambda i: (0, 0)),
            ],
            out_specs=pl.BlockSpec((N, C, 1), lambda i: (0, 0, 0)),
        ),
        compiler_params=pltpu.CompilerParams(
            dimension_semantics=("arbitrary",)),
    )(s_flat, c_flat, w1)

    # Stage 2: 3x3 conv + per-channel scale + residual, one batch image per step
    # ("parallel" batch axis -> megacore on v7x).
    out_flat = pl.pallas_call(
        functools.partial(_conv3x3_scale_kernel, height=H, width=W),
        out_shape=jax.ShapeDtypeStruct((N, C, HW), f.dtype),
        grid_spec=pltpu.PrefetchScalarGridSpec(
            num_scalar_prefetch=0,
            grid=(N,),
            in_specs=[
                pl.BlockSpec((pl.Squeezed(), C, HW), lambda n: (n, 0, 0)),
                pl.BlockSpec((9, C, C), lambda n: (0, 0, 0)),
                pl.BlockSpec((pl.Squeezed(), C, 1), lambda n: (n, 0, 0)),
            ],
            out_specs=pl.BlockSpec((pl.Squeezed(), C, HW), lambda n: (n, 0, 0)),
            scratch_shapes=[pltpu.VMEM((C, 2 * PAD + HW), jnp.float32)],
        ),
        compiler_params=pltpu.CompilerParams(
            dimension_semantics=("parallel",)),
    )(f_flat, w_taps, att)

    return out_flat.reshape(N, C, H, W)


def _reference(f, s, c, conv2_weight, p_weight):
    # Pure-JAX reference of the PyTorch forward (including Softmax over dim=0).
    g = jnp.mean(s + c, axis=(2, 3))                                   # (N, C)
    p = jnp.maximum(jnp.einsum('oc,nc->no', p_weight[:, :, 0, 0], g), 0.0)
    a = p[:, :, None] * p[:, None, :]                                  # (N, C, C)
    a = jax.nn.softmax(a, axis=0)                                      # dim=0 (batch)
    att = jnp.einsum('nij,nj->ni', a, p)                               # (N, C)
    conv_f = lax.conv_general_dilated(
        f, conv2_weight, window_strides=(1, 1), padding='SAME',
        dimension_numbers=('NCHW', 'OIHW', 'NCHW'))
    return conv_f * att[:, :, None, None] + f


if __name__ == "__main__":
    n_feats = 40                       # module default n_feats
    N, H, W = 2, 16, 16

    key = jax.random.PRNGKey(0)
    kf, ks, kc, kw2, kwp = jax.random.split(key, 5)
    f = jax.random.normal(kf, (N, n_feats, H, W), dtype=jnp.float32)
    s = jax.random.normal(ks, (N, n_feats, H, W), dtype=jnp.float32)
    c = jax.random.normal(kc, (N, n_feats, H, W), dtype=jnp.float32)

    # PyTorch Conv2d default init: U(-b, b) with b = 1/sqrt(fan_in), no bias.
    b2 = 1.0 / float(jnp.sqrt(jnp.float32(n_feats * 3 * 3)))
    conv2_w = jax.random.uniform(kw2, (n_feats, n_feats, 3, 3), jnp.float32, -b2, b2)
    bp = 1.0 / float(jnp.sqrt(jnp.float32(n_feats)))
    p_w = jax.random.uniform(kwp, (n_feats, n_feats, 1, 1), jnp.float32, -bp, bp)

    out = pla_pallas(f, s, c, conv2_w, p_w)
    jax.block_until_ready(out)

    ref = _reference(f, s, c, conv2_w, p_w)
    assert out.shape == (N, n_feats, H, W)
    max_err = float(jnp.max(jnp.abs(out - ref)))
    assert jnp.allclose(out, ref, atol=1e-4, rtol=1e-4), max_err

    print("KERNEL_OK")
</pallas_src>

<mosaic_0001>
module attributes {stable_mosaic.version = 11 : i64} {
  func.func @_attention_kernel(%arg0: i32, %arg1: memref<2x40x256xf32, #tpu.memory_space<vmem>>, %arg2: memref<2x40x256xf32, #tpu.memory_space<vmem>>, %arg3: memref<40x40xf32, #tpu.memory_space<vmem>>, %arg4: memref<2x40x1xf32, #tpu.memory_space<vmem>>) attributes {dimension_semantics = [#tpu.dimension_semantics<arbitrary>], iteration_bounds = array<i64: 1>, scalar_prefetch = 0 : i64, scratch_operands = 0 : i64, tpu.core_type = #tpu.core_type<tc>, window_params = [{pipeline_mode = #tpu.pipeline_mode<synchronous>, transform_indices = @transform_0, window_bounds = array<i64: 2, 40, 256>}, {pipeline_mode = #tpu.pipeline_mode<synchronous>, transform_indices = @transform_1, window_bounds = array<i64: 2, 40, 256>}, {pipeline_mode = #tpu.pipeline_mode<synchronous>, transform_indices = @transform_2, window_bounds = array<i64: 40, 40>}, {pipeline_mode = #tpu.pipeline_mode<synchronous>, transform_indices = @transform_3, window_bounds = array<i64: 2, 40, 1>}]} {
    %c0 = arith.constant 0 : index
    %c0_0 = arith.constant 0 : index
    %c0_1 = arith.constant 0 : index
    %0 = vector.load %arg1[%c0, %c0_0, %c0_1] : memref<2x40x256xf32, #tpu.memory_space<vmem>>, vector<2x40x256xf32>
    %c0_2 = arith.constant 0 : index
    %c0_3 = arith.constant 0 : index
    %c0_4 = arith.constant 0 : index
    %1 = vector.load %arg2[%c0_2, %c0_3, %c0_4] : memref<2x40x256xf32, #tpu.memory_space<vmem>>, vector<2x40x256xf32>
    %2 = arith.addf %0, %1 : vector<2x40x256xf32>
    %cst = arith.constant dense<0.000000e+00> : vector<2x40xf32>
    %3 = vector.multi_reduction <add>, %2, %cst [2] : vector<2x40x256xf32> to vector<2x40xf32>
    %cst_5 = arith.constant 2.560000e+02 : f32
    %4 = vector.broadcast %cst_5 : f32 to vector<2x40xf32>
    %5 = arith.divf %3, %4 : vector<2x40xf32>
    %c0_6 = arith.constant 0 : index
    %c0_7 = arith.constant 0 : index
    %6 = vector.load %arg3[%c0_6, %c0_7] : memref<40x40xf32, #tpu.memory_space<vmem>>, vector<40x40xf32>
    %7 = vector.shape_cast %5 : vector<2x40xf32> to vector<2x1x40xf32>
    %8 = vector.shape_cast %6 : vector<40x40xf32> to vector<1x40x40xf32>
    %9 = vector.broadcast %7 : vector<2x1x40xf32> to vector<2x40x40xf32>
    %10 = vector.broadcast %8 : vector<1x40x40xf32> to vector<2x40x40xf32>
    %11 = arith.mulf %9, %10 : vector<2x40x40xf32>
    %cst_8 = arith.constant dense<0.000000e+00> : vector<2x40xf32>
    %12 = vector.multi_reduction <add>, %11, %cst_8 [2] : vector<2x40x40xf32> to vector<2x40xf32>
    %13 = vector.shape_cast %12 : vector<2x40xf32> to vector<2x40x1xf32>
    %cst_9 = arith.constant 0.000000e+00 : f32
    %14 = vector.broadcast %cst_9 : f32 to vector<2x40x1xf32>
    %15 = arith.maximumf %13, %14 : vector<2x40x1xf32>
    %cst_10 = arith.constant dense<0.000000e+00> : vector<2x40xf32>
    %16 = vector.multi_reduction <add>, %11, %cst_10 [2] : vector<2x40x40xf32> to vector<2x40xf32>
    %cst_11 = arith.constant 0.000000e+00 : f32
    %17 = vector.broadcast %cst_11 : f32 to vector<2x40xf32>
    %18 = arith.maximumf %16, %17 : vector<2x40xf32>
    %19 = vector.shape_cast %18 : vector<2x40xf32> to vector<2x1x40xf32>
    %20 = vector.broadcast %15 : vector<2x40x1xf32> to vector<2x40x40xf32>
    %21 = vector.broadcast %19 : vector<2x1x40xf32> to vector<2x40x40xf32>
    %22 = arith.mulf %20, %21 : vector<2x40x40xf32>
    %cst_12 = arith.constant dense<0xFF800000> : vector<40x40xf32>
    %23 = vector.multi_reduction <maximumf>, %22, %cst_12 [0] : vector<2x40x40xf32> to vector<40x40xf32>
    %24 = vector.shape_cast %23 : vector<40x40xf32> to vector<1x40x40xf32>
    %25 = vector.broadcast %24 : vector<1x40x40xf32> to vector<2x40x40xf32>
    %26 = arith.subf %22, %25 : vector<2x40x40xf32>
    %27 = math.exp %26 : vector<2x40x40xf32>
    %cst_13 = arith.constant dense<0.000000e+00> : vector<40x40xf32>
    %28 = vector.multi_reduction <add>, %27, %cst_13 [0] : vector<2x40x40xf32> to vector<40x40xf32>
    %29 = vector.shape_cast %28 : vector<40x40xf32> to vector<1x40x40xf32>
    %30 = vector.broadcast %29 : vector<1x40x40xf32> to vector<2x40x40xf32>
    %31 = arith.divf %27, %30 : vector<2x40x40xf32>
    %32 = vector.broadcast %19 : vector<2x1x40xf32> to vector<2x40x40xf32>
    %33 = arith.mulf %31, %32 : vector<2x40x40xf32>
    %cst_14 = arith.constant dense<0.000000e+00> : vector<2x40xf32>
    %34 = vector.multi_reduction <add>, %33, %cst_14 [2] : vector<2x40x40xf32> to vector<2x40xf32>
    %35 = vector.shape_cast %34 : vector<2x40xf32> to vector<2x40x1xf32>
    %c0_15 = arith.constant 0 : index
    %c0_16 = arith.constant 0 : index
    %c0_17 = arith.constant 0 : index
    %36 = vector.load %arg4[%c0_15, %c0_16, %c0_17] : memref<2x40x1xf32, #tpu.memory_space<vmem>>, vector<2x40x1xf32>
    tpu.vector_store %arg4[%c0_15, %c0_16, %c0_17], %35 {strides = array<i32>} : memref<2x40x1xf32, #tpu.memory_space<vmem>>, vector<2x40x1xf32>,
    return
  }
  func.func @transform_0(%arg0: i32) -> (i32, i32, i32) {
    %c0_i32 = arith.constant 0 : i32
    %c0_i32_0 = arith.constant 0 : i32
    %c0_i32_1 = arith.constant 0 : i32
    %c0_i32_2 = arith.constant 0 : i32
    return %c0_i32, %c0_i32_0, %c0_i32_1 : i32, i32, i32
  }
  func.func @transform_1(%arg0: i32) -> (i32, i32, i32) {
    %c0_i32 = arith.constant 0 : i32
    %c0_i32_0 = arith.constant 0 : i32
    %c0_i32_1 = arith.constant 0 : i32
    %c0_i32_2 = arith.constant 0 : i32
    return %c0_i32, %c0_i32_0, %c0_i32_1 : i32, i32, i32
  }
  func.func @transform_2(%arg0: i32) -> (i32, i32) {
    %c0_i32 = arith.constant 0 : i32
    %c0_i32_0 = arith.constant 0 : i32
    %c0_i32_1 = arith.constant 0 : i32
    return %c0_i32, %c0_i32_0 : i32, i32
  }
  func.func @transform_3(%arg0: i32) -> (i32, i32, i32) {
    %c0_i32 = arith.constant 0 : i32
    %c0_i32_0 = arith.constant 0 : i32
    %c0_i32_1 = arith.constant 0 : i32
    %c0_i32_2 = arith.constant 0 : i32
    return %c0_i32, %c0_i32_0, %c0_i32_1 : i32, i32, i32
  }
}

</mosaic_0001>

<llo_original>
// kernel: tpu_custom_call.1
$region0: #{tpu_custom_call.1}
  #allocation0 [shape = 'u32[]', space=smem, size = 0x4, offset = 0x4, fixed_abs, tag = 'smem constant byte address 0x4 - core index']
  #allocation1 [shape = 'u32[144,128]{1,0:T(1,128)}', space=vmem, size = 0x12000, scoped, tag = 'internal scratch']
  %s0 = inlined_call_operand.hbm [shape: f32[2,40,256], index: 0, kind: input, shape index: {}]
  %s1 = inlined_call_operand.hbm [shape: f32[2,40,256], index: 1, kind: input, shape index: {}]
  %s2 = inlined_call_operand.hbm [shape: f32[40,40], index: 2, kind: input, shape index: {}]
  %s3 = inlined_call_operand.vmem [shape: f32[2,40,1], index: 3, kind: output, shape index: {}]
  %s4 = sld [smem:[#allocation0]]
  $region34: #{tpu_custom_call.1} parent=0
    _
  %s6 = ssub.s32 1, %s4
  %s7 = scalar_select 0, %s6, %s4
  $region1: #{tpu_custom_call.1} parent=0
    #allocation2 [shape = 'u8[81920]{0}', space=vmem, size = 0x14000, scoped, tag = 'input window, operand 0, single buffered']
    #allocation3 [shape = 's32[1]{0}', space=sflag, size = 0x4, scoped, tag = 'scoped memory for tpu_custom_call.1']
    #allocation4 [shape = 'u8[81920]{0}', space=vmem, size = 0x14000, scoped, tag = 'input window, operand 1, single buffered']
    #allocation5 [shape = 's32[1]{0}', space=sflag, size = 0x4, scoped, tag = 'scoped memory for tpu_custom_call.1']
    #allocation6 [shape = 'u8[20480]{0}', space=vmem, size = 0x5000, scoped, tag = 'input window, operand 2, single buffered']
    %8 = vsyncpa [#allocation3], 0
    %9 = vsyncpa [#allocation5], 0
    // Predicated region
    $region2: #{tpu_custom_call.1} parent=1 // pred_check
      _
    $region3: #{tpu_custom_call.1} parent=1 // pred_check_branch
      %11 = sbr.rel (0) target = $region5
    $region4: #{tpu_custom_call.1} parent=1 // pred_region
      %s13 = ssub.s32 2560, 2560
      %14 = vsyncadd [#allocation3], %s13
      %s15 = sshll.u32 [#allocation2], 4
      %s16 = int_to_ptr.vmem [resolvable:$true] %s15
      %21 = dma.hbm_to_vmem [thread:$0]  %s0, 2560, %s16, [#allocation3], 256, 256, 16
    $region5: #{tpu_custom_call.1} parent=1 // pred_fallthru
      _
    // Predicated region
    $region6: #{tpu_custom_call.1} parent=1 // pred_check
      _
    $region7: #{tpu_custom_call.1} parent=1 // pred_check_branch
      %23 = sbr.rel (0) target = $region9
    $region8: #{tpu_custom_call.1} parent=1 // pred_region
      %s25 = ssub.s32 2560, 2560
      %26 = vsyncadd [#allocation5], %s25
      %s27 = sshll.u32 [#allocation4], 4
      %s28 = int_to_ptr.vmem [resolvable:$true] %s27
      %33 = dma.hbm_to_vmem [thread:$0]  %s1, 2560, %s28, [#allocation5], 256, 256, 16
    $region9: #{tpu_custom_call.1} parent=1 // pred_fallthru
      _
    // Predicated region
    $region10: #{tpu_custom_call.1} parent=1 // pred_check
      _
    $region11: #{tpu_custom_call.1} parent=1 // pred_check_branch
      %35 = sbr.rel (0) target = $region13
    $region12: #{tpu_custom_call.1} parent=1 // pred_region
      %s37 = ssub.s32 640, 640
      %38 = vsyncadd [#allocation5], %s37
      %s39 = sshll.u32 [#allocation6], 4
      %s40 = int_to_ptr.vmem [resolvable:$true] %s39
      %45 = dma.hbm_to_vmem [thread:$0]  %s2, 640, %s40, [#allocation5], 128, 128, 8
    $region13: #{tpu_custom_call.1} parent=1 // pred_fallthru
      _
    // Predicated region
    $region14: #{tpu_custom_call.1} parent=1 // pred_check
      _
    $region15: #{tpu_custom_call.1} parent=1 // pred_check_branch
      %47 = sbr.rel (0) target = $region17
    $region16: #{tpu_custom_call.1} parent=1 // pred_region
      %48 = dma.done [#allocation3], 2560
    $region17: #{tpu_custom_call.1} parent=1 // pred_fallthru
      _
    // Predicated region
    $region18: #{tpu_custom_call.1} parent=1 // pred_check
      _
    $region19: #{tpu_custom_call.1} parent=1 // pred_check_branch
      %50 = sbr.rel (0) target = $region21
    $region20: #{tpu_custom_call.1} parent=1 // pred_region
      %51 = dma.done [#allocation5], 2560
    $region21: #{tpu_custom_call.1} parent=1 // pred_fallthru
      _
    // Predicated region
    $region22: #{tpu_custom_call.1} parent=1 // pred_check
      _
    $region23: #{tpu_custom_call.1} parent=1 // pred_check_branch
      %53 = sbr.rel (0) target = $region25
    $region24: #{tpu_custom_call.1} parent=1 // pred_region
      %54 = dma.done [#allocation5], 640
    $region25: #{tpu_custom_call.1} parent=1 // pred_fallthru
      _
    %v55 = vld [vmem:[#allocation2] sm:$0xff]
    %v56 = vld [vmem:[#allocation2 + $0x8] sm:$0xff]
    %v57 = vld [vmem:[#allocation2 + $0x10] sm:$0xff]
    %v58 = vld [vmem:[#allocation2 + $0x18] sm:$0xff]
    %v59 = vld [vmem:[#allocation2 + $0x20] sm:$0xff]
    %v60 = vld [vmem:[#allocation2 + $0x28] sm:$0xff]
    %v61 = vld [vmem:[#allocation2 + $0x30] sm:$0xff]
    %v62 = vld [vmem:[#allocation2 + $0x38] sm:$0xff]
    %v63 = vld [vmem:[#allocation2 + $0x40] sm:$0xff]
    %v64 = vld [vmem:[#allocation2 + $0x48] sm:$0xff]
    %v65 = vld [vmem:[#allocation2 + $0x50] sm:$0xff]
    %v66 = vld [vmem:[#allocation2 + $0x58] sm:$0xff]
    %v67 = vld [vmem:[#allocation2 + $0x60] sm:$0xff]
    %v68 = vld [vmem:[#allocation2 + $0x68] sm:$0xff]
    %v69 = vld [vmem:[#allocation2 + $0x70] sm:$0xff]
    %v70 = vld [vmem:[#allocation2 + $0x78] sm:$0xff]
    %v71 = vld [vmem:[#allocation2 + $0x80] sm:$0xff]
    %v72 = vld [vmem:[#allocation2 + $0x88] sm:$0xff]
    %v73 = vld [vmem:[#allocation2 + $0x90] sm:$0xff]
    %v74 = vld [vmem:[#allocation2 + $0x98] sm:$0xff]
    %v75 = vld [vmem:[#allocation4] sm:$0xff]
    %v76 = vld [vmem:[#allocation4 + $0x8] sm:$0xff]
    %v77 = vld [vmem:[#allocation4 + $0x10] sm:$0xff]
    %v78 = vld [vmem:[#allocation4 + $0x18] sm:$0xff]
    %v79 = vld [vmem:[#allocation4 + $0x20] sm:$0xff]
    %v80 = vld [vmem:[#allocation4 + $0x28] sm:$0xff]
    %v81 = vld [vmem:[#allocation4 + $0x30] sm:$0xff]
    %v82 = vld [vmem:[#allocation4 + $0x38] sm:$0xff]
    %v83 = vld [vmem:[#allocation4 + $0x40] sm:$0xff]
    %v84 = vld [vmem:[#allocation4 + $0x48] sm:$0xff]
    %v85 = vld [vmem:[#allocation4 + $0x50] sm:$0xff]
    %v86 = vld [vmem:[#allocation4 + $0x58] sm:$0xff]
    %v87 = vld [vmem:[#allocation4 + $0x60] sm:$0xff]
    %v88 = vld [vmem:[#allocation4 + $0x68] sm:$0xff]
    %v89 = vld [vmem:[#allocation4 + $0x70] sm:$0xff]
    %v90 = vld [vmem:[#allocation4 + $0x78] sm:$0xff]
    %v91 = vld [vmem:[#allocation4 + $0x80] sm:$0xff]
    %v92 = vld [vmem:[#allocation4 + $0x88] sm:$0xff]
    %v93 = vld [vmem:[#allocation4 + $0x90] sm:$0xff]
    %v94 = vld [vmem:[#allocation4 + $0x98] sm:$0xff]
    %v95 = vadd.f32 %v55, %v75
    %v96 = vadd.f32 %v56, %v76
    %v97 = vadd.f32 %v57, %v77
    %v98 = vadd.f32 %v58, %v78
    %v99 = vadd.f32 %v59, %v79
    %v100 = vadd.f32 %v60, %v80
    %v101 = vadd.f32 %v61, %v81
    %v102 = vadd.f32 %v62, %v82
    %v103 = vadd.f32 %v63, %v83
    %v104 = vadd.f32 %v64, %v84
    %v105 = vadd.f32 %v65, %v85
    %v106 = vadd.f32 %v66, %v86
    %v107 = vadd.f32 %v67, %v87
    %v108 = vadd.f32 %v68, %v88
    %v109 = vadd.f32 %v69, %v89
    %v110 = vadd.f32 %v70, %v90
    %v111 = vadd.f32 %v71, %v91
    %v112 = vadd.f32 %v72, %v92
    %v113 = vadd.f32 %v73, %v93
    %v114 = vadd.f32 %v74, %v94
    %v115 = vadd.f32 %v95, %v96
    %116 = vadd.xlane.f32.xlu0 %v115
    %v117 = vpop.xlane.xlu0 %116
    %v118 = vadd.f32 %v97, %v98
    %119 = vadd.xlane.f32.xlu0 %v118
    %v120 = vpop.xlane.xlu0 %119
    %v121 = vadd.f32 %v99, %v100
    %122 = vadd.xlane.f32.xlu0 %v121
    %v123 = vpop.xlane.xlu0 %122
    %v124 = vadd.f32 %v101, %v102
    %125 = vadd.xlane.f32.xlu0 %v124
    %v126 = vpop.xlane.xlu0 %125
    %v127 = vadd.f32 %v103, %v104
    %128 = vadd.xlane.f32.xlu0 %v127
    %v129 = vpop.xlane.xlu0 %128
    %v130 = vadd.f32 %v105, %v106
    %131 = vadd.xlane.f32.xlu0 %v130
    %v132 = vpop.xlane.xlu0 %131
    %v133 = vadd.f32 %v107, %v108
    %134 = vadd.xlane.f32.xlu0 %v133
    %v135 = vpop.xlane.xlu0 %134
    %v136 = vadd.f32 %v109, %v110
    %137 = vadd.xlane.f32.xlu0 %v136
    %v138 = vpop.xlane.xlu0 %137
    %v139 = vadd.f32 %v111, %v112
    %140 = vadd.xlane.f32.xlu0 %v139
    %v141 = vpop.xlane.xlu0 %140
    %v142 = vadd.f32 %v113, %v114
    %143 = vadd.xlane.f32.xlu0 %v142
    %v144 = vpop.xlane.xlu0 %143
    %v145 = vrcp.pop 256.0
    %v146 = vmul.f32 %v117, %v145
    %v147 = vmul.f32 %v120, %v145
    %v148 = vmul.f32 %v123, %v145
    %v149 = vmul.f32 %v126, %v145
    %v150 = vmul.f32 %v129, %v145
    %v151 = vmul.f32 %v132, %v145
    %v152 = vmul.f32 %v135, %v145
    %v153 = vmul.f32 %v138, %v145
    %v154 = vmul.f32 %v141, %v145
    %v155 = vmul.f32 %v144, %v145
    %v156 = vld [vmem:[#allocation6] sm:$0xff]
    %v157 = vld [vmem:[#allocation6 + $0x8] sm:$0xff]
    %v158 = vld [vmem:[#allocation6 + $0x10] sm:$0xff]
    %v159 = vld [vmem:[#allocation6 + $0x18] sm:$0xff]
    %v160 = vld [vmem:[#allocation6 + $0x20] sm:$0xff]
    %v166 = vlaneseq
    %v167 = vshrl.u32 %v166, 7
    %v168 = vsub.s32 0, %v167
    %v169 = vrot.slane %v156, %v168
    %171 = vbcast.lane.b32.xlu0 %v169, 256
    %v172 = vpop.permute.xlu0 %171
    %s174 = sor.u32 256, 8
    %175 = vbcast.lane.b32.xlu0 %v169, %s174
    %v176 = vpop.permute.xlu0 %175
    %s178 = sor.u32 256, 16
    %179 = vbcast.lane.b32.xlu0 %v169, %s178
    %v180 = vpop.permute.xlu0 %179
    %s182 = sor.u32 256, 24
    %183 = vbcast.lane.b32.xlu0 %v169, %s182
    %v184 = vpop.permute.xlu0 %183
    %s186 = sor.u32 256, 32
    %187 = vbcast.lane.b32.xlu0 %v169, %s186
    %v188 = vpop.permute.xlu0 %187
    %v189 = vlaneseq
    %v190 = vshrl.u32 %v189, 7
    %v191 = vsub.s32 1, %v190
    %v192 = vrot.slane %v156, %v191
    %194 = vbcast.lane.b32.xlu0 %v192, 256
    %v195 = vpop.permute.xlu0 %194
    %s197 = sor.u32 256, 8
    %198 = vbcast.lane.b32.xlu0 %v192, %s197
    %v199 = vpop.permute.xlu0 %198
    %s201 = sor.u32 256, 16
    %202 = vbcast.lane.b32.xlu0 %v192, %s201
    %v203 = vpop.permute.xlu0 %202
    %s205 = sor.u32 256, 24
    %206 = vbcast.lane.b32.xlu0 %v192, %s205
    %v207 = vpop.permute.xlu0 %206
    %s209 = sor.u32 256, 32
    %210 = vbcast.lane.b32.xlu0 %v192, %s209
    %v211 = vpop.permute.xlu0 %210
    %v212 = vlaneseq
    %v213 = vshrl.u32 %v212, 7
    %v214 = vsub.s32 2, %v213
    %v215 = vrot.slane %v156, %v214
    %217 = vbcast.lane.b32.xlu0 %v215, 256
    %v218 = vpop.permute.xlu0 %217
    %s220 = sor.u32 256, 8
    %221 = vbcast.lane.b32.xlu0 %v215, %s220
    %v222 = vpop.permute.xlu0 %221
    %s224 = sor.u32 256, 16
    %225 = vbcast.lane.b32.xlu0 %v215, %s224
    %v226 = vpop.permute.xlu0 %225
    %s228 = sor.u32 256, 24
    %229 = vbcast.lane.b32.xlu0 %v215, %s228
    %v230 = vpop.permute.xlu0 %229
    %s232 = sor.u32 256, 32
    %233 = vbcast.lane.b32.xlu0 %v215, %s232
    %v234 = vpop.permute.xlu0 %233
    %v235 = vlaneseq
    %v236 = vshrl.u32 %v235, 7
    %v237 = vsub.s32 3, %v236
    %v238 = vrot.slane %v156, %v237
    %240 = vbcast.lane.b32.xlu0 %v238, 256
    %v241 = vpop.permute.xlu0 %240
    %s243 = sor.u32 256, 8
    %244 = vbcast.lane.b32.xlu0 %v238, %s243
    %v245 = vpop.permute.xlu0 %244
    %s247 = sor.u32 256, 16
    %248 = vbcast.lane.b32.xlu0 %v238, %s247
    %v249 = vpop.permute.xlu0 %248
    %s251 = sor.u32 256, 24
    %252 = vbcast.lane.b32.xlu0 %v238, %s251
    %v253 = vpop.permute.xlu0 %252
    %s255 = sor.u32 256, 32
    %256 = vbcast.lane.b32.xlu0 %v238, %s255
    %v257 = vpop.permute.xlu0 %256
    %v258 = vlaneseq
    %v259 = vshrl.u32 %v258, 7
    %v260 = vsub.s32 4, %v259
    %v261 = vrot.slane %v156, %v260
    %263 = vbcast.lane.b32.xlu0 %v261, 256
    %v264 = vpop.permute.xlu0 %263
    %s266 = sor.u32 256, 8
    %267 = vbcast.lane.b32.xlu0 %v261, %s266
    %v268 = vpop.permute.xlu0 %267
    %s270 = sor.u32 256, 16
    %271 = vbcast.lane.b32.xlu0 %v261, %s270
    %v272 = vpop.permute.xlu0 %271
    %s274 = sor.u32 256, 24
    %275 = vbcast.lane.b32.xlu0 %v261, %s274
    %v276 = vpop.permute.xlu0 %275
    %s278 = sor.u32 256, 32
    %279 = vbcast.lane.b32.xlu0 %v261, %s278
    %v280 = vpop.permute.xlu0 %279
    %v281 = vlaneseq
    %v282 = vshrl.u32 %v281, 7
    %v283 = vsub.s32 5, %v282
    %v284 = vrot.slane %v156, %v283
    %286 = vbcast.lane.b32.xlu0 %v284, 256
    %v287 = vpop.permute.xlu0 %286
    %s289 = sor.u32 256, 8
    %290 = vbcast.lane.b32.xlu0 %v284, %s289
    %v291 = vpop.permute.xlu0 %290
    %s293 = sor.u32 256, 16
    %294 = vbcast.lane.b32.xlu0 %v284, %s293
    %v295 = vpop.permute.xlu0 %294
    %s297 = sor.u32 256, 24
    %298 = vbcast.lane.b32.xlu0 %v284, %s297
    %v299 = vpop.permute.xlu0 %298
    %s301 = sor.u32 256, 32
    %302 = vbcast.lane.b32.xlu0 %v284, %s301
    %v303 = vpop.permute.xlu0 %302
    %v304 = vlaneseq
    %v305 = vshrl.u32 %v304, 7
    %v306 = vsub.s32 6, %v305
    %v307 = vrot.slane %v156, %v306
    %309 = vbcast.lane.b32.xlu0 %v307, 256
    %v310 = vpop.permute.xlu0 %309
    %s312 = sor.u32 256, 8
    %313 = vbcast.lane.b32.xlu0 %v307, %s312
    %v314 = vpop.permute.xlu0 %313
    %s316 = sor.u32 256, 16
    %317 = vbcast.lane.b32.xlu0 %v307, %s316
    %v318 = vpop.permute.xlu0 %317
    %s320 = sor.u32 256, 24
    %321 = vbcast.lane.b32.xlu0 %v307, %s320
    %v322 = vpop.permute.xlu0 %321
    %s324 = sor.u32 256, 32
    %325 = vbcast.lane.b32.xlu0 %v307, %s324
    %v326 = vpop.permute.xlu0 %325
    %v327 = vlaneseq
    %v328 = vshrl.u32 %v327, 7
    %v329 = vsub.s32 7, %v328
    %v330 = vrot.slane %v156, %v329
    %332 = vbcast.lane.b32.xlu0 %v330, 256
    %v333 = vpop.permute.xlu0 %332
    %s335 = sor.u32 256, 8
    %336 = vbcast.lane.b32.xlu0 %v330, %s335
    %v337 = vpop.permute.xlu0 %336
    %s339 = sor.u32 256, 16
    %340 = vbcast.lane.b32.xlu0 %v330, %s339
    %v341 = vpop.permute.xlu0 %340
    %s343 = sor.u32 256, 24
    %344 = vbcast.lane.b32.xlu0 %v330, %s343
    %v345 = vpop.permute.xlu0 %344
    %s347 = sor.u32 256, 32
    %348 = vbcast.lane.b32.xlu0 %v330, %s347
    %v349 = vpop.permute.xlu0 %348
    %v350 = vlaneseq
    %v351 = vshrl.u32 %v350, 7
    %v352 = vsub.s32 0, %v351
    %v353 = vrot.slane %v157, %v352
    %355 = vbcast.lane.b32.xlu0 %v353, 256
    %v356 = vpop.permute.xlu0 %355
    %s358 = sor.u32 256, 8
    %359 = vbcast.lane.b32.xlu0 %v353, %s358
    %v360 = vpop.permute.xlu0 %359
    %s362 = sor.u32 256, 16
    %363 = vbcast.lane.b32.xlu0 %v353, %s362
    %v364 = vpop.permute.xlu0 %363
    %s366 = sor.u32 256, 24
    %367 = vbcast.lane.b32.xlu0 %v353, %s366
    %v368 = vpop.permute.xlu0 %367
    %s370 = sor.u32 256, 32
    %371 = vbcast.lane.b32.xlu0 %v353, %s370
    %v372 = vpop.permute.xlu0 %371
    %v373 = vlaneseq
    %v374 = vshrl.u32 %v373, 7
    %v375 = vsub.s32 1, %v374
    %v376 = vrot.slane %v157, %v375
    %378 = vbcast.lane.b32.xlu0 %v376, 256
    %v379 = vpop.permute.xlu0 %378
    %s381 = sor.u32 256, 8
    %382 = vbcast.lane.b32.xlu0 %v376, %s381
    %v383 = vpop.permute.xlu0 %382
    %s385 = sor.u32 256, 16
    %386 = vbcast.lane.b32.xlu0 %v376, %s385
    %v387 = vpop.permute.xlu0 %386
    %s389 = sor.u32 256, 24
    %390 = vbcast.lane.b32.xlu0 %v376, %s389
    %v391 = vpop.permute.xlu0 %390
    %s393 = sor.u32 256, 32
    %394 = vbcast.lane.b32.xlu0 %v376, %s393
    %v395 = vpop.permute.xlu0 %394
    %v396 = vlaneseq
    %v397 = vshrl.u32 %v396, 7
    %v398 = vsub.s32 2, %v397
    %v399 = vrot.slane %v157, %v398
    %401 = vbcast.lane.b32.xlu0 %v399, 256
    %v402 = vpop.permute.xlu0 %401
    %s404 = sor.u32 256, 8
    %405 = vbcast.lane.b32.xlu0 %v399, %s404
    %v406 = vpop.permute.xlu0 %405
    %s408 = sor.u32 256, 16
    %409 = vbcast.lane.b32.xlu0 %v399, %s408
    %v410 = vpop.permute.xlu0 %409
    %s412 = sor.u32 256, 24
    %413 = vbcast.lane.b32.xlu0 %v399, %s412
    %v414 = vpop.permute.xlu0 %413
    %s416 = sor.u32 256, 32
    %417 = vbcast.lane.b32.xlu0 %v399, %s416
    %v418 = vpop.permute.xlu0 %417
    %v419 = vlaneseq
    %v420 = vshrl.u32 %v419, 7
    %v421 = vsub.s32 3, %v420
    %v422 = vrot.slane %v157, %v421
    %424 = vbcast.lane.b32.xlu0 %v422, 256
    %v425 = vpop.permute.xlu0 %424
    %s427 = sor.u32 256, 8
    %428 = vbcast.lane.b32.xlu0 %v422, %s427
    %v429 = vpop.permute.xlu0 %428
    %s431 = sor.u32 256, 16
    %432 = vbcast.lane.b32.xlu0 %v422, %s431
    %v433 = vpop.permute.xlu0 %432
    %s435 = sor.u32 256, 24
    %436 = vbcast.lane.b32.xlu0 %v422, %s435
    %v437 = vpop.permute.xlu0 %436
    %s439 = sor.u32 256, 32
    %440 = vbcast.lane.b32.xlu0 %v422, %s439
    %v441 = vpop.permute.xlu0 %440
    %v442 = vlaneseq
    %v443 = vshrl.u32 %v442, 7
    %v444 = vsub.s32 4, %v443
    %v445 = vrot.slane %v157, %v444
    %447 = vbcast.lane.b32.xlu0 %v445, 256
    %v448 = vpop.permute.xlu0 %447
    %s450 = sor.u32 256, 8
    %451 = vbcast.lane.b32.xlu0 %v445, %s450
    %v452 = vpop.permute.xlu0 %451
    %s454 = sor.u32 256, 16
    %455 = vbcast.lane.b32.xlu0 %v445, %s454
    %v456 = vpop.permute.xlu0 %455
    %s458 = sor.u32 256, 24
    %459 = vbcast.lane.b32.xlu0 %v445, %s458
    %v460 = vpop.permute.xlu0 %459
    %s462 = sor.u32 256, 32
    %463 = vbcast.lane.b32.xlu0 %v445, %s462
    %v464 = vpop.permute.xlu0 %463
    %v465 = vlaneseq
    %v466 = vshrl.u32 %v465, 7
    %v467 = vsub.s32 5, %v466
    %v468 = vrot.slane %v157, %v467
    %470 = vbcast.lane.b32.xlu0 %v468, 256
    %v471 = vpop.permute.xlu0 %470
    %s473 = sor.u32 256, 8
    %474 = vbcast.lane.b32.xlu0 %v468, %s473
    %v475 = vpop.permute.xlu0 %474
    %s477 = sor.u32 256, 16
    %478 = vbcast.lane.b32.xlu0 %v468, %s477
    %v479 = vpop.permute.xlu0 %478
    %s481 = sor.u32 256, 24
    %482 = vbcast.lane.b32.xlu0 %v468, %s481
    %v483 = vpop.permute.xlu0 %482
    %s485 = sor.u32 256, 32
    %486 = vbcast.lane.b32.xlu0 %v468, %s485
    %v487 = vpop.permute.xlu0 %486
    %v488 = vlaneseq
    %v489 = vshrl.u32 %v488, 7
    %v490 = vsub.s32 6, %v489
    %v491 = vrot.slane %v157, %v490
    %493 = vbcast.lane.b32.xlu0 %v491, 256
    %v494 = vpop.permute.xlu0 %493
    %s496 = sor.u32 256, 8
    %497 = vbcast.lane.b32.xlu0 %v491, %s496
    %v498 = vpop.permute.xlu0 %497
    %s500 = sor.u32 256, 16
    %501 = vbcast.lane.b32.xlu0 %v491, %s500
    %v502 = vpop.permute.xlu0 %501
    %s504 = sor.u32 256, 24
    %505 = vbcast.lane.b32.xlu0 %v491, %s504
    %v506 = vpop.permute.xlu0 %505
    %s508 = sor.u32 256, 32
    %509 = vbcast.lane.b32.xlu0 %v491, %s508
    %v510 = vpop.permute.xlu0 %509
    %v511 = vlaneseq
    %v512 = vshrl.u32 %v511, 7
    %v513 = vsub.s32 7, %v512
    %v514 = vrot.slane %v157, %v513
    %516 = vbcast.lane.b32.xlu0 %v514, 256
    %v517 = vpop.permute.xlu0 %516
    %s519 = sor.u32 256, 8
    %520 = vbcast.lane.b32.xlu0 %v514, %s519
    %v521 = vpop.permute.xlu0 %520
    %s523 = sor.u32 256, 16
    %524 = vbcast.lane.b32.xlu0 %v514, %s523
    %v525 = vpop.permute.xlu0 %524
    %s527 = sor.u32 256, 24
    %528 = vbcast.lane.b32.xlu0 %v514, %s527
    %v529 = vpop.permute.xlu0 %528
    %s531 = sor.u32 256, 32
    %532 = vbcast.lane.b32.xlu0 %v514, %s531
    %v533 = vpop.permute.xlu0 %532
    %v534 = vlaneseq
    %v535 = vshrl.u32 %v534, 7
    %v536 = vsub.s32 0, %v535
    %v537 = vrot.slane %v158, %v536
    %539 = vbcast.lane.b32.xlu0 %v537, 256
    %v540 = vpop.permute.xlu0 %539
    %s542 = sor.u32 256, 8
    %543 = vbcast.lane.b32.xlu0 %v537, %s542
    %v544 = vpop.permute.xlu0 %543
    %s546 = sor.u32 256, 16
    %547 = vbcast.lane.b32.xlu0 %v537, %s546
    %v548 = vpop.permute.xlu0 %547
    %s550 = sor.u32 256, 24
    %551 = vbcast.lane.b32.xlu0 %v537, %s550
    %v552 = vpop.permute.xlu0 %551
    %s554 = sor.u32 256, 32
    %555 = vbcast.lane.b32.xlu0 %v537, %s554
    %v556 = vpop.permute.xlu0 %555
    %v557 = vlaneseq
    %v558 = vshrl.u32 %v557, 7
    %v559 = vsub.s32 1, %v558
    %v560 = vrot.slane %v158, %v559
    %562 = vbcast.lane.b32.xlu0 %v560, 256
    %v563 = vpop.permute.xlu0 %562
    %s565 = sor.u32 256, 8
    %566 = vbcast.lane.b32.xlu0 %v560, %s565
    %v567 = vpop.permute.xlu0 %566
    %s569 = sor.u32 256, 16
    %570 = vbcast.lane.b32.xlu0 %v560, %s569
    %v571 = vpop.permute.xlu0 %570
    %s573 = sor.u32 256, 24
    %574 = vbcast.lane.b32.xlu0 %v560, %s573
    %v575 = vpop.permute.xlu0 %574
    %s577 = sor.u32 256, 32
    %578 = vbcast.lane.b32.xlu0 %v560, %s577
    %v579 = vpop.permute.xlu0 %578
    %v580 = vlaneseq
    %v581 = vshrl.u32 %v580, 7
    %v582 = vsub.s32 2, %v581
    %v583 = vrot.slane %v158, %v582
    %585 = vbcast.lane.b32.xlu0 %v583, 256
    %v586 = vpop.permute.xlu0 %585
    %s588 = sor.u32 256, 8
    %589 = vbcast.lane.b32.xlu0 %v583, %s588
    %v590 = vpop.permute.xlu0 %589
    %s592 = sor.u32 256, 16
    %593 = vbcast.lane.b32.xlu0 %v583, %s592
    %v594 = vpop.permute.xlu0 %593
    %s596 = sor.u32 256, 24
    %597 = vbcast.lane.b32.xlu0 %v583, %s596
    %v598 = vpop.permute.xlu0 %597
    %s600 = sor.u32 256, 32
    %601 = vbcast.lane.b32.xlu0 %v583, %s600
    %v602 = vpop.permute.xlu0 %601
    %v603 = vlaneseq
    %v604 = vshrl.u32 %v603, 7
    %v605 = vsub.s32 3, %v604
    %v606 = vrot.slane %v158, %v605
    %608 = vbcast.lane.b32.xlu0 %v606, 256
    %v609 = vpop.permute.xlu0 %608
    %s611 = sor.u32 256, 8
    %612 = vbcast.lane.b32.xlu0 %v606, %s611
    %v613 = vpop.permute.xlu0 %612
    %s615 = sor.u32 256, 16
    %616 = vbcast.lane.b32.xlu0 %v606, %s615
    %v617 = vpop.permute.xlu0 %616
    %s619 = sor.u32 256, 24
    %620 = vbcast.lane.b32.xlu0 %v606, %s619
    %v621 = vpop.permute.xlu0 %620
    %s623 = sor.u32 256, 32
    %624 = vbcast.lane.b32.xlu0 %v606, %s623
    %v625 = vpop.permute.xlu0 %624
    %v626 = vlaneseq
    %v627 = vshrl.u32 %v626, 7
    %v628 = vsub.s32 4, %v627
    %v629 = vrot.slane %v158, %v628
    %631 = vbcast.lane.b32.xlu0 %v629, 256
    %v632 = vpop.permute.xlu0 %631
    %s634 = sor.u32 256, 8
    %635 = vbcast.lane.b32.xlu0 %v629, %s634
    %v636 = vpop.permute.xlu0 %635
    %s638 = sor.u32 256, 16
    %639 = vbcast.lane.b32.xlu0 %v629, %s638
    %v640 = vpop.permute.xlu0 %639
    %s642 = sor.u32 256, 24
    %643 = vbcast.lane.b32.xlu0 %v629, %s642
    %v644 = vpop.permute.xlu0 %643
    %s646 = sor.u32 256, 32
    %647 = vbcast.lane.b32.xlu0 %v629, %s646
    %v648 = vpop.permute.xlu0 %647
    %v649 = vlaneseq
    %v650 = vshrl.u32 %v649, 7
    %v651 = vsub.s32 5, %v650
    %v652 = vrot.slane %v158, %v651
    %654 = vbcast.lane.b32.xlu0 %v652, 256
    %v655 = vpop.permute.xlu0 %654
    %s657 = sor.u32 256, 8
    %658 = vbcast.lane.b32.xlu0 %v652, %s657
    %v659 = vpop.permute.xlu0 %658
    %s661 = sor.u32 256, 16
    %662 = vbcast.lane.b32.xlu0 %v652, %s661
    %v663 = vpop.permute.xlu0 %662
    %s665 = sor.u32 256, 24
    %666 = vbcast.lane.b32.xlu0 %v652, %s665
    %v667 = vpop.permute.xlu0 %666
    %s669 = sor.u32 256, 32
    %670 = vbcast.lane.b32.xlu0 %v652, %s669
    %v671 = vpop.permute.xlu0 %670
    %v672 = vlaneseq
    %v673 = vshrl.u32 %v672, 7
    %v674 = vsub.s32 6, %v673
    %v675 = vrot.slane %v158, %v674
    %677 = vbcast.lane.b32.xlu0 %v675, 256
    %v678 = vpop.permute.xlu0 %677
    %s680 = sor.u32 256, 8
    %681 = vbcast.lane.b32.xlu0 %v675, %s680
    %v682 = vpop.permute.xlu0 %681
    %s684 = sor.u32 256, 16
    %685 = vbcast.lane.b32.xlu0 %v675, %s684
    %v686 = vpop.permute.xlu0 %685
    %s688 = sor.u32 256, 24
    %689 = vbcast.lane.b32.xlu0 %v675, %s688
    %v690 = vpop.permute.xlu0 %689
    %s692 = sor.u32 256, 32
    %693 = vbcast.lane.b32.xlu0 %v675, %s692
    %v694 = vpop.permute.xlu0 %693
    %v695 = vlaneseq
    %v696 = vshrl.u32 %v695, 7
    %v697 = vsub.s32 7, %v696
    %v698 = vrot.slane %v158, %v697
    %700 = vbcast.lane.b32.xlu0 %v698, 256
    %v701 = vpop.permute.xlu0 %700
    %s703 = sor.u32 256, 8
    %704 = vbcast.lane.b32.xlu0 %v698, %s703
    %v705 = vpop.permute.xlu0 %704
    %s707 = sor.u32 256, 16
    %708 = vbcast.lane.b32.xlu0 %v698, %s707
    %v709 = vpop.permute.xlu0 %708
    %s711 = sor.u32 256, 24
    %712 = vbcast.lane.b32.xlu0 %v698, %s711
    %v713 = vpop.permute.xlu0 %712
    %s715 = sor.u32 256, 32
    %716 = vbcast.lane.b32.xlu0 %v698, %s715
    %v717 = vpop.permute.xlu0 %716
    %v718 = vlaneseq
    %v719 = vshrl.u32 %v718, 7
    %v720 = vsub.s32 0, %v719
    %v721 = vrot.slane %v159, %v720
    %723 = vbcast.lane.b32.xlu0 %v721, 256
    %v724 = vpop.permute.xlu0 %723
    %s726 = sor.u32 256, 8
    %727 = vbcast.lane.b32.xlu0 %v721, %s726
    %v728 = vpop.permute.xlu0 %727
    %s730 = sor.u32 256, 16
    %731 = vbcast.lane.b32.xlu0 %v721, %s730
    %v732 = vpop.permute.xlu0 %731
    %s734 = sor.u32 256, 24
    %735 = vbcast.lane.b32.xlu0 %v721, %s734
    %v736 = vpop.permute.xlu0 %735
    %s738 = sor.u32 256, 32
    %739 = vbcast.lane.b32.xlu0 %v721, %s738
    %v740 = vpop.permute.xlu0 %739
    %v741 = vlaneseq
    %v742 = vshrl.u32 %v741, 7
    %v743 = vsub.s32 1, %v742
    %v744 = vrot.slane %v159, %v743
    %746 = vbcast.lane.b32.xlu0 %v744, 256
    %v747 = vpop.permute.xlu0 %746
    %s749 = sor.u32 256, 8
    %750 = vbcast.lane.b32.xlu0 %v744, %s749
    %v751 = vpop.permute.xlu0 %750
    %s753 = sor.u32 256, 16
    %754 = vbcast.lane.b32.xlu0 %v744, %s753
    %v755 = vpop.permute.xlu0 %754
    %s757 = sor.u32 256, 24
    %758 = vbcast.lane.b32.xlu0 %v744, %s757
    %v759 = vpop.permute.xlu0 %758
    %s761 = sor.u32 256, 32
    %762 = vbcast.lane.b32.xlu0 %v744, %s761
    %v763 = vpop.permute.xlu0 %762
    %v764 = vlaneseq
    %v765 = vshrl.u32 %v764, 7
    %v766 = vsub.s32 2, %v765
    %v767 = vrot.slane %v159, %v766
    %769 = vbcast.lane.b32.xlu0 %v767, 256
    %v770 = vpop.permute.xlu0 %769
    %s772 = sor.u32 256, 8
    %773 = vbcast.lane.b32.xlu0 %v767, %s772
    %v774 = vpop.permute.xlu0 %773
    %s776 = sor.u32 256, 16
    %777 = vbcast.lane.b32.xlu0 %v767, %s776
    %v778 = vpop.permute.xlu0 %777
    %s780 = sor.u32 256, 24
    %781 = vbcast.lane.b32.xlu0 %v767, %s780
    %v782 = vpop.permute.xlu0 %781
    %s784 = sor.u32 256, 32
    %785 = vbcast.lane.b32.xlu0 %v767, %s784
    %v786 = vpop.permute.xlu0 %785
    %v787 = vlaneseq
    %v788 = vshrl.u32 %v787, 7
    %v789 = vsub.s32 3, %v788
    %v790 = vrot.slane %v159, %v789
    %792 = vbcast.lane.b32.xlu0 %v790, 256
    %v793 = vpop.permute.xlu0 %792
    %s795 = sor.u32 256, 8
    %796 = vbcast.lane.b32.xlu0 %v790, %s795
    %v797 = vpop.permute.xlu0 %796
    %s799 = sor.u32 256, 16
    %800 = vbcast.lane.b32.xlu0 %v790, %s799
    %v801 = vpop.permute.xlu0 %800
    %s803 = sor.u32 256, 24
    %804 = vbcast.lane.b32.xlu0 %v790, %s803
    %v805 = vpop.permute.xlu0 %804
    %s807 = sor.u32 256, 32
    %808 = vbcast.lane.b32.xlu0 %v790, %s807
    %v809 = vpop.permute.xlu0 %808
    %v810 = vlaneseq
    %v811 = vshrl.u32 %v810, 7
    %v812 = vsub.s32 4, %v811
    %v813 = vrot.slane %v159, %v812
    %815 = vbcast.lane.b32.xlu0 %v813, 256
    %v816 = vpop.permute.xlu0 %815
    %s818 = sor.u32 256, 8
    %819 = vbcast.lane.b32.xlu0 %v813, %s818
    %v820 = vpop.permute.xlu0 %819
    %s822 = sor.u32 256, 16
    %823 = vbcast.lane.b32.xlu0 %v813, %s822
    %v824 = vpop.permute.xlu0 %823
    %s826 = sor.u32 256, 24
    %827 = vbcast.lane.b32.xlu0 %v813, %s826
    %v828 = vpop.permute.xlu0 %827
    %s830 = sor.u32 256, 32
    %831 = vbcast.lane.b32.xlu0 %v813, %s830
    %v832 = vpop.permute.xlu0 %831
    %v833 = vlaneseq
    %v834 = vshrl.u32 %v833, 7
    %v835 = vsub.s32 5, %v834
    %v836 = vrot.slane %v159, %v835
    %838 = vbcast.lane.b32.xlu0 %v836, 256
    %v839 = vpop.permute.xlu0 %838
    %s841 = sor.u32 256, 8
    %842 = vbcast.lane.b32.xlu0 %v836, %s841
    %v843 = vpop.permute.xlu0 %842
    %s845 = sor.u32 256, 16
    %846 = vbcast.lane.b32.xlu0 %v836, %s845
    %v847 = vpop.permute.xlu0 %846
    %s849 = sor.u32 256, 24
    %850 = vbcast.lane.b32.xlu0 %v836, %s849
    %v851 = vpop.permute.xlu0 %850
    %s853 = sor.u32 256, 32
    %854 = vbcast.lane.b32.xlu0 %v836, %s853
    %v855 = vpop.permute.xlu0 %854
    %v856 = vlaneseq
    %v857 = vshrl.u32 %v856, 7
    %v858 = vsub.s32 6, %v857
    %v859 = vrot.slane %v159, %v858
    %861 = vbcast.lane.b32.xlu0 %v859, 256
    %v862 = vpop.permute.xlu0 %861
    %s864 = sor.u32 256, 8
    %865 = vbcast.lane.b32.xlu0 %v859, %s864
    %v866 = vpop.permute.xlu0 %865
    %s868 = sor.u32 256, 16
    %869 = vbcast.lane.b32.xlu0 %v859, %s868
    %v870 = vpop.permute.xlu0 %869
    %s872 = sor.u32 256, 24
    %873 = vbcast.lane.b32.xlu0 %v859, %s872
    %v874 = vpop.permute.xlu0 %873
    %s876 = sor.u32 256, 32
    %877 = vbcast.lane.b32.xlu0 %v859, %s876
    %v878 = vpop.permute.xlu0 %877
    %v879 = vlaneseq
    %v880 = vshrl.u32 %v879, 7
    %v881 = vsub.s32 7, %v880
    %v882 = vrot.slane %v159, %v881
    %884 = vbcast.lane.b32.xlu0 %v882, 256
    %v885 = vpop.permute.xlu0 %884
    %s887 = sor.u32 256, 8
    %888 = vbcast.lane.b32.xlu0 %v882, %s887
    %v889 = vpop.permute.xlu0 %888
    %s891 = sor.u32 256, 16
    %892 = vbcast.lane.b32.xlu0 %v882, %s891
    %v893 = vpop.permute.xlu0 %892
    %s895 = sor.u32 256, 24
    %896 = vbcast.lane.b32.xlu0 %v882, %s895
    %v897 = vpop.permute.xlu0 %896
    %s899 = sor.u32 256, 32
    %900 = vbcast.lane.b32.xlu0 %v882, %s899
    %v901 = vpop.permute.xlu0 %900
    %v902 = vlaneseq
    %v903 = vshrl.u32 %v902, 7
    %v904 = vsub.s32 0, %v903
    %v905 = vrot.slane %v160, %v904
    %907 = vbcast.lane.b32.xlu0 %v905, 256
    %v908 = vpop.permute.xlu0 %907
    %s910 = sor.u32 256, 8
    %911 = vbcast.lane.b32.xlu0 %v905, %s910
    %v912 = vpop.permute.xlu0 %911
    %s914 = sor.u32 256, 16
    %915 = vbcast.lane.b32.xlu0 %v905, %s914
    %v916 = vpop.permute.xlu0 %915
    %s918 = sor.u32 256, 24
    %919 = vbcast.lane.b32.xlu0 %v905, %s918
    %v920 = vpop.permute.xlu0 %919
    %s922 = sor.u32 256, 32
    %923 = vbcast.lane.b32.xlu0 %v905, %s922
    %v924 = vpop.permute.xlu0 %923
    %v925 = vlaneseq
    %v926 = vshrl.u32 %v925, 7
    %v927 = vsub.s32 1, %v926
    %v928 = vrot.slane %v160, %v927
    %930 = vbcast.lane.b32.xlu0 %v928, 256
    %v931 = vpop.permute.xlu0 %930
    %s933 = sor.u32 256, 8
    %934 = vbcast.lane.b32.xlu0 %v928, %s933
    %v935 = vpop.permute.xlu0 %934
    %s937 = sor.u32 256, 16
    %938 = vbcast.lane.b32.xlu0 %v928, %s937
    %v939 = vpop.permute.xlu0 %938
    %s941 = sor.u32 256, 24
    %942 = vbcast.lane.b32.xlu0 %v928, %s941
    %v943 = vpop.permute.xlu0 %942
    %s945 = sor.u32 256, 32
    %946 = vbcast.lane.b32.xlu0 %v928, %s945
    %v947 = vpop.permute.xlu0 %946
    %v948 = vlaneseq
    %v949 = vshrl.u32 %v948, 7
    %v950 = vsub.s32 2, %v949
    %v951 = vrot.slane %v160, %v950
    %953 = vbcast.lane.b32.xlu0 %v951, 256
    %v954 = vpop.permute.xlu0 %953
    %s956 = sor.u32 256, 8
    %957 = vbcast.lane.b32.xlu0 %v951, %s956
    %v958 = vpop.permute.xlu0 %957
    %s960 = sor.u32 256, 16
    %961 = vbcast.lane.b32.xlu0 %v951, %s960
    %v962 = vpop.permute.xlu0 %961
    %s964 = sor.u32 256, 24
    %965 = vbcast.lane.b32.xlu0 %v951, %s964
    %v966 = vpop.permute.xlu0 %965
    %s968 = sor.u32 256, 32
    %969 = vbcast.lane.b32.xlu0 %v951, %s968
    %v970 = vpop.permute.xlu0 %969
    %v971 = vlaneseq
    %v972 = vshrl.u32 %v971, 7
    %v973 = vsub.s32 3, %v972
    %v974 = vrot.slane %v160, %v973
    %976 = vbcast.lane.b32.xlu0 %v974, 256
    %v977 = vpop.permute.xlu0 %976
    %s979 = sor.u32 256, 8
    %980 = vbcast.lane.b32.xlu0 %v974, %s979
    %v981 = vpop.permute.xlu0 %980
    %s983 = sor.u32 256, 16
    %984 = vbcast.lane.b32.xlu0 %v974, %s983
    %v985 = vpop.permute.xlu0 %984
    %s987 = sor.u32 256, 24
    %988 = vbcast.lane.b32.xlu0 %v974, %s987
    %v989 = vpop.permute.xlu0 %988
    %s991 = sor.u32 256, 32
    %992 = vbcast.lane.b32.xlu0 %v974, %s991
    %v993 = vpop.permute.xlu0 %992
    %v994 = vlaneseq
    %v995 = vshrl.u32 %v994, 7
    %v996 = vsub.s32 4, %v995
    %v997 = vrot.slane %v160, %v996
    %999 = vbcast.lane.b32.xlu0 %v997, 256
    %v1000 = vpop.permute.xlu0 %999
    %s1002 = sor.u32 256, 8
    %1003 = vbcast.lane.b32.xlu0 %v997, %s1002
    %v1004 = vpop.permute.xlu0 %1003
    %s1006 = sor.u32 256, 16
    %1007 = vbcast.lane.b32.xlu0 %v997, %s1006
    %v1008 = vpop.permute.xlu0 %1007
    %s1010 = sor.u32 256, 24
    %1011 = vbcast.lane.b32.xlu0 %v997, %s1010
    %v1012 = vpop.permute.xlu0 %1011
    %s1014 = sor.u32 256, 32
    %1015 = vbcast.lane.b32.xlu0 %v997, %s1014
    %v1016 = vpop.permute.xlu0 %1015
    %v1017 = vlaneseq
    %v1018 = vshrl.u32 %v1017, 7
    %v1019 = vsub.s32 5, %v1018
    %v1020 = vrot.slane %v160, %v1019
    %1022 = vbcast.lane.b32.xlu0 %v1020, 256
    %v1023 = vpop.permute.xlu0 %1022
    %s1025 = sor.u32 256, 8
    %1026 = vbcast.lane.b32.xlu0 %v1020, %s1025
    %v1027 = vpop.permute.xlu0 %1026
    %s1029 = sor.u32 256, 16
    %1030 = vbcast.lane.b32.xlu0 %v1020, %s1029
    %v1031 = vpop.permute.xlu0 %1030
    %s1033 = sor.u32 256, 24
    %1034 = vbcast.lane.b32.xlu0 %v1020, %s1033
    %v1035 = vpop.permute.xlu0 %1034
    %s1037 = sor.u32 256, 32
    %1038 = vbcast.lane.b32.xlu0 %v1020, %s1037
    %v1039 = vpop.permute.xlu0 %1038
    %v1040 = vlaneseq
    %v1041 = vshrl.u32 %v1040, 7
    %v1042 = vsub.s32 6, %v1041
    %v1043 = vrot.slane %v160, %v1042
    %1045 = vbcast.lane.b32.xlu0 %v1043, 256
    %v1046 = vpop.permute.xlu0 %1045
    %s1048 = sor.u32 256, 8
    %1049 = vbcast.lane.b32.xlu0 %v1043, %s1048
    %v1050 = vpop.permute.xlu0 %1049
    %s1052 = sor.u32 256, 16
    %1053 = vbcast.lane.b32.xlu0 %v1043, %s1052
    %v1054 = vpop.permute.xlu0 %1053
    %s1056 = sor.u32 256, 24
    %1057 = vbcast.lane.b32.xlu0 %v1043, %s1056
    %v1058 = vpop.permute.xlu0 %1057
    %s1060 = sor.u32 256, 32
    %1061 = vbcast.lane.b32.xlu0 %v1043, %s1060
    %v1062 = vpop.permute.xlu0 %1061
    %v1063 = vlaneseq
    %v1064 = vshrl.u32 %v1063, 7
    %v1065 = vsub.s32 7, %v1064
    %v1066 = vrot.slane %v160, %v1065
    %1068 = vbcast.lane.b32.xlu0 %v1066, 256
    %v1069 = vpop.permute.xlu0 %1068
    %s1071 = sor.u32 256, 8
    %1072 = vbcast.lane.b32.xlu0 %v1066, %s1071
    %v1073 = vpop.permute.xlu0 %1072
    %s1075 = sor.u32 256, 16
    %1076 = vbcast.lane.b32.xlu0 %v1066, %s1075
    %v1077 = vpop.permute.xlu0 %1076
    %s1079 = sor.u32 256, 24
    %1080 = vbcast.lane.b32.xlu0 %v1066, %s1079
    %v1081 = vpop.permute.xlu0 %1080
    %s1083 = sor.u32 256, 32
    %1084 = vbcast.lane.b32.xlu0 %v1066, %s1083
    %v1085 = vpop.permute.xlu0 %1084
    %v1286 = vmul.f32 %v146, %v172
    %v1287 = vmul.f32 %v147, %v176
    %v1288 = vmul.f32 %v148, %v180
    %v1289 = vmul.f32 %v149, %v184
    %v1290 = vmul.f32 %v150, %v188
    %v1291 = vmul.f32 %v146, %v195
    %v1292 = vmul.f32 %v147, %v199
    %v1293 = vmul.f32 %v148, %v203
    %v1294 = vmul.f32 %v149, %v207
    %v1295 = vmul.f32 %v150, %v211
    %v1296 = vmul.f32 %v146, %v218
    %v1297 = vmul.f32 %v147, %v222
    %v1298 = vmul.f32 %v148, %v226
    %v1299 = vmul.f32 %v149, %v230
    %v1300 = vmul.f32 %v150, %v234
    %v1301 = vmul.f32 %v146, %v241
    %v1302 = vmul.f32 %v147, %v245
    %v1303 = vmul.f32 %v148, %v249
    %v1304 = vmul.f32 %v149, %v253
    %v1305 = vmul.f32 %v150, %v257
    %v1306 = vmul.f32 %v146, %v264
    %v1307 = vmul.f32 %v147, %v268
    %v1308 = vmul.f32 %v148, %v272
    %v1309 = vmul.f32 %v149, %v276
    %v1310 = vmul.f32 %v150, %v280
    %v1311 = vmul.f32 %v146, %v287
    %v1312 = vmul.f32 %v147, %v291
    %v1313 = vmul.f32 %v148, %v295
    %v1314 = vmul.f32 %v149, %v299
    %v1315 = vmul.f32 %v150, %v303
    %v1316 = vmul.f32 %v146, %v310
    %v1317 = vmul.f32 %v147, %v314
    %v1318 = vmul.f32 %v148, %v318
    %v1319 = vmul.f32 %v149, %v322
    %v1320 = vmul.f32 %v150, %v326
    %v1321 = vmul.f32 %v146, %v333
    %v1322 = vmul.f32 %v147, %v337
    %v1323 = vmul.f32 %v148, %v341
    %v1324 = vmul.f32 %v149, %v345
    %v1325 = vmul.f32 %v150, %v349
    %v1326 = vmul.f32 %v146, %v356
    %v1327 = vmul.f32 %v147, %v360
    %v1328 = vmul.f32 %v148, %v364
    %v1329 = vmul.f32 %v149, %v368
    %v1330 = vmul.f32 %v150, %v372
    %v1331 = vmul.f32 %v146, %v379
    %v1332 = vmul.f32 %v147, %v383
    %v1333 = vmul.f32 %v148, %v387
    %v1334 = vmul.f32 %v149, %v391
    %v1335 = vmul.f32 %v150, %v395
    %v1336 = vmul.f32 %v146, %v402
    %v1337 = vmul.f32 %v147, %v406
    %v1338 = vmul.f32 %v148, %v410
    %v1339 = vmul.f32 %v149, %v414
    %v1340 = vmul.f32 %v150, %v418
    %v1341 = vmul.f32 %v146, %v425
    %v1342 = vmul.f32 %v147, %v429
    %v1343 = vmul.f32 %v148, %v433
    %v1344 = vmul.f32 %v149, %v437
    %v1345 = vmul.f32 %v150, %v441
    %v1346 = vmul.f32 %v146, %v448
    %v1347 = vmul.f32 %v147, %v452
    %v1348 = vmul.f32 %v148, %v456
    %v1349 = vmul.f32 %v149, %v460
    %v1350 = vmul.f32 %v150, %v464
    %v1351 = vmul.f32 %v146, %v471
    %v1352 = vmul.f32 %v147, %v475
    %v1353 = vmul.f32 %v148, %v479
    %v1354 = vmul.f32 %v149, %v483
    %v1355 = vmul.f32 %v150, %v487
    %v1356 = vmul.f32 %v146, %v494
    %v1357 = vmul.f32 %v147, %v498
    %v1358 = vmul.f32 %v148, %v502
    %v1359 = vmul.f32 %v149, %v506
    %v1360 = vmul.f32 %v150, %v510
    %v1361 = vmul.f32 %v146, %v517
    %v1362 = vmul.f32 %v147, %v521
    %v1363 = vmul.f32 %v148, %v525
    %v1364 = vmul.f32 %v149, %v529
    %v1365 = vmul.f32 %v150, %v533
    %v1366 = vmul.f32 %v146, %v540
    %v1367 = vmul.f32 %v147, %v544
    %v1368 = vmul.f32 %v148, %v548
    %v1369 = vmul.f32 %v149, %v552
    %v1370 = vmul.f32 %v150, %v556
    %v1371 = vmul.f32 %v146, %v563
    %v1372 = vmul.f32 %v147, %v567
    %v1373 = vmul.f32 %v148, %v571
    %v1374 = vmul.f32 %v149, %v575
    %v1375 = vmul.f32 %v150, %v579
    %v1376 = vmul.f32 %v146, %v586
    %v1377 = vmul.f32 %v147, %v590
    %v1378 = vmul.f32 %v148, %v594
    %v1379 = vmul.f32 %v149, %v598
    %v1380 = vmul.f32 %v150, %v602
    %v1381 = vmul.f32 %v146, %v609
    %v1382 = vmul.f32 %v147, %v613
    %v1383 = vmul.f32 %v148, %v617
    %v1384 = vmul.f32 %v149, %v621
    %v1385 = vmul.f32 %v150, %v625
    %v1386 = vmul.f32 %v146, %v632
    %v1387 = vmul.f32 %v147, %v636
    %v1388 = vmul.f32 %v148, %v640
    %v1389 = vmul.f32 %v149, %v644
    %v1390 = vmul.f32 %v150, %v648
    %v1391 = vmul.f32 %v146, %v655
    %v1392 = vmul.f32 %v147, %v659
    %v1393 = vmul.f32 %v148, %v663
    %v1394 = vmul.f32 %v149, %v667
    %v1395 = vmul.f32 %v150, %v671
    %v1396 = vmul.f32 %v146, %v678
    %v1397 = vmul.f32 %v147, %v682
    %v1398 = vmul.f32 %v148, %v686
    %v1399 = vmul.f32 %v149, %v690
    %v1400 = vmul.f32 %v150, %v694
    %v1401 = vmul.f32 %v146, %v701
    %v1402 = vmul.f32 %v147, %v705
    %v1403 = vmul.f32 %v148, %v709
    %v1404 = vmul.f32 %v149, %v713
    %v1405 = vmul.f32 %v150, %v717
    %v1406 = vmul.f32 %v146, %v724
    %v1407 = vmul.f32 %v147, %v728
    %v1408 = vmul.f32 %v148, %v732
    %v1409 = vmul.f32 %v149, %v736
    %v1410 = vmul.f32 %v150, %v740
    %v1411 = vmul.f32 %v146, %v747
    %v1412 = vmul.f32 %v147, %v751
    %v1413 = vmul.f32 %v148, %v755
    %v1414 = vmul.f32 %v149, %v759
    %v1415 = vmul.f32 %v150, %v763
    %v1416 = vmul.f32 %v146, %v770
    %v1417 = vmul.f32 %v147, %v774
    %v1418 = vmul.f32 %v148, %v778
    %v1419 = vmul.f32 %v149, %v782
    %v1420 = vmul.f32 %v150, %v786
    %v1421 = vmul.f32 %v146, %v793
    %v1422 = vmul.f32 %v147, %v797
    %v1423 = vmul.f32 %v148, %v801
    %v1424 = vmul.f32 %v149, %v805
    %v1425 = vmul.f32 %v150, %v809
    %v1426 = vmul.f32 %v146, %v816
    %v1427 = vmul.f32 %v147, %v820
    %v1428 = vmul.f32 %v148, %v824
    %v1429 = vmul.f32 %v149, %v828
    %v1430 = vmul.f32 %v150, %v832
    %v1431 = vmul.f32 %v146, %v839
    %v1432 = vmul.f32 %v147, %v843
    %v1433 = vmul.f32 %v148, %v847
    %v1434 = vmul.f32 %v149, %v851
    %v1435 = vmul.f32 %v150, %v855
    %v1436 = vmul.f32 %v146, %v862
    %v1437 = vmul.f32 %v147, %v866
    %v1438 = vmul.f32 %v148, %v870
    %v1439 = vmul.f32 %v149, %v874
    %v1440 = vmul.f32 %v150, %v878
    %v1441 = vmul.f32 %v146, %v885
    %v1442 = vmul.f32 %v147, %v889
    %v1443 = vmul.f32 %v148, %v893
    %v1444 = vmul.f32 %v149, %v897
    %v1445 = vmul.f32 %v150, %v901
    %v1446 = vmul.f32 %v146, %v908
    %v1447 = vmul.f32 %v147, %v912
    %v1448 = vmul.f32 %v148, %v916
    %v1449 = vmul.f32 %v149, %v920
    %v1450 = vmul.f32 %v150, %v924
    %v1451 = vmul.f32 %v146, %v931
    %v1452 = vmul.f32 %v147, %v935
    %v1453 = vmul.f32 %v148, %v939
    %v1454 = vmul.f32 %v149, %v943
    %v1455 = vmul.f32 %v150, %v947
    %v1456 = vmul.f32 %v146, %v954
    %v1457 = vmul.f32 %v147, %v958
    %v1458 = vmul.f32 %v148, %v962
    %v1459 = vmul.f32 %v149, %v966
    %v1460 = vmul.f32 %v150, %v970
    %v1461 = vmul.f32 %v146, %v977
    %v1462 = vmul.f32 %v147, %v981
    %v1463 = vmul.f32 %v148, %v985
    %v1464 = vmul.f32 %v149, %v989
    %v1465 = vmul.f32 %v150, %v993
    %v1466 = vmul.f32 %v146, %v1000
    %v1467 = vmul.f32 %v147, %v1004
    %v1468 = vmul.f32 %v148, %v1008
    %v1469 = vmul.f32 %v149, %v1012
    %v1470 = vmul.f32 %v150, %v1016
    %v1471 = vmul.f32 %v146, %v1023
    %v1472 = vmul.f32 %v147, %v1027
    %v1473 = vmul.f32 %v148, %v1031
    %v1474 = vmul.f32 %v149, %v1035
    %v1475 = vmul.f32 %v150, %v1039
    %v1476 = vmul.f32 %v146, %v1046
    %v1477 = vmul.f32 %v147, %v1050
    %v1478 = vmul.f32 %v148, %v1054
    %v1479 = vmul.f32 %v149, %v1058
    %v1480 = vmul.f32 %v150, %v1062
    %v1481 = vmul.f32 %v146, %v1069
    %v1482 = vmul.f32 %v147, %v1073
    %v1483 = vmul.f32 %v148, %v1077
    %v1484 = vmul.f32 %v149, %v1081
    %v1485 = vmul.f32 %v150, %v1085
    %v1486 = vmul.f32 %v151, %v172
    %v1487 = vmul.f32 %v152, %v176
    %v1488 = vmul.f32 %v153, %v180
    %v1489 = vmul.f32 %v154, %v184
    %v1490 = vmul.f32 %v155, %v188
    %v1491 = vmul.f32 %v151, %v195
    %v1492 = vmul.f32 %v152, %v199
    %v1493 = vmul.f32 %v153, %v203
    %v1494 = vmul.f32 %v154, %v207
    %v1495 = vmul.f32 %v155, %v211
    %v1496 = vmul.f32 %v151, %v218
    %v1497 = vmul.f32 %v152, %v222
    %v1498 = vmul.f32 %v153, %v226
    %v1499 = vmul.f32 %v154, %v230
    %v1500 = vmul.f32 %v155, %v234
    %v1501 = vmul.f32 %v151, %v241
    %v1502 = vmul.f32 %v152, %v245
    %v1503 = vmul.f32 %v153, %v249
    %v1504 = vmul.f32 %v154, %v253
    %v1505 = vmul.f32 %v155, %v257
    %v1506 = vmul.f32 %v151, %v264
    %v1507 = vmul.f32 %v152, %v268
    %v1508 = vmul.f32 %v153, %v272
    %v1509 = vmul.f32 %v154, %v276
    %v1510 = vmul.f32 %v155, %v280
    %v1511 = vmul.f32 %v151, %v287
    %v1512 = vmul.f32 %v152, %v291
    %v1513 = vmul.f32 %v153, %v295
    %v1514 = vmul.f32 %v154, %v299
    %v1515 = vmul.f32 %v155, %v303
    %v1516 = vmul.f32 %v151, %v310
    %v1517 = vmul.f32 %v152, %v314
    %v1518 = vmul.f32 %v153, %v318
    %v1519 = vmul.f32 %v154, %v322
    %v1520 = vmul.f32 %v155, %v326
    %v1521 = vmul.f32 %v151, %v333
    %v1522 = vmul.f32 %v152, %v337
    %v1523 = vmul.f32 %v153, %v341
    %v1524 = vmul.f32 %v154, %v345
    %v1525 = vmul.f32 %v155, %v349
    %v1526 = vmul.f32 %v151, %v356
    %v1527 = vmul.f32 %v152, %v360
    %v1528 = vmul.f32 %v153, %v364
    %v1529 = vmul.f32 %v154, %v368
    %v1530 = vmul.f32 %v155, %v372
    %v1531 = vmul.f32 %v151, %v379
    %v1532 = vmul.f32 %v152, %v383
    %v1533 = vmul.f32 %v153, %v387
    %v1534 = vmul.f32 %v154, %v391
    %v1535 = vmul.f32 %v155, %v395
    %v1536 = vmul.f32 %v151, %v402
    %v1537 = vmul.f32 %v152, %v406
    %v1538 = vmul.f32 %v153, %v410
    %v1539 = vmul.f32 %v154, %v414
    %v1540 = vmul.f32 %v155, %v418
    %v1541 = vmul.f32 %v151, %v425
    %v1542 = vmul.f32 %v152, %v429
    %v1543 = vmul.f32 %v153, %v433
    %v1544 = vmul.f32 %v154, %v437
    %v1545 = vmul.f32 %v155, %v441
    %v1546 = vmul.f32 %v151, %v448
    %v1547 = vmul.f32 %v152, %v452
    %v1548 = vmul.f32 %v153, %v456
    %v1549 = vmul.f32 %v154, %v460
    %v1550 = vmul.f32 %v155, %v464
    %v1551 = vmul.f32 %v151, %v471
    %v1552 = vmul.f32 %v152, %v475
    %v1553 = vmul.f32 %v153, %v479
    %v1554 = vmul.f32 %v154, %v483
    %v1555 = vmul.f32 %v155, %v487
    %v1556 = vmul.f32 %v151, %v494
    %v1557 = vmul.f32 %v152, %v498
    %v1558 = vmul.f32 %v153, %v502
    %v1559 = vmul.f32 %v154, %v506
    %v1560 = vmul.f32 %v155, %v510
    %v1561 = vmul.f32 %v151, %v517
    %v1562 = vmul.f32 %v152, %v521
    %v1563 = vmul.f32 %v153, %v525
    %v1564 = vmul.f32 %v154, %v529
    %v1565 = vmul.f32 %v155, %v533
    %v1566 = vmul.f32 %v151, %v540
    %v1567 = vmul.f32 %v152, %v544
    %v1568 = vmul.f32 %v153, %v548
    %v1569 = vmul.f32 %v154, %v552
    %v1570 = vmul.f32 %v155, %v556
    %v1571 = vmul.f32 %v151, %v563
    %v1572 = vmul.f32 %v152, %v567
    %v1573 = vmul.f32 %v153, %v571
    %v1574 = vmul.f32 %v154, %v575
    %v1575 = vmul.f32 %v155, %v579
    %v1576 = vmul.f32 %v151, %v586
    %v1577 = vmul.f32 %v152, %v590
    %v1578 = vmul.f32 %v153, %v594
    %v1579 = vmul.f32 %v154, %v598
    %v1580 = vmul.f32 %v155, %v602
    %v1581 = vmul.f32 %v151, %v609
    %v1582 = vmul.f32 %v152, %v613
    %v1583 = vmul.f32 %v153, %v617
    %v1584 = vmul.f32 %v154, %v621
    %v1585 = vmul.f32 %v155, %v625
    %v1586 = vmul.f32 %v151, %v632
    %v1587 = vmul.f32 %v152, %v636
    %v1588 = vmul.f32 %v153, %v640
    %v1589 = vmul.f32 %v154, %v644
    %v1590 = vmul.f32 %v155, %v648
    %v1591 = vmul.f32 %v151, %v655
    %v1592 = vmul.f32 %v152, %v659
    %v1593 = vmul.f32 %v153, %v663
    %v1594 = vmul.f32 %v154, %v667
    %v1595 = vmul.f32 %v155, %v671
    %v1596 = vmul.f32 %v151, %v678
    %v1597 = vmul.f32 %v152, %v682
    %v1598 = vmul.f32 %v153, %v686
    %v1599 = vmul.f32 %v154, %v690
    %v1600 = vmul.f32 %v155, %v694
    %v1601 = vmul.f32 %v151, %v701
    %v1602 = vmul.f32 %v152, %v705
    %v1603 = vmul.f32 %v153, %v709
    %v1604 = vmul.f32 %v154, %v713
    %v1605 = vmul.f32 %v155, %v717
    %v1606 = vmul.f32 %v151, %v724
    %v1607 = vmul.f32 %v152, %v728
    %v1608 = vmul.f32 %v153, %v732
    %v1609 = vmul.f32 %v154, %v736
    %v1610 = vmul.f32 %v155, %v740
    %v1611 = vmul.f32 %v151, %v747
    %v1612 = vmul.f32 %v152, %v751
    %v1613 = vmul.f32 %v153, %v755
    %v1614 = vmul.f32 %v154, %v759
    %v1615 = vmul.f32 %v155, %v763
    %v1616 = vmul.f32 %v151, %v770
    %v1617 = vmul.f32 %v152, %v774
    %v1618 = vmul.f32 %v153, %v778
    %v1619 = vmul.f32 %v154, %v782
    %v1620 = vmul.f32 %v155, %v786
    %v1621 = vmul.f32 %v151, %v793
    %v1622 = vmul.f32 %v152, %v797
    %v1623 = vmul.f32 %v153, %v801
    %v1624 = vmul.f32 %v154, %v805
    %v1625 = vmul.f32 %v155, %v809
    %v1626 = vmul.f32 %v151, %v816
    %v1627 = vmul.f32 %v152, %v820
    %v1628 = vmul.f32 %v153, %v824
    %v1629 = vmul.f32 %v154, %v828
    %v1630 = vmul.f32 %v155, %v832
    %v1631 = vmul.f32 %v151, %v839
    %v1632 = vmul.f32 %v152, %v843
    %v1633 = vmul.f32 %v153, %v847
    %v1634 = vmul.f32 %v154, %v851
    %v1635 = vmul.f32 %v155, %v855
    %v1636 = vmul.f32 %v151, %v862
    %v1637 = vmul.f32 %v152, %v866
    %v1638 = vmul.f32 %v153, %v870
    %v1639 = vmul.f32 %v154, %v874
    %v1640 = vmul.f32 %v155, %v878
    %v1641 = vmul.f32 %v151, %v885
    %v1642 = vmul.f32 %v152, %v889
    %v1643 = vmul.f32 %v153, %v893
    %v1644 = vmul.f32 %v154, %v897
    %v1645 = vmul.f32 %v155, %v901
    %v1646 = vmul.f32 %v151, %v908
    %v1647 = vmul.f32 %v152, %v912
    %v1648 = vmul.f32 %v153, %v916
    %v1649 = vmul.f32 %v154, %v920
    %v1650 = vmul.f32 %v155, %v924
    %v1651 = vmul.f32 %v151, %v931
    %v1652 = vmul.f32 %v152, %v935
    %v1653 = vmul.f32 %v153, %v939
    %v1654 = vmul.f32 %v154, %v943
    %v1655 = vmul.f32 %v155, %v947
    %v1656 = vmul.f32 %v151, %v954
    %v1657 = vmul.f32 %v152, %v958
    %v1658 = vmul.f32 %v153, %v962
    %v1659 = vmul.f32 %v154, %v966
    %v1660 = vmul.f32 %v155, %v970
    %v1661 = vmul.f32 %v151, %v977
    %v1662 = vmul.f32 %v152, %v981
    %v1663 = vmul.f32 %v153, %v985
    %v1664 = vmul.f32 %v154, %v989
    %v1665 = vmul.f32 %v155, %v993
    %v1666 = vmul.f32 %v151, %v1000
    %v1667 = vmul.f32 %v152, %v1004
    %v1668 = vmul.f32 %v153, %v1008
    %v1669 = vmul.f32 %v154, %v1012
    %v1670 = vmul.f32 %v155, %v1016
    %v1671 = vmul.f32 %v151, %v1023
    %v1672 = vmul.f32 %v152, %v1027
    %v1673 = vmul.f32 %v153, %v1031
    %v1674 = vmul.f32 %v154, %v1035
    %v1675 = vmul.f32 %v155, %v1039
    %v1676 = vmul.f32 %v151, %v1046
    %v1677 = vmul.f32 %v152, %v1050
    %v1678 = vmul.f32 %v153, %v1054
    %v1679 = vmul.f32 %v154, %v1058
    %v1680 = vmul.f32 %v155, %v1062
    %v1681 = vmul.f32 %v151, %v1069
    %v1682 = vmul.f32 %v152, %v1073
    %v1683 = vmul.f32 %v153, %v1077
    %v1684 = vmul.f32 %v154, %v1081
    %v1685 = vmul.f32 %v155, %v1085
    %2086 = vset.pattern.permute.xlu0 0
    %2087 = vperm.xlu0 %2086, %v1286
    %v2088 = vpop.permute.xlu0 %2087
    %2089 = vset.pattern.permute.xlu0 0
    %2090 = vperm.xlu0 %2089, %v1287
    %v2091 = vpop.permute.xlu0 %2090
    %2092 = vset.pattern.permute.xlu0 0
    %2093 = vperm.xlu0 %2092, %v1288
    %v2094 = vpop.permute.xlu0 %2093
    %2095 = vset.pattern.permute.xlu0 0
    %2096 = vperm.xlu0 %2095, %v1289
    %v2097 = vpop.permute.xlu0 %2096
    %2098 = vset.pattern.permute.xlu0 0
    %2099 = vperm.xlu0 %2098, %v1290
    %v2100 = vpop.permute.xlu0 %2099
    %2101 = vset.pattern.permute.xlu0 0
    %2102 = vperm.xlu0 %2101, %v1291
    %v2103 = vpop.permute.xlu0 %2102
    %2104 = vset.pattern.permute.xlu0 0
    %2105 = vperm.xlu0 %2104, %v1292
    %v2106 = vpop.permute.xlu0 %2105
    %2107 = vset.pattern.permute.xlu0 0
    %2108 = vperm.xlu0 %2107, %v1293
    %v2109 = vpop.permute.xlu0 %2108
    %2110 = vset.pattern.permute.xlu0 0
    %2111 = vperm.xlu0 %2110, %v1294
    %v2112 = vpop.permute.xlu0 %2111
    %2113 = vset.pattern.permute.xlu0 0
    %2114 = vperm.xlu0 %2113, %v1295
    %v2115 = vpop.permute.xlu0 %2114
    %2116 = vset.pattern.permute.xlu0 0
    %2117 = vperm.xlu0 %2116, %v1296
    %v2118 = vpop.permute.xlu0 %2117
    %2119 = vset.pattern.permute.xlu0 0
    %2120 = vperm.xlu0 %2119, %v1297
    %v2121 = vpop.permute.xlu0 %2120
    %2122 = vset.pattern.permute.xlu0 0
    %2123 = vperm.xlu0 %2122, %v1298
    %v2124 = vpop.permute.xlu0 %2123
    %2125 = vset.pattern.permute.xlu0 0
    %2126 = vperm.xlu0 %2125, %v1299
    %v2127 = vpop.permute.xlu0 %2126
    %2128 = vset.pattern.permute.xlu0 0
    %2129 = vperm.xlu0 %2128, %v1300
    %v2130 = vpop.permute.xlu0 %2129
    %2131 = vset.pattern.permute.xlu0 0
    %2132 = vperm.xlu0 %2131, %v1301
    %v2133 = vpop.permute.xlu0 %2132
    %2134 = vset.pattern.permute.xlu0 0
    %2135 = vperm.xlu0 %2134, %v1302
    %v2136 = vpop.permute.xlu0 %2135
    %2137 = vset.pattern.permute.xlu0 0
    %2138 = vperm.xlu0 %2137, %v1303
    %v2139 = vpop.permute.xlu0 %2138
    %2140 = vset.pattern.permute.xlu0 0
    %2141 = vperm.xlu0 %2140, %v1304
    %v2142 = vpop.permute.xlu0 %2141
    %2143 = vset.pattern.permute.xlu0 0
    %2144 = vperm.xlu0 %2143, %v1305
    %v2145 = vpop.permute.xlu0 %2144
    %2146 = vset.pattern.permute.xlu0 0
    %2147 = vperm.xlu0 %2146, %v1306
    %v2148 = vpop.permute.xlu0 %2147
    %2149 = vset.pattern.permute.xlu0 0
    %2150 = vperm.xlu0 %2149, %v1307
    %v2151 = vpop.permute.xlu0 %2150
    %2152 = vset.pattern.permute.xlu0 0
    %2153 = vperm.xlu0 %2152, %v1308
    %v2154 = vpop.permute.xlu0 %2153
    %2155 = vset.pattern.permute.xlu0 0
    %2156 = vperm.xlu0 %2155, %v1309
    %v2157 = vpop.permute.xlu0 %2156
    %2158 = vset.pattern.permute.xlu0 0
    %2159 = vperm.xlu0 %2158, %v1310
    %v2160 = vpop.permute.xlu0 %2159
    %2161 = vset.pattern.permute.xlu0 0
    %2162 = vperm.xlu0 %2161, %v1311
    %v2163 = vpop.permute.xlu0 %2162
    %2164 = vset.pattern.permute.xlu0 0
    %2165 = vperm.xlu0 %2164, %v1312
    %v2166 = vpop.permute.xlu0 %2165
    %2167 = vset.pattern.permute.xlu0 0
    %2168 = vperm.xlu0 %2167, %v1313
    %v2169 = vpop.permute.xlu0 %2168
    %2170 = vset.pattern.permute.xlu0 0
    %2171 = vperm.xlu0 %2170, %v1314
    %v2172 = vpop.permute.xlu0 %2171
    %2173 = vset.pattern.permute.xlu0 0
    %2174 = vperm.xlu0 %2173, %v1315
    %v2175 = vpop.permute.xlu0 %2174
    %2176 = vset.pattern.permute.xlu0 0
    %2177 = vperm.xlu0 %2176, %v1316
    %v2178 = vpop.permute.xlu0 %2177
    %2179 = vset.pattern.permute.xlu0 0
    %2180 = vperm.xlu0 %2179, %v1317
    %v2181 = vpop.permute.xlu0 %2180
    %2182 = vset.pattern.permute.xlu0 0
    %2183 = vperm.xlu0 %2182, %v1318
    %v2184 = vpop.permute.xlu0 %2183
    %2185 = vset.pattern.permute.xlu0 0
    %2186 = vperm.xlu0 %2185, %v1319
    %v2187 = vpop.permute.xlu0 %2186
    %2188 = vset.pattern.permute.xlu0 0
    %2189 = vperm.xlu0 %2188, %v1320
    %v2190 = vpop.permute.xlu0 %2189
    %2191 = vset.pattern.permute.xlu0 0
    %2192 = vperm.xlu0 %2191, %v1321
    %v2193 = vpop.permute.xlu0 %2192
    %2194 = vset.pattern.permute.xlu0 0
    %2195 = vperm.xlu0 %2194, %v1322
    %v2196 = vpop.permute.xlu0 %2195
    %2197 = vset.pattern.permute.xlu0 0
    %2198 = vperm.xlu0 %2197, %v1323
    %v2199 = vpop.permute.xlu0 %2198
    %2200 = vset.pattern.permute.xlu0 0
    %2201 = vperm.xlu0 %2200, %v1324
    %v2202 = vpop.permute.xlu0 %2201
    %2203 = vset.pattern.permute.xlu0 0
    %2204 = vperm.xlu0 %2203, %v1325
    %v2205 = vpop.permute.xlu0 %2204
    %2206 = vset.pattern.permute.xlu0 0
    %2207 = vperm.xlu0 %2206, %v1326
    %v2208 = vpop.permute.xlu0 %2207
    %2209 = vset.pattern.permute.xlu0 0
    %2210 = vperm.xlu0 %2209, %v1327
    %v2211 = vpop.permute.xlu0 %2210
    %2212 = vset.pattern.permute.xlu0 0
    %2213 = vperm.xlu0 %2212, %v1328
    %v2214 = vpop.permute.xlu0 %2213
    %2215 = vset.pattern.permute.xlu0 0
    %2216 = vperm.xlu0 %2215, %v1329
    %v2217 = vpop.permute.xlu0 %2216
    %2218 = vset.pattern.permute.xlu0 0
    %2219 = vperm.xlu0 %2218, %v1330
    %v2220 = vpop.permute.xlu0 %2219
    %2221 = vset.pattern.permute.xlu0 0
    %2222 = vperm.xlu0 %2221, %v1331
    %v2223 = vpop.permute.xlu0 %2222
    %2224 = vset.pattern.permute.xlu0 0
    %2225 = vperm.xlu0 %2224, %v1332
    %v2226 = vpop.permute.xlu0 %2225
    %2227 = vset.pattern.permute.xlu0 0
    %2228 = vperm.xlu0 %2227, %v1333
    %v2229 = vpop.permute.xlu0 %2228
    %2230 = vset.pattern.permute.xlu0 0
    %2231 = vperm.xlu0 %2230, %v1334
    %v2232 = vpop.permute.xlu0 %2231
    %2233 = vset.pattern.permute.xlu0 0
    %2234 = vperm.xlu0 %2233, %v1335
    %v2235 = vpop.permute.xlu0 %2234
    %2236 = vset.pattern.permute.xlu0 0
    %2237 = vperm.xlu0 %2236, %v1336
    %v2238 = vpop.permute.xlu0 %2237
    %2239 = vset.pattern.permute.xlu0 0
    %2240 = vperm.xlu0 %2239, %v1337
    %v2241 = vpop.permute.xlu0 %2240
    %2242 = vset.pattern.permute.xlu0 0
    %2243 = vperm.xlu0 %2242, %v1338
    %v2244 = vpop.permute.xlu0 %2243
    %2245 = vset.pattern.permute.xlu0 0
    %2246 = vperm.xlu0 %2245, %v1339
    %v2247 = vpop.permute.xlu0 %2246
    %2248 = vset.pattern.permute.xlu0 0
    %2249 = vperm.xlu0 %2248, %v1340
    %v2250 = vpop.permute.xlu0 %2249
    %2251 = vset.pattern.permute.xlu0 0
    %2252 = vperm.xlu0 %2251, %v1341
    %v2253 = vpop.permute.xlu0 %2252
    %2254 = vset.pattern.permute.xlu0 0
    %2255 = vperm.xlu0 %2254, %v1342
    %v2256 = vpop.permute.xlu0 %2255
    %2257 = vset.pattern.permute.xlu0 0
    %2258 = vperm.xlu0 %2257, %v1343
    %v2259 = vpop.permute.xlu0 %2258
    %2260 = vset.pattern.permute.xlu0 0
    %2261 = vperm.xlu0 %2260, %v1344
    %v2262 = vpop.permute.xlu0 %2261
    %2263 = vset.pattern.permute.xlu0 0
    %2264 = vperm.xlu0 %2263, %v1345
    %v2265 = vpop.permute.xlu0 %2264
    %2266 = vset.pattern.permute.xlu0 0
    %2267 = vperm.xlu0 %2266, %v1346
    %v2268 = vpop.permute.xlu0 %2267
    %2269 = vset.pattern.permute.xlu0 0
    %2270 = vperm.xlu0 %2269, %v1347
    %v2271 = vpop.permute.xlu0 %2270
    %2272 = vset.pattern.permute.xlu0 0
    %2273 = vperm.xlu0 %2272, %v1348
    %v2274 = vpop.permute.xlu0 %2273
    %2275 = vset.pattern.permute.xlu0 0
    %2276 = vperm.xlu0 %2275, %v1349
    %v2277 = vpop.permute.xlu0 %2276
    %2278 = vset.pattern.permute.xlu0 0
    %2279 = vperm.xlu0 %2278, %v1350
    %v2280 = vpop.permute.xlu0 %2279
    %2281 = vset.pattern.permute.xlu0 0
    %2282 = vperm.xlu0 %2281, %v1351
    %v2283 = vpop.permute.xlu0 %2282
    %2284 = vset.pattern.permute.xlu0 0
    %2285 = vperm.xlu0 %2284, %v1352
    %v2286 = vpop.permute.xlu0 %2285
    %2287 = vset.pattern.permute.xlu0 0
    %2288 = vperm.xlu0 %2287, %v1353
    %v2289 = vpop.permute.xlu0 %2288
    %2290 = vset.pattern.permute.xlu0 0
    %2291 = vperm.xlu0 %2290, %v1354
    %v2292 = vpop.permute.xlu0 %2291
    %2293 = vset.pattern.permute.xlu0 0
    %2294 = vperm.xlu0 %2293, %v1355
    %v2295 = vpop.permute.xlu0 %2294
    %2296 = vset.pattern.permute.xlu0 0
    %2297 = vperm.xlu0 %2296, %v1356
    %v2298 = vpop.permute.xlu0 %2297
    %2299 = vset.pattern.permute.xlu0 0
    %2300 = vperm.xlu0 %2299, %v1357
    %v2301 = vpop.permute.xlu0 %2300
    %2302 = vset.pattern.permute.xlu0 0
    %2303 = vperm.xlu0 %2302, %v1358
    %v2304 = vpop.permute.xlu0 %2303
    %2305 = vset.pattern.permute.xlu0 0
    %2306 = vperm.xlu0 %2305, %v1359
    %v2307 = vpop.permute.xlu0 %2306
    %2308 = vset.pattern.permute.xlu0 0
    %2309 = vperm.xlu0 %2308, %v1360
    %v2310 = vpop.permute.xlu0 %2309
    %2311 = vset.pattern.permute.xlu0 0
    %2312 = vperm.xlu0 %2311, %v1361
    %v2313 = vpop.permute.xlu0 %2312
    %2314 = vset.pattern.permute.xlu0 0
    %2315 = vperm.xlu0 %2314, %v1362
    %v2316 = vpop.permute.xlu0 %2315
    %2317 = vset.pattern.permute.xlu0 0
    %2318 = vperm.xlu0 %2317, %v1363
    %v2319 = vpop.permute.xlu0 %2318
    %2320 = vset.pattern.permute.xlu0 0
    %2321 = vperm.xlu0 %2320, %v1364
    %v2322 = vpop.permute.xlu0 %2321
    %2323 = vset.pattern.permute.xlu0 0
    %2324 = vperm.xlu0 %2323, %v1365
    %v2325 = vpop.permute.xlu0 %2324
    %2326 = vset.pattern.permute.xlu0 0
    %2327 = vperm.xlu0 %2326, %v1366
    %v2328 = vpop.permute.xlu0 %2327
    %2329 = vset.pattern.permute.xlu0 0
    %2330 = vperm.xlu0 %2329, %v1367
    %v2331 = vpop.permute.xlu0 %2330
    %2332 = vset.pattern.permute.xlu0 0
    %2333 = vperm.xlu0 %2332, %v1368
    %v2334 = vpop.permute.xlu0 %2333
    %2335 = vset.pattern.permute.xlu0 0
    %2336 = vperm.xlu0 %2335, %v1369
    %v2337 = vpop.permute.xlu0 %2336
    %2338 = vset.pattern.permute.xlu0 0
    %2339 = vperm.xlu0 %2338, %v1370
    %v2340 = vpop.permute.xlu0 %2339
    %2341 = vset.pattern.permute.xlu0 0
    %2342 = vperm.xlu0 %2341, %v1371
    %v2343 = vpop.permute.xlu0 %2342
    %2344 = vset.pattern.permute.xlu0 0
    %2345 = vperm.xlu0 %2344, %v1372
    %v2346 = vpop.permute.xlu0 %2345
    %2347 = vset.pattern.permute.xlu0 0
    %2348 = vperm.xlu0 %2347, %v1373
    %v2349 = vpop.permute.xlu0 %2348
    %2350 = vset.pattern.permute.xlu0 0
    %2351 = vperm.xlu0 %2350, %v1374
    %v2352 = vpop.permute.xlu0 %2351
    %2353 = vset.pattern.permute.xlu0 0
    %2354 = vperm.xlu0 %2353, %v1375
    %v2355 = vpop.permute.xlu0 %2354
    %2356 = vset.pattern.permute.xlu0 0
    %2357 = vperm.xlu0 %2356, %v1376
    %v2358 = vpop.permute.xlu0 %2357
    %2359 = vset.pattern.permute.xlu0 0
    %2360 = vperm.xlu0 %2359, %v1377
    %v2361 = vpop.permute.xlu0 %2360
    %2362 = vset.pattern.permute.xlu0 0
    %2363 = vperm.xlu0 %2362, %v1378
    %v2364 = vpop.permute.xlu0 %2363
    %2365 = vset.pattern.permute.xlu0 0
    %2366 = vperm.xlu0 %2365, %v1379
    %v2367 = vpop.permute.xlu0 %2366
    %2368 = vset.pattern.permute.xlu0 0
    %2369 = vperm.xlu0 %2368, %v1380
    %v2370 = vpop.permute.xlu0 %2369
    %2371 = vset.pattern.permute.xlu0 0
    %2372 = vperm.xlu0 %2371, %v1381
    %v2373 = vpop.permute.xlu0 %2372
    %2374 = vset.pattern.permute.xlu0 0
    %2375 = vperm.xlu0 %2374, %v1382
    %v2376 = vpop.permute.xlu0 %2375
    %2377 = vset.pattern.permute.xlu0 0
    %2378 = vperm.xlu0 %2377, %v1383
    %v2379 = vpop.permute.xlu0 %2378
    %2380 = vset.pattern.permute.xlu0 0
    %2381 = vperm.xlu0 %2380, %v1384
    %v2382 = vpop.permute.xlu0 %2381
    %2383 = vset.pattern.permute.xlu0 0
    %2384 = vperm.xlu0 %2383, %v1385
    %v2385 = vpop.permute.xlu0 %2384
    %2386 = vset.pattern.permute.xlu0 0
    %2387 = vperm.xlu0 %2386, %v1386
    %v2388 = vpop.permute.xlu0 %2387
    %2389 = vset.pattern.permute.xlu0 0
    %2390 = vperm.xlu0 %2389, %v1387
    %v2391 = vpop.permute.xlu0 %2390
    %2392 = vset.pattern.permute.xlu0 0
    %2393 = vperm.xlu0 %2392, %v1388
    %v2394 = vpop.permute.xlu0 %2393
    %2395 = vset.pattern.permute.xlu0 0
    %2396 = vperm.xlu0 %2395, %v1389
    %v2397 = vpop.permute.xlu0 %2396
    %2398 = vset.pattern.permute.xlu0 0
    %2399 = vperm.xlu0 %2398, %v1390
    %v2400 = vpop.permute.xlu0 %2399
    %2401 = vset.pattern.permute.xlu0 0
    %2402 = vperm.xlu0 %2401, %v1391
    %v2403 = vpop.permute.xlu0 %2402
    %2404 = vset.pattern.permute.xlu0 0
    %2405 = vperm.xlu0 %2404, %v1392
    %v2406 = vpop.permute.xlu0 %2405
    %2407 = vset.pattern.permute.xlu0 0
    %2408 = vperm.xlu0 %2407, %v1393
    %v2409 = vpop.permute.xlu0 %2408
    %2410 = vset.pattern.permute.xlu0 0
    %2411 = vperm.xlu0 %2410, %v1394
    %v2412 = vpop.permute.xlu0 %2411
    %2413 = vset.pattern.permute.xlu0 0
    %2414 = vperm.xlu0 %2413, %v1395
    %v2415 = vpop.permute.xlu0 %2414
    %2416 = vset.pattern.permute.xlu0 0
    %2417 = vperm.xlu0 %2416, %v1396
    %v2418 = vpop.permute.xlu0 %2417
    %2419 = vset.pattern.permute.xlu0 0
    %2420 = vperm.xlu0 %2419, %v1397
    %v2421 = vpop.permute.xlu0 %2420
    %2422 = vset.pattern.permute.xlu0 0
    %2423 = vperm.xlu0 %2422, %v1398
    %v2424 = vpop.permute.xlu0 %2423
    %2425 = vset.pattern.permute.xlu0 0
    %2426 = vperm.xlu0 %2425, %v1399
    %v2427 = vpop.permute.xlu0 %2426
    %2428 = vset.pattern.permute.xlu0 0
    %2429 = vperm.xlu0 %2428, %v1400
    %v2430 = vpop.permute.xlu0 %2429
    %2431 = vset.pattern.permute.xlu0 0
    %2432 = vperm.xlu0 %2431, %v1401
    %v2433 = vpop.permute.xlu0 %2432
    %2434 = vset.pattern.permute.xlu0 0
    %2435 = vperm.xlu0 %2434, %v1402
    %v2436 = vpop.permute.xlu0 %2435
    %2437 = vset.pattern.permute.xlu0 0
    %2438 = vperm.xlu0 %2437, %v1403
    %v2439 = vpop.permute.xlu0 %2438
    %2440 = vset.pattern.permute.xlu0 0
    %2441 = vperm.xlu0 %2440, %v1404
    %v2442 = vpop.permute.xlu0 %2441
    %2443 = vset.pattern.permute.xlu0 0
    %2444 = vperm.xlu0 %2443, %v1405
    %v2445 = vpop.permute.xlu0 %2444
    %2446 = vset.pattern.permute.xlu0 0
    %2447 = vperm.xlu0 %2446, %v1406
    %v2448 = vpop.permute.xlu0 %2447
    %2449 = vset.pattern.permute.xlu0 0
    %2450 = vperm.xlu0 %2449, %v1407
    %v2451 = vpop.permute.xlu0 %2450
    %2452 = vset.pattern.permute.xlu0 0
    %2453 = vperm.xlu0 %2452, %v1408
    %v2454 = vpop.permute.xlu0 %2453
    %2455 = vset.pattern.permute.xlu0 0
    %2456 = vperm.xlu0 %2455, %v1409
    %v2457 = vpop.permute.xlu0 %2456
    %2458 = vset.pattern.permute.xlu0 0
    %2459 = vperm.xlu0 %2458, %v1410
    %v2460 = vpop.permute.xlu0 %2459
    %2461 = vset.pattern.permute.xlu0 0
    %2462 = vperm.xlu0 %2461, %v1411
    %v2463 = vpop.permute.xlu0 %2462
    %2464 = vset.pattern.permute.xlu0 0
    %2465 = vperm.xlu0 %2464, %v1412
    %v2466 = vpop.permute.xlu0 %2465
    %2467 = vset.pattern.permute.xlu0 0
    %2468 = vperm.xlu0 %2467, %v1413
    %v2469 = vpop.permute.xlu0 %2468
    %2470 = vset.pattern.permute.xlu0 0
    %2471 = vperm.xlu0 %2470, %v1414
    %v2472 = vpop.permute.xlu0 %2471
    %2473 = vset.pattern.permute.xlu0 0
    %2474 = vperm.xlu0 %2473, %v1415
    %v2475 = vpop.permute.xlu0 %2474
    %2476 = vset.pattern.permute.xlu0 0
    %2477 = vperm.xlu0 %2476, %v1416
    %v2478 = vpop.permute.xlu0 %2477
    %2479 = vset.pattern.permute.xlu0 0
    %2480 = vperm.xlu0 %2479, %v1417
    %v2481 = vpop.permute.xlu0 %2480
    %2482 = vset.pattern.permute.xlu0 0
    %2483 = vperm.xlu0 %2482, %v1418
    %v2484 = vpop.permute.xlu0 %2483
    %2485 = vset.pattern.permute.xlu0 0
    %2486 = vperm.xlu0 %2485, %v1419
    %v2487 = vpop.permute.xlu0 %2486
    %2488 = vset.pattern.permute.xlu0 0
    %2489 = vperm.xlu0 %2488, %v1420
    %v2490 = vpop.permute.xlu0 %2489
    %2491 = vset.pattern.permute.xlu0 0
    %2492 = vperm.xlu0 %2491, %v1421
    %v2493 = vpop.permute.xlu0 %2492
    %2494 = vset.pattern.permute.xlu0 0
    %2495 = vperm.xlu0 %2494, %v1422
    %v2496 = vpop.permute.xlu0 %2495
    %2497 = vset.pattern.permute.xlu0 0
    %2498 = vperm.xlu0 %2497, %v1423
    %v2499 = vpop.permute.xlu0 %2498
    %2500 = vset.pattern.permute.xlu0 0
    %2501 = vperm.xlu0 %2500, %v1424
    %v2502 = vpop.permute.xlu0 %2501
    %2503 = vset.pattern.permute.xlu0 0
    %2504 = vperm.xlu0 %2503, %v1425
    %v2505 = vpop.permute.xlu0 %2504
    %2506 = vset.pattern.permute.xlu0 0
    %2507 = vperm.xlu0 %2506, %v1426
    %v2508 = vpop.permute.xlu0 %2507
    %2509 = vset.pattern.permute.xlu0 0
    %2510 = vperm.xlu0 %2509, %v1427
    %v2511 = vpop.permute.xlu0 %2510
    %2512 = vset.pattern.permute.xlu0 0
    %2513 = vperm.xlu0 %2512, %v1428
    %v2514 = vpop.permute.xlu0 %2513
    %2515 = vset.pattern.permute.xlu0 0
    %2516 = vperm.xlu0 %2515, %v1429
    %v2517 = vpop.permute.xlu0 %2516
    %2518 = vset.pattern.permute.xlu0 0
    %2519 = vperm.xlu0 %2518, %v1430
    %v2520 = vpop.permute.xlu0 %2519
    %2521 = vset.pattern.permute.xlu0 0
    %2522 = vperm.xlu0 %2521, %v1431
    %v2523 = vpop.permute.xlu0 %2522
    %2524 = vset.pattern.permute.xlu0 0
    %2525 = vperm.xlu0 %2524, %v1432
    %v2526 = vpop.permute.xlu0 %2525
    %2527 = vset.pattern.permute.xlu0 0
    %2528 = vperm.xlu0 %2527, %v1433
    %v2529 = vpop.permute.xlu0 %2528
    %2530 = vset.pattern.permute.xlu0 0
    %2531 = vperm.xlu0 %2530, %v1434
    %v2532 = vpop.permute.xlu0 %2531
    %2533 = vset.pattern.permute.xlu0 0
    %2534 = vperm.xlu0 %2533, %v1435
    %v2535 = vpop.permute.xlu0 %2534
    %2536 = vset.pattern.permute.xlu0 0
    %2537 = vperm.xlu0 %2536, %v1436
    %v2538 = vpop.permute.xlu0 %2537
    %2539 = vset.pattern.permute.xlu0 0
    %2540 = vperm.xlu0 %2539, %v1437
    %v2541 = vpop.permute.xlu0 %2540
    %2542 = vset.pattern.permute.xlu0 0
    %2543 = vperm.xlu0 %2542, %v1438
    %v2544 = vpop.permute.xlu0 %2543
    %2545 = vset.pattern.permute.xlu0 0
    %2546 = vperm.xlu0 %2545, %v1439
    %v2547 = vpop.permute.xlu0 %2546
    %2548 = vset.pattern.permute.xlu0 0
    %2549 = vperm.xlu0 %2548, %v1440
    %v2550 = vpop.permute.xlu0 %2549
    %2551 = vset.pattern.permute.xlu0 0
    %2552 = vperm.xlu0 %2551, %v1441
    %v2553 = vpop.permute.xlu0 %2552
    %2554 = vset.pattern.permute.xlu0 0
    %2555 = vperm.xlu0 %2554, %v1442
    %v2556 = vpop.permute.xlu0 %2555
    %2557 = vset.pattern.permute.xlu0 0
    %2558 = vperm.xlu0 %2557, %v1443
    %v2559 = vpop.permute.xlu0 %2558
    %2560 = vset.pattern.permute.xlu0 0
    %2561 = vperm.xlu0 %2560, %v1444
    %v2562 = vpop.permute.xlu0 %2561
    %2563 = vset.pattern.permute.xlu0 0
    %2564 = vperm.xlu0 %2563, %v1445
    %v2565 = vpop.permute.xlu0 %2564
    %2566 = vset.pattern.permute.xlu0 0
    %2567 = vperm.xlu0 %2566, %v1446
    %v2568 = vpop.permute.xlu0 %2567
    %2569 = vset.pattern.permute.xlu0 0
    %2570 = vperm.xlu0 %2569, %v1447
    %v2571 = vpop.permute.xlu0 %2570
    %2572 = vset.pattern.permute.xlu0 0
    %2573 = vperm.xlu0 %2572, %v1448
    %v2574 = vpop.permute.xlu0 %2573
    %2575 = vset.pattern.permute.xlu0 0
    %2576 = vperm.xlu0 %2575, %v1449
    %v2577 = vpop.permute.xlu0 %2576
    %2578 = vset.pattern.permute.xlu0 0
    %2579 = vperm.xlu0 %2578, %v1450
    %v2580 = vpop.permute.xlu0 %2579
    %2581 = vset.pattern.permute.xlu0 0
    %2582 = vperm.xlu0 %2581, %v1451
    %v2583 = vpop.permute.xlu0 %2582
    %2584 = vset.pattern.permute.xlu0 0
    %2585 = vperm.xlu0 %2584, %v1452
    %v2586 = vpop.permute.xlu0 %2585
    %2587 = vset.pattern.permute.xlu0 0
    %2588 = vperm.xlu0 %2587, %v1453
    %v2589 = vpop.permute.xlu0 %2588
    %2590 = vset.pattern.permute.xlu0 0
    %2591 = vperm.xlu0 %2590, %v1454
    %v2592 = vpop.permute.xlu0 %2591
    %2593 = vset.pattern.permute.xlu0 0
    %2594 = vperm.xlu0 %2593, %v1455
    %v2595 = vpop.permute.xlu0 %2594
    %2596 = vset.pattern.permute.xlu0 0
    %2597 = vperm.xlu0 %2596, %v1456
    %v2598 = vpop.permute.xlu0 %2597
    %2599 = vset.pattern.permute.xlu0 0
    %2600 = vperm.xlu0 %2599, %v1457
    %v2601 = vpop.permute.xlu0 %2600
    %2602 = vset.pattern.permute.xlu0 0
    %2603 = vperm.xlu0 %2602, %v1458
    %v2604 = vpop.permute.xlu0 %2603
    %2605 = vset.pattern.permute.xlu0 0
    %2606 = vperm.xlu0 %2605, %v1459
    %v2607 = vpop.permute.xlu0 %2606
    %2608 = vset.pattern.permute.xlu0 0
    %2609 = vperm.xlu0 %2608, %v1460
    %v2610 = vpop.permute.xlu0 %2609
    %2611 = vset.pattern.permute.xlu0 0
    %2612 = vperm.xlu0 %2611, %v1461
    %v2613 = vpop.permute.xlu0 %2612
    %2614 = vset.pattern.permute.xlu0 0
    %2615 = vperm.xlu0 %2614, %v1462
    %v2616 = vpop.permute.xlu0 %2615
    %2617 = vset.pattern.permute.xlu0 0
    %2618 = vperm.xlu0 %2617, %v1463
    %v2619 = vpop.permute.xlu0 %2618
    %2620 = vset.pattern.permute.xlu0 0
    %2621 = vperm.xlu0 %2620, %v1464
    %v2622 = vpop.permute.xlu0 %2621
    %2623 = vset.pattern.permute.xlu0 0
    %2624 = vperm.xlu0 %2623, %v1465
    %v2625 = vpop.permute.xlu0 %2624
    %2626 = vset.pattern.permute.xlu0 0
    %2627 = vperm.xlu0 %2626, %v1466
    %v2628 = vpop.permute.xlu0 %2627
    %2629 = vset.pattern.permute.xlu0 0
    %2630 = vperm.xlu0 %2629, %v1467
    %v2631 = vpop.permute.xlu0 %2630
    %2632 = vset.pattern.permute.xlu0 0
    %2633 = vperm.xlu0 %2632, %v1468
    %v2634 = vpop.permute.xlu0 %2633
    %2635 = vset.pattern.permute.xlu0 0
    %2636 = vperm.xlu0 %2635, %v1469
    %v2637 = vpop.permute.xlu0 %2636
    %2638 = vset.pattern.permute.xlu0 0
    %2639 = vperm.xlu0 %2638, %v1470
    %v2640 = vpop.permute.xlu0 %2639
    %2641 = vset.pattern.permute.xlu0 0
    %2642 = vperm.xlu0 %2641, %v1471
    %v2643 = vpop.permute.xlu0 %2642
    %2644 = vset.pattern.permute.xlu0 0
    %2645 = vperm.xlu0 %2644, %v1472
    %v2646 = vpop.permute.xlu0 %2645
    %2647 = vset.pattern.permute.xlu0 0
    %2648 = vperm.xlu0 %2647, %v1473
    %v2649 = vpop.permute.xlu0 %2648
    %2650 = vset.pattern.permute.xlu0 0
    %2651 = vperm.xlu0 %2650, %v1474
    %v2652 = vpop.permute.xlu0 %2651
    %2653 = vset.pattern.permute.xlu0 0
    %2654 = vperm.xlu0 %2653, %v1475
    %v2655 = vpop.permute.xlu0 %2654
    %2656 = vset.pattern.permute.xlu0 0
    %2657 = vperm.xlu0 %2656, %v1476
    %v2658 = vpop.permute.xlu0 %2657
    %2659 = vset.pattern.permute.xlu0 0
    %2660 = vperm.xlu0 %2659, %v1477
    %v2661 = vpop.permute.xlu0 %2660
    %2662 = vset.pattern.permute.xlu0 0
    %2663 = vperm.xlu0 %2662, %v1478
    %v2664 = vpop.permute.xlu0 %2663
    %2665 = vset.pattern.permute.xlu0 0
    %2666 = vperm.xlu0 %2665, %v1479
    %v2667 = vpop.permute.xlu0 %2666
    %2668 = vset.pattern.permute.xlu0 0
    %2669 = vperm.xlu0 %2668, %v1480
    %v2670 = vpop.permute.xlu0 %2669
    %2671 = vset.pattern.permute.xlu0 0
    %2672 = vperm.xlu0 %2671, %v1481
    %v2673 = vpop.permute.xlu0 %2672
    %2674 = vset.pattern.permute.xlu0 0
    %2675 = vperm.xlu0 %2674, %v1482
    %v2676 = vpop.permute.xlu0 %2675
    %2677 = vset.pattern.permute.xlu0 0
    %2678 = vperm.xlu0 %2677, %v1483
    %v2679 = vpop.permute.xlu0 %2678
    %2680 = vset.pattern.permute.xlu0 0
    %2681 = vperm.xlu0 %2680, %v1484
    %v2682 = vpop.permute.xlu0 %2681
    %2683 = vset.pattern.permute.xlu0 0
    %2684 = vperm.xlu0 %2683, %v1485
    %v2685 = vpop.permute.xlu0 %2684
    %2686 = vset.pattern.permute.xlu0 0
    %2687 = vperm.xlu0 %2686, %v1486
    %v2688 = vpop.permute.xlu0 %2687
    %2689 = vset.pattern.permute.xlu0 0
    %2690 = vperm.xlu0 %2689, %v1487
    %v2691 = vpop.permute.xlu0 %2690
    %2692 = vset.pattern.permute.xlu0 0
    %2693 = vperm.xlu0 %2692, %v1488
    %v2694 = vpop.permute.xlu0 %2693
    %2695 = vset.pattern.permute.xlu0 0
    %2696 = vperm.xlu0 %2695, %v1489
    %v2697 = vpop.permute.xlu0 %2696
    %2698 = vset.pattern.permute.xlu0 0
    %2699 = vperm.xlu0 %2698, %v1490
    %v2700 = vpop.permute.xlu0 %2699
    %2701 = vset.pattern.permute.xlu0 0
    %2702 = vperm.xlu0 %2701, %v1491
    %v2703 = vpop.permute.xlu0 %2702
    %2704 = vset.pattern.permute.xlu0 0
    %2705 = vperm.xlu0 %2704, %v1492
    %v2706 = vpop.permute.xlu0 %2705
    %2707 = vset.pattern.permute.xlu0 0
    %2708 = vperm.xlu0 %2707, %v1493
    %v2709 = vpop.permute.xlu0 %2708
    %2710 = vset.pattern.permute.xlu0 0
    %2711 = vperm.xlu0 %2710, %v1494
    %v2712 = vpop.permute.xlu0 %2711
    %2713 = vset.pattern.permute.xlu0 0
    %2714 = vperm.xlu0 %2713, %v1495
    %v2715 = vpop.permute.xlu0 %2714
    %2716 = vset.pattern.permute.xlu0 0
    %2717 = vperm.xlu0 %2716, %v1496
    %v2718 = vpop.permute.xlu0 %2717
    %2719 = vset.pattern.permute.xlu0 0
    %2720 = vperm.xlu0 %2719, %v1497
    %v2721 = vpop.permute.xlu0 %2720
    %2722 = vset.pattern.permute.xlu0 0
    %2723 = vperm.xlu0 %2722, %v1498
    %v2724 = vpop.permute.xlu0 %2723
    %2725 = vset.pattern.permute.xlu0 0
    %2726 = vperm.xlu0 %2725, %v1499
    %v2727 = vpop.permute.xlu0 %2726
    %2728 = vset.pattern.permute.xlu0 0
    %2729 = vperm.xlu0 %2728, %v1500
    %v2730 = vpop.permute.xlu0 %2729
    %2731 = vset.pattern.permute.xlu0 0
    %2732 = vperm.xlu0 %2731, %v1501
    %v2733 = vpop.permute.xlu0 %2732
    %2734 = vset.pattern.permute.xlu0 0
    %2735 = vperm.xlu0 %2734, %v1502
    %v2736 = vpop.permute.xlu0 %2735
    %2737 = vset.pattern.permute.xlu0 0
    %2738 = vperm.xlu0 %2737, %v1503
    %v2739 = vpop.permute.xlu0 %2738
    %2740 = vset.pattern.permute.xlu0 0
    %2741 = vperm.xlu0 %2740, %v1504
    %v2742 = vpop.permute.xlu0 %2741
    %2743 = vset.pattern.permute.xlu0 0
    %2744 = vperm.xlu0 %2743, %v1505
    %v2745 = vpop.permute.xlu0 %2744
    %2746 = vset.pattern.permute.xlu0 0
    %2747 = vperm.xlu0 %2746, %v1506
    %v2748 = vpop.permute.xlu0 %2747
    %2749 = vset.pattern.permute.xlu0 0
    %2750 = vperm.xlu0 %2749, %v1507
    %v2751 = vpop.permute.xlu0 %2750
    %2752 = vset.pattern.permute.xlu0 0
    %2753 = vperm.xlu0 %2752, %v1508
    %v2754 = vpop.permute.xlu0 %2753
    %2755 = vset.pattern.permute.xlu0 0
    %2756 = vperm.xlu0 %2755, %v1509
    %v2757 = vpop.permute.xlu0 %2756
    %2758 = vset.pattern.permute.xlu0 0
    %2759 = vperm.xlu0 %2758, %v1510
    %v2760 = vpop.permute.xlu0 %2759
    %2761 = vset.pattern.permute.xlu0 0
    %2762 = vperm.xlu0 %2761, %v1511
    %v2763 = vpop.permute.xlu0 %2762
    %2764 = vset.pattern.permute.xlu0 0
    %2765 = vperm.xlu0 %2764, %v1512
    %v2766 = vpop.permute.xlu0 %2765
    %2767 = vset.pattern.permute.xlu0 0
    %2768 = vperm.xlu0 %2767, %v1513
    %v2769 = vpop.permute.xlu0 %2768
    %2770 = vset.pattern.permute.xlu0 0
    %2771 = vperm.xlu0 %2770, %v1514
    %v2772 = vpop.permute.xlu0 %2771
    %2773 = vset.pattern.permute.xlu0 0
    %2774 = vperm.xlu0 %2773, %v1515
    %v2775 = vpop.permute.xlu0 %2774
    %2776 = vset.pattern.permute.xlu0 0
    %2777 = vperm.xlu0 %2776, %v1516
    %v2778 = vpop.permute.xlu0 %2777
    %2779 = vset.pattern.permute.xlu0 0
    %2780 = vperm.xlu0 %2779, %v1517
    %v2781 = vpop.permute.xlu0 %2780
    %2782 = vset.pattern.permute.xlu0 0
    %2783 = vperm.xlu0 %2782, %v1518
    %v2784 = vpop.permute.xlu0 %2783
    %2785 = vset.pattern.permute.xlu0 0
    %2786 = vperm.xlu0 %2785, %v1519
    %v2787 = vpop.permute.xlu0 %2786
    %2788 = vset.pattern.permute.xlu0 0
    %2789 = vperm.xlu0 %2788, %v1520
    %v2790 = vpop.permute.xlu0 %2789
    %2791 = vset.pattern.permute.xlu0 0
    %2792 = vperm.xlu0 %2791, %v1521
    %v2793 = vpop.permute.xlu0 %2792
    %2794 = vset.pattern.permute.xlu0 0
    %2795 = vperm.xlu0 %2794, %v1522
    %v2796 = vpop.permute.xlu0 %2795
    %2797 = vset.pattern.permute.xlu0 0
    %2798 = vperm.xlu0 %2797, %v1523
    %v2799 = vpop.permute.xlu0 %2798
    %2800 = vset.pattern.permute.xlu0 0
    %2801 = vperm.xlu0 %2800, %v1524
    %v2802 = vpop.permute.xlu0 %2801
    %2803 = vset.pattern.permute.xlu0 0
    %2804 = vperm.xlu0 %2803, %v1525
    %v2805 = vpop.permute.xlu0 %2804
    %2806 = vset.pattern.permute.xlu0 0
    %2807 = vperm.xlu0 %2806, %v1526
    %v2808 = vpop.permute.xlu0 %2807
    %2809 = vset.pattern.permute.xlu0 0
    %2810 = vperm.xlu0 %2809, %v1527
    %v2811 = vpop.permute.xlu0 %2810
    %2812 = vset.pattern.permute.xlu0 0
    %2813 = vperm.xlu0 %2812, %v1528
    %v2814 = vpop.permute.xlu0 %2813
    %2815 = vset.pattern.permute.xlu0 0
    %2816 = vperm.xlu0 %2815, %v1529
    %v2817 = vpop.permute.xlu0 %2816
    %2818 = vset.pattern.permute.xlu0 0
    %2819 = vperm.xlu0 %2818, %v1530
    %v2820 = vpop.permute.xlu0 %2819
    %2821 = vset.pattern.permute.xlu0 0
    %2822 = vperm.xlu0 %2821, %v1531
    %v2823 = vpop.permute.xlu0 %2822
    %2824 = vset.pattern.permute.xlu0 0
    %2825 = vperm.xlu0 %2824, %v1532
    %v2826 = vpop.permute.xlu0 %2825
    %2827 = vset.pattern.permute.xlu0 0
    %2828 = vperm.xlu0 %2827, %v1533
    %v2829 = vpop.permute.xlu0 %2828
    %2830 = vset.pattern.permute.xlu0 0
    %2831 = vperm.xlu0 %2830, %v1534
    %v2832 = vpop.permute.xlu0 %2831
    %2833 = vset.pattern.permute.xlu0 0
    %2834 = vperm.xlu0 %2833, %v1535
    %v2835 = vpop.permute.xlu0 %2834
    %2836 = vset.pattern.permute.xlu0 0
    %2837 = vperm.xlu0 %2836, %v1536
    %v2838 = vpop.permute.xlu0 %2837
    %2839 = vset.pattern.permute.xlu0 0
    %2840 = vperm.xlu0 %2839, %v1537
    %v2841 = vpop.permute.xlu0 %2840
    %2842 = vset.pattern.permute.xlu0 0
    %2843 = vperm.xlu0 %2842, %v1538
    %v2844 = vpop.permute.xlu0 %2843
    %2845 = vset.pattern.permute.xlu0 0
    %2846 = vperm.xlu0 %2845, %v1539
    %v2847 = vpop.permute.xlu0 %2846
    %2848 = vset.pattern.permute.xlu0 0
    %2849 = vperm.xlu0 %2848, %v1540
    %v2850 = vpop.permute.xlu0 %2849
    %2851 = vset.pattern.permute.xlu0 0
    %2852 = vperm.xlu0 %2851, %v1541
    %v2853 = vpop.permute.xlu0 %2852
    %2854 = vset.pattern.permute.xlu0 0
    %2855 = vperm.xlu0 %2854, %v1542
    %v2856 = vpop.permute.xlu0 %2855
    %2857 = vset.pattern.permute.xlu0 0
    %2858 = vperm.xlu0 %2857, %v1543
    %v2859 = vpop.permute.xlu0 %2858
    %2860 = vset.pattern.permute.xlu0 0
    %2861 = vperm.xlu0 %2860, %v1544
    %v2862 = vpop.permute.xlu0 %2861
    %2863 = vset.pattern.permute.xlu0 0
    %2864 = vperm.xlu0 %2863, %v1545
    %v2865 = vpop.permute.xlu0 %2864
    %2866 = vset.pattern.permute.xlu0 0
    %2867 = vperm.xlu0 %2866, %v1546
    %v2868 = vpop.permute.xlu0 %2867
    %2869 = vset.pattern.permute.xlu0 0
    %2870 = vperm.xlu0 %2869, %v1547
    %v2871 = vpop.permute.xlu0 %2870
    %2872 = vset.pattern.permute.xlu0 0
    %2873 = vperm.xlu0 %2872, %v1548
    %v2874 = vpop.permute.xlu0 %2873
    %2875 = vset.pattern.permute.xlu0 0
    %2876 = vperm.xlu0 %2875, %v1549
    %v2877 = vpop.permute.xlu0 %2876
    %2878 = vset.pattern.permute.xlu0 0
    %2879 = vperm.xlu0 %2878, %v1550
    %v2880 = vpop.permute.xlu0 %2879
    %2881 = vset.pattern.permute.xlu0 0
    %2882 = vperm.xlu0 %2881, %v1551
    %v2883 = vpop.permute.xlu0 %2882
    %2884 = vset.pattern.permute.xlu0 0
    %2885 = vperm.xlu0 %2884, %v1552
    %v2886 = vpop.permute.xlu0 %2885
    %2887 = vset.pattern.permute.xlu0 0
    %2888 = vperm.xlu0 %2887, %v1553
    %v2889 = vpop.permute.xlu0 %2888
    %2890 = vset.pattern.permute.xlu0 0
    %2891 = vperm.xlu0 %2890, %v1554
    %v2892 = vpop.permute.xlu0 %2891
    %2893 = vset.pattern.permute.xlu0 0
    %2894 = vperm.xlu0 %2893, %v1555
    %v2895 = vpop.permute.xlu0 %2894
    %2896 = vset.pattern.permute.xlu0 0
    %2897 = vperm.xlu0 %2896, %v1556
    %v2898 = vpop.permute.xlu0 %2897
    %2899 = vset.pattern.permute.xlu0 0
    %2900 = vperm.xlu0 %2899, %v1557
    %v2901 = vpop.permute.xlu0 %2900
    %2902 = vset.pattern.permute.xlu0 0
    %2903 = vperm.xlu0 %2902, %v1558
    %v2904 = vpop.permute.xlu0 %2903
    %2905 = vset.pattern.permute.xlu0 0
    %2906 = vperm.xlu0 %2905, %v1559
    %v2907 = vpop.permute.xlu0 %2906
    %2908 = vset.pattern.permute.xlu0 0
    %2909 = vperm.xlu0 %2908, %v1560
    %v2910 = vpop.permute.xlu0 %2909
    %2911 = vset.pattern.permute.xlu0 0
    %2912 = vperm.xlu0 %2911, %v1561
    %v2913 = vpop.permute.xlu0 %2912
    %2914 = vset.pattern.permute.xlu0 0
    %2915 = vperm.xlu0 %2914, %v1562
    %v2916 = vpop.permute.xlu0 %2915
    %2917 = vset.pattern.permute.xlu0 0
    %2918 = vperm.xlu0 %2917, %v1563
    %v2919 = vpop.permute.xlu0 %2918
    %2920 = vset.pattern.permute.xlu0 0
    %2921 = vperm.xlu0 %2920, %v1564
    %v2922 = vpop.permute.xlu0 %2921
    %2923 = vset.pattern.permute.xlu0 0
    %2924 = vperm.xlu0 %2923, %v1565
    %v2925 = vpop.permute.xlu0 %2924
    %2926 = vset.pattern.permute.xlu0 0
    %2927 = vperm.xlu0 %2926, %v1566
    %v2928 = vpop.permute.xlu0 %2927
    %2929 = vset.pattern.permute.xlu0 0
    %2930 = vperm.xlu0 %2929, %v1567
    %v2931 = vpop.permute.xlu0 %2930
    %2932 = vset.pattern.permute.xlu0 0
    %2933 = vperm.xlu0 %2932, %v1568
    %v2934 = vpop.permute.xlu0 %2933
    %2935 = vset.pattern.permute.xlu0 0
    %2936 = vperm.xlu0 %2935, %v1569
    %v2937 = vpop.permute.xlu0 %2936
    %2938 = vset.pattern.permute.xlu0 0
    %2939 = vperm.xlu0 %2938, %v1570
    %v2940 = vpop.permute.xlu0 %2939
    %2941 = vset.pattern.permute.xlu0 0
    %2942 = vperm.xlu0 %2941, %v1571
    %v2943 = vpop.permute.xlu0 %2942
    %2944 = vset.pattern.permute.xlu0 0
    %2945 = vperm.xlu0 %2944, %v1572
    %v2946 = vpop.permute.xlu0 %2945
    %2947 = vset.pattern.permute.xlu0 0
    %2948 = vperm.xlu0 %2947, %v1573
    %v2949 = vpop.permute.xlu0 %2948
    %2950 = vset.pattern.permute.xlu0 0
    %2951 = vperm.xlu0 %2950, %v1574
    %v2952 = vpop.permute.xlu0 %2951
    %2953 = vset.pattern.permute.xlu0 0
    %2954 = vperm.xlu0 %2953, %v1575
    %v2955 = vpop.permute.xlu0 %2954
    %2956 = vset.pattern.permute.xlu0 0
    %2957 = vperm.xlu0 %2956, %v1576
    %v2958 = vpop.permute.xlu0 %2957
    %2959 = vset.pattern.permute.xlu0 0
    %2960 = vperm.xlu0 %2959, %v1577
    %v2961 = vpop.permute.xlu0 %2960
    %2962 = vset.pattern.permute.xlu0 0
    %2963 = vperm.xlu0 %2962, %v1578
    %v2964 = vpop.permute.xlu0 %2963
    %2965 = vset.pattern.permute.xlu0 0
    %2966 = vperm.xlu0 %2965, %v1579
    %v2967 = vpop.permute.xlu0 %2966
    %2968 = vset.pattern.permute.xlu0 0
    %2969 = vperm.xlu0 %2968, %v1580
    %v2970 = vpop.permute.xlu0 %2969
    %2971 = vset.pattern.permute.xlu0 0
    %2972 = vperm.xlu0 %2971, %v1581
    %v2973 = vpop.permute.xlu0 %2972
    %2974 = vset.pattern.permute.xlu0 0
    %2975 = vperm.xlu0 %2974, %v1582
    %v2976 = vpop.permute.xlu0 %2975
    %2977 = vset.pattern.permute.xlu0 0
    %2978 = vperm.xlu0 %2977, %v1583
    %v2979 = vpop.permute.xlu0 %2978
    %2980 = vset.pattern.permute.xlu0 0
    %2981 = vperm.xlu0 %2980, %v1584
    %v2982 = vpop.permute.xlu0 %2981
    %2983 = vset.pattern.permute.xlu0 0
    %2984 = vperm.xlu0 %2983, %v1585
    %v2985 = vpop.permute.xlu0 %2984
    %2986 = vset.pattern.permute.xlu0 0
    %2987 = vperm.xlu0 %2986, %v1586
    %v2988 = vpop.permute.xlu0 %2987
    %2989 = vset.pattern.permute.xlu0 0
    %2990 = vperm.xlu0 %2989, %v1587
    %v2991 = vpop.permute.xlu0 %2990
    %2992 = vset.pattern.permute.xlu0 0
    %2993 = vperm.xlu0 %2992, %v1588
    %v2994 = vpop.permute.xlu0 %2993
    %2995 = vset.pattern.permute.xlu0 0
    %2996 = vperm.xlu0 %2995, %v1589
    %v2997 = vpop.permute.xlu0 %2996
    %2998 = vset.pattern.permute.xlu0 0
    %2999 = vperm.xlu0 %2998, %v1590
    %v3000 = vpop.permute.xlu0 %2999
    %3001 = vset.pattern.permute.xlu0 0
    %3002 = vperm.xlu0 %3001, %v1591
    %v3003 = vpop.permute.xlu0 %3002
    %3004 = vset.pattern.permute.xlu0 0
    %3005 = vperm.xlu0 %3004, %v1592
    %v3006 = vpop.permute.xlu0 %3005
    %3007 = vset.pattern.permute.xlu0 0
    %3008 = vperm.xlu0 %3007, %v1593
    %v3009 = vpop.permute.xlu0 %3008
    %3010 = vset.pattern.permute.xlu0 0
    %3011 = vperm.xlu0 %3010, %v1594
    %v3012 = vpop.permute.xlu0 %3011
    %3013 = vset.pattern.permute.xlu0 0
    %3014 = vperm.xlu0 %3013, %v1595
    %v3015 = vpop.permute.xlu0 %3014
    %3016 = vset.pattern.permute.xlu0 0
    %3017 = vperm.xlu0 %3016, %v1596
    %v3018 = vpop.permute.xlu0 %3017
    %3019 = vset.pattern.permute.xlu0 0
    %3020 = vperm.xlu0 %3019, %v1597
    %v3021 = vpop.permute.xlu0 %3020
    %3022 = vset.pattern.permute.xlu0 0
    %3023 = vperm.xlu0 %3022, %v1598
    %v3024 = vpop.permute.xlu0 %3023
    %3025 = vset.pattern.permute.xlu0 0
    %3026 = vperm.xlu0 %3025, %v1599
    %v3027 = vpop.permute.xlu0 %3026
    %3028 = vset.pattern.permute.xlu0 0
    %3029 = vperm.xlu0 %3028, %v1600
    %v3030 = vpop.permute.xlu0 %3029
    %3031 = vset.pattern.permute.xlu0 0
    %3032 = vperm.xlu0 %3031, %v1601
    %v3033 = vpop.permute.xlu0 %3032
    %3034 = vset.pattern.permute.xlu0 0
    %3035 = vperm.xlu0 %3034, %v1602
    %v3036 = vpop.permute.xlu0 %3035
    %3037 = vset.pattern.permute.xlu0 0
    %3038 = vperm.xlu0 %3037, %v1603
    %v3039 = vpop.permute.xlu0 %3038
    %3040 = vset.pattern.permute.xlu0 0
    %3041 = vperm.xlu0 %3040, %v1604
    %v3042 = vpop.permute.xlu0 %3041
    %3043 = vset.pattern.permute.xlu0 0
    %3044 = vperm.xlu0 %3043, %v1605
    %v3045 = vpop.permute.xlu0 %3044
    %3046 = vset.pattern.permute.xlu0 0
    %3047 = vperm.xlu0 %3046, %v1606
    %v3048 = vpop.permute.xlu0 %3047
    %3049 = vset.pattern.permute.xlu0 0
    %3050 = vperm.xlu0 %3049, %v1607
    %v3051 = vpop.permute.xlu0 %3050
    %3052 = vset.pattern.permute.xlu0 0
    %3053 = vperm.xlu0 %3052, %v1608
    %v3054 = vpop.permute.xlu0 %3053
    %3055 = vset.pattern.permute.xlu0 0
    %3056 = vperm.xlu0 %3055, %v1609
    %v3057 = vpop.permute.xlu0 %3056
    %3058 = vset.pattern.permute.xlu0 0
    %3059 = vperm.xlu0 %3058, %v1610
    %v3060 = vpop.permute.xlu0 %3059
    %3061 = vset.pattern.permute.xlu0 0
    %3062 = vperm.xlu0 %3061, %v1611
    %v3063 = vpop.permute.xlu0 %3062
    %3064 = vset.pattern.permute.xlu0 0
    %3065 = vperm.xlu0 %3064, %v1612
    %v3066 = vpop.permute.xlu0 %3065
    %3067 = vset.pattern.permute.xlu0 0
    %3068 = vperm.xlu0 %3067, %v1613
    %v3069 = vpop.permute.xlu0 %3068
    %3070 = vset.pattern.permute.xlu0 0
    %3071 = vperm.xlu0 %3070, %v1614
    %v3072 = vpop.permute.xlu0 %3071
    %3073 = vset.pattern.permute.xlu0 0
    %3074 = vperm.xlu0 %3073, %v1615
    %v3075 = vpop.permute.xlu0 %3074
    %3076 = vset.pattern.permute.xlu0 0
    %3077 = vperm.xlu0 %3076, %v1616
    %v3078 = vpop.permute.xlu0 %3077
    %3079 = vset.pattern.permute.xlu0 0
    %3080 = vperm.xlu0 %3079, %v1617
    %v3081 = vpop.permute.xlu0 %3080
    %3082 = vset.pattern.permute.xlu0 0
    %3083 = vperm.xlu0 %3082, %v1618
    %v3084 = vpop.permute.xlu0 %3083
    %3085 = vset.pattern.permute.xlu0 0
    %3086 = vperm.xlu0 %3085, %v1619
    %v3087 = vpop.permute.xlu0 %3086
    %3088 = vset.pattern.permute.xlu0 0
    %3089 = vperm.xlu0 %3088, %v1620
    %v3090 = vpop.permute.xlu0 %3089
    %3091 = vset.pattern.permute.xlu0 0
    %3092 = vperm.xlu0 %3091, %v1621
    %v3093 = vpop.permute.xlu0 %3092
    %3094 = vset.pattern.permute.xlu0 0
    %3095 = vperm.xlu0 %3094, %v1622
    %v3096 = vpop.permute.xlu0 %3095
    %3097 = vset.pattern.permute.xlu0 0
    %3098 = vperm.xlu0 %3097, %v1623
    %v3099 = vpop.permute.xlu0 %3098
    %3100 = vset.pattern.permute.xlu0 0
    %3101 = vperm.xlu0 %3100, %v1624
    %v3102 = vpop.permute.xlu0 %3101
    %3103 = vset.pattern.permute.xlu0 0
    %3104 = vperm.xlu0 %3103, %v1625
    %v3105 = vpop.permute.xlu0 %3104
    %3106 = vset.pattern.permute.xlu0 0
    %3107 = vperm.xlu0 %3106, %v1626
    %v3108 = vpop.permute.xlu0 %3107
    %3109 = vset.pattern.permute.xlu0 0
    %3110 = vperm.xlu0 %3109, %v1627
    %v3111 = vpop.permute.xlu0 %3110
    %3112 = vset.pattern.permute.xlu0 0
    %3113 = vperm.xlu0 %3112, %v1628
    %v3114 = vpop.permute.xlu0 %3113
    %3115 = vset.pattern.permute.xlu0 0
    %3116 = vperm.xlu0 %3115, %v1629
    %v3117 = vpop.permute.xlu0 %3116
    %3118 = vset.pattern.permute.xlu0 0
    %3119 = vperm.xlu0 %3118, %v1630
    %v3120 = vpop.permute.xlu0 %3119
    %3121 = vset.pattern.permute.xlu0 0
    %3122 = vperm.xlu0 %3121, %v1631
    %v3123 = vpop.permute.xlu0 %3122
    %3124 = vset.pattern.permute.xlu0 0
    %3125 = vperm.xlu0 %3124, %v1632
    %v3126 = vpop.permute.xlu0 %3125
    %3127 = vset.pattern.permute.xlu0 0
    %3128 = vperm.xlu0 %3127, %v1633
    %v3129 = vpop.permute.xlu0 %3128
    %3130 = vset.pattern.permute.xlu0 0
    %3131 = vperm.xlu0 %3130, %v1634
    %v3132 = vpop.permute.xlu0 %3131
    %3133 = vset.pattern.permute.xlu0 0
    %3134 = vperm.xlu0 %3133, %v1635
    %v3135 = vpop.permute.xlu0 %3134
    %3136 = vset.pattern.permute.xlu0 0
    %3137 = vperm.xlu0 %3136, %v1636
    %v3138 = vpop.permute.xlu0 %3137
    %3139 = vset.pattern.permute.xlu0 0
    %3140 = vperm.xlu0 %3139, %v1637
    %v3141 = vpop.permute.xlu0 %3140
    %3142 = vset.pattern.permute.xlu0 0
    %3143 = vperm.xlu0 %3142, %v1638
    %v3144 = vpop.permute.xlu0 %3143
    %3145 = vset.pattern.permute.xlu0 0
    %3146 = vperm.xlu0 %3145, %v1639
    %v3147 = vpop.permute.xlu0 %3146
    %3148 = vset.pattern.permute.xlu0 0
    %3149 = vperm.xlu0 %3148, %v1640
    %v3150 = vpop.permute.xlu0 %3149
    %3151 = vset.pattern.permute.xlu0 0
    %3152 = vperm.xlu0 %3151, %v1641
    %v3153 = vpop.permute.xlu0 %3152
    %3154 = vset.pattern.permute.xlu0 0
    %3155 = vperm.xlu0 %3154, %v1642
    %v3156 = vpop.permute.xlu0 %3155
    %3157 = vset.pattern.permute.xlu0 0
    %3158 = vperm.xlu0 %3157, %v1643
    %v3159 = vpop.permute.xlu0 %3158
    %3160 = vset.pattern.permute.xlu0 0
    %3161 = vperm.xlu0 %3160, %v1644
    %v3162 = vpop.permute.xlu0 %3161
    %3163 = vset.pattern.permute.xlu0 0
    %3164 = vperm.xlu0 %3163, %v1645
    %v3165 = vpop.permute.xlu0 %3164
    %3166 = vset.pattern.permute.xlu0 0
    %3167 = vperm.xlu0 %3166, %v1646
    %v3168 = vpop.permute.xlu0 %3167
    %3169 = vset.pattern.permute.xlu0 0
    %3170 = vperm.xlu0 %3169, %v1647
    %v3171 = vpop.permute.xlu0 %3170
    %3172 = vset.pattern.permute.xlu0 0
    %3173 = vperm.xlu0 %3172, %v1648
    %v3174 = vpop.permute.xlu0 %3173
    %3175 = vset.pattern.permute.xlu0 0
    %3176 = vperm.xlu0 %3175, %v1649
    %v3177 = vpop.permute.xlu0 %3176
    %3178 = vset.pattern.permute.xlu0 0
    %3179 = vperm.xlu0 %3178, %v1650
    %v3180 = vpop.permute.xlu0 %3179
    %3181 = vset.pattern.permute.xlu0 0
    %3182 = vperm.xlu0 %3181, %v1651
    %v3183 = vpop.permute.xlu0 %3182
    %3184 = vset.pattern.permute.xlu0 0
    %3185 = vperm.xlu0 %3184, %v1652
    %v3186 = vpop.permute.xlu0 %3185
    %3187 = vset.pattern.permute.xlu0 0
    %3188 = vperm.xlu0 %3187, %v1653
    %v3189 = vpop.permute.xlu0 %3188
    %3190 = vset.pattern.permute.xlu0 0
    %3191 = vperm.xlu0 %3190, %v1654
    %v3192 = vpop.permute.xlu0 %3191
    %3193 = vset.pattern.permute.xlu0 0
    %3194 = vperm.xlu0 %3193, %v1655
    %v3195 = vpop.permute.xlu0 %3194
    %3196 = vset.pattern.permute.xlu0 0
    %3197 = vperm.xlu0 %3196, %v1656
    %v3198 = vpop.permute.xlu0 %3197
    %3199 = vset.pattern.permute.xlu0 0
    %3200 = vperm.xlu0 %3199, %v1657
    %v3201 = vpop.permute.xlu0 %3200
    %3202 = vset.pattern.permute.xlu0 0
    %3203 = vperm.xlu0 %3202, %v1658
    %v3204 = vpop.permute.xlu0 %3203
    %3205 = vset.pattern.permute.xlu0 0
    %3206 = vperm.xlu0 %3205, %v1659
    %v3207 = vpop.permute.xlu0 %3206
    %3208 = vset.pattern.permute.xlu0 0
    %3209 = vperm.xlu0 %3208, %v1660
    %v3210 = vpop.permute.xlu0 %3209
    %3211 = vset.pattern.permute.xlu0 0
    %3212 = vperm.xlu0 %3211, %v1661
    %v3213 = vpop.permute.xlu0 %3212
    %3214 = vset.pattern.permute.xlu0 0
    %3215 = vperm.xlu0 %3214, %v1662
    %v3216 = vpop.permute.xlu0 %3215
    %3217 = vset.pattern.permute.xlu0 0
    %3218 = vperm.xlu0 %3217, %v1663
    %v3219 = vpop.permute.xlu0 %3218
    %3220 = vset.pattern.permute.xlu0 0
    %3221 = vperm.xlu0 %3220, %v1664
    %v3222 = vpop.permute.xlu0 %3221
    %3223 = vset.pattern.permute.xlu0 0
    %3224 = vperm.xlu0 %3223, %v1665
    %v3225 = vpop.permute.xlu0 %3224
    %3226 = vset.pattern.permute.xlu0 0
    %3227 = vperm.xlu0 %3226, %v1666
    %v3228 = vpop.permute.xlu0 %3227
    %3229 = vset.pattern.permute.xlu0 0
    %3230 = vperm.xlu0 %3229, %v1667
    %v3231 = vpop.permute.xlu0 %3230
    %3232 = vset.pattern.permute.xlu0 0
    %3233 = vperm.xlu0 %3232, %v1668
    %v3234 = vpop.permute.xlu0 %3233
    %3235 = vset.pattern.permute.xlu0 0
    %3236 = vperm.xlu0 %3235, %v1669
    %v3237 = vpop.permute.xlu0 %3236
    %3238 = vset.pattern.permute.xlu0 0
    %3239 = vperm.xlu0 %3238, %v1670
    %v3240 = vpop.permute.xlu0 %3239
    %3241 = vset.pattern.permute.xlu0 0
    %3242 = vperm.xlu0 %3241, %v1671
    %v3243 = vpop.permute.xlu0 %3242
    %3244 = vset.pattern.permute.xlu0 0
    %3245 = vperm.xlu0 %3244, %v1672
    %v3246 = vpop.permute.xlu0 %3245
    %3247 = vset.pattern.permute.xlu0 0
    %3248 = vperm.xlu0 %3247, %v1673
    %v3249 = vpop.permute.xlu0 %3248
    %3250 = vset.pattern.permute.xlu0 0
    %3251 = vperm.xlu0 %3250, %v1674
    %v3252 = vpop.permute.xlu0 %3251
    %3253 = vset.pattern.permute.xlu0 0
    %3254 = vperm.xlu0 %3253, %v1675
    %v3255 = vpop.permute.xlu0 %3254
    %3256 = vset.pattern.permute.xlu0 0
    %3257 = vperm.xlu0 %3256, %v1676
    %v3258 = vpop.permute.xlu0 %3257
    %3259 = vset.pattern.permute.xlu0 0
    %3260 = vperm.xlu0 %3259, %v1677
    %v3261 = vpop.permute.xlu0 %3260
    %3262 = vset.pattern.permute.xlu0 0
    %3263 = vperm.xlu0 %3262, %v1678
    %v3264 = vpop.permute.xlu0 %3263
    %3265 = vset.pattern.permute.xlu0 0
    %3266 = vperm.xlu0 %3265, %v1679
    %v3267 = vpop.permute.xlu0 %3266
    %3268 = vset.pattern.permute.xlu0 0
    %3269 = vperm.xlu0 %3268, %v1680
    %v3270 = vpop.permute.xlu0 %3269
    %3271 = vset.pattern.permute.xlu0 0
    %3272 = vperm.xlu0 %3271, %v1681
    %v3273 = vpop.permute.xlu0 %3272
    %3274 = vset.pattern.permute.xlu0 0
    %3275 = vperm.xlu0 %3274, %v1682
    %v3276 = vpop.permute.xlu0 %3275
    %3277 = vset.pattern.permute.xlu0 0
    %3278 = vperm.xlu0 %3277, %v1683
    %v3279 = vpop.permute.xlu0 %3278
    %3280 = vset.pattern.permute.xlu0 0
    %3281 = vperm.xlu0 %3280, %v1684
    %v3282 = vpop.permute.xlu0 %3281
    %3283 = vset.pattern.permute.xlu0 0
    %3284 = vperm.xlu0 %3283, %v1685
    %v3285 = vpop.permute.xlu0 %3284
    %v3286 = vlaneseq
    %v3287 = vand.u32 %v3286, 127
    %v3288 = vlaneseq
    %v3289 = vshrl.u32 %v3288, 7
    %v3290 = vsub.s32 %v3287, %v3289
    %v3291 = vrot.slane %v2088, %v3290
    %v3292 = vadd.s32 %v3287, 4294967288
    %v3293 = vlaneseq
    %v3294 = vshrl.u32 %v3293, 7
    %v3295 = vsub.s32 %v3292, %v3294
    %v3296 = vrot.slane %v2091, %v3295
    %vm3297 = vcmask 130112
    %v3298 = vsel %vm3297, %v3296, %v3291
    %v3299 = vadd.s32 %v3287, 4294967280
    %v3300 = vlaneseq
    %v3301 = vshrl.u32 %v3300, 7
    %v3302 = vsub.s32 %v3299, %v3301
    %v3303 = vrot.slane %v2094, %v3302
    %vm3304 = vcmask 195712
    %v3305 = vsel %vm3304, %v3303, %v3298
    %v3306 = vadd.s32 %v3287, 4294967272
    %v3307 = vlaneseq
    %v3308 = vshrl.u32 %v3307, 7
    %v3309 = vsub.s32 %v3306, %v3308
    %v3310 = vrot.slane %v2097, %v3309
    %vm3311 = vcmask 261312
    %v3312 = vsel %vm3311, %v3310, %v3305
    %v3313 = vadd.s32 %v3287, 4294967264
    %v3314 = vlaneseq
    %v3315 = vshrl.u32 %v3314, 7
    %v3316 = vsub.s32 %v3313, %v3315
    %v3317 = vrot.slane %v2100, %v3316
    %vm3318 = vcmask 326912
    %v3319 = vsel %vm3318, %v3317, %v3312
    %v3320 = vlaneseq
    %v3321 = vshrl.u32 %v3320, 7
    %v3322 = vsub.s32 %v3287, %v3321
    %v3323 = vrot.slane %v2103, %v3322
    %v3324 = vlaneseq
    %v3325 = vshrl.u32 %v3324, 7
    %v3326 = vsub.s32 %v3292, %v3325
    %v3327 = vrot.slane %v2106, %v3326
    %v3328 = vsel %vm3297, %v3327, %v3323
    %v3329 = vlaneseq
    %v3330 = vshrl.u32 %v3329, 7
    %v3331 = vsub.s32 %v3299, %v3330
    %v3332 = vrot.slane %v2109, %v3331
    %v3333 = vsel %vm3304, %v3332, %v3328
    %v3334 = vlaneseq
    %v3335 = vshrl.u32 %v3334, 7
    %v3336 = vsub.s32 %v3306, %v3335
    %v3337 = vrot.slane %v2112, %v3336
    %v3338 = vsel %vm3311, %v3337, %v3333
    %v3339 = vlaneseq
    %v3340 = vshrl.u32 %v3339, 7
    %v3341 = vsub.s32 %v3313, %v3340
    %v3342 = vrot.slane %v2115, %v3341
    %v3343 = vsel %vm3318, %v3342, %v3338
    %v3344 = vlaneseq
    %v3345 = vshrl.u32 %v3344, 7
    %v3346 = vsub.s32 %v3287, %v3345
    %v3347 = vrot.slane %v2118, %v3346
    %v3348 = vlaneseq
    %v3349 = vshrl.u32 %v3348, 7
    %v3350 = vsub.s32 %v3292, %v3349
    %v3351 = vrot.slane %v2121, %v3350
    %v3352 = vsel %vm3297, %v3351, %v3347
    %v3353 = vlaneseq
    %v3354 = vshrl.u32 %v3353, 7
    %v3355 = vsub.s32 %v3299, %v3354
    %v3356 = vrot.slane %v2124, %v3355
    %v3357 = vsel %vm3304, %v3356, %v3352
    %v3358 = vlaneseq
    %v3359 = vshrl.u32 %v3358, 7
    %v3360 = vsub.s32 %v3306, %v3359
    %v3361 = vrot.slane %v2127, %v3360
    %v3362 = vsel %vm3311, %v3361, %v3357
    %v3363 = vlaneseq
    %v3364 = vshrl.u32 %v3363, 7
    %v3365 = vsub.s32 %v3313, %v3364
    %v3366 = vrot.slane %v2130, %v3365
    %v3367 = vsel %vm3318, %v3366, %v3362
    %v3368 = vlaneseq
    %v3369 = vshrl.u32 %v3368, 7
    %v3370 = vsub.s32 %v3287, %v3369
    %v3371 = vrot.slane %v2133, %v3370
    %v3372 = vlaneseq
    %v3373 = vshrl.u32 %v3372, 7
    %v3374 = vsub.s32 %v3292, %v3373
    %v3375 = vrot.slane %v2136, %v3374
    %v3376 = vsel %vm3297, %v3375, %v3371
    %v3377 = vlaneseq
    %v3378 = vshrl.u32 %v3377, 7
    %v3379 = vsub.s32 %v3299, %v3378
    %v3380 = vrot.slane %v2139, %v3379
    %v3381 = vsel %vm3304, %v3380, %v3376
    %v3382 = vlaneseq
    %v3383 = vshrl.u32 %v3382, 7
    %v3384 = vsub.s32 %v3306, %v3383
    %v3385 = vrot.slane %v2142, %v3384
    %v3386 = vsel %vm3311, %v3385, %v3381
    %v3387 = vlaneseq
    %v3388 = vshrl.u32 %v3387, 7
    %v3389 = vsub.s32 %v3313, %v3388
    %v3390 = vrot.slane %v2145, %v3389
    %v3391 = vsel %vm3318, %v3390, %v3386
    %v3392 = vlaneseq
    %v3393 = vshrl.u32 %v3392, 7
    %v3394 = vsub.s32 %v3287, %v3393
    %v3395 = vrot.slane %v2148, %v3394
    %v3396 = vlaneseq
    %v3397 = vshrl.u32 %v3396, 7
    %v3398 = vsub.s32 %v3292, %v3397
    %v3399 = vrot.slane %v2151, %v3398
    %v3400 = vsel %vm3297, %v3399, %v3395
    %v3401 = vlaneseq
    %v3402 = vshrl.u32 %v3401, 7
    %v3403 = vsub.s32 %v3299, %v3402
    %v3404 = vrot.slane %v2154, %v3403
    %v3405 = vsel %vm3304, %v3404, %v3400
    %v3406 = vlaneseq
    %v3407 = vshrl.u32 %v3406, 7
    %v3408 = vsub.s32 %v3306, %v3407
    %v3409 = vrot.slane %v2157, %v3408
    %v3410 = vsel %vm3311, %v3409, %v3405
    %v3411 = vlaneseq
    %v3412 = vshrl.u32 %v3411, 7
    %v3413 = vsub.s32 %v3313, %v3412
    %v3414 = vrot.slane %v2160, %v3413
    %v3415 = vsel %vm3318, %v3414, %v3410
    %v3416 = vlaneseq
    %v3417 = vshrl.u32 %v3416, 7
    %v3418 = vsub.s32 %v3287, %v3417
    %v3419 = vrot.slane %v2163, %v3418
    %v3420 = vlaneseq
    %v3421 = vshrl.u32 %v3420, 7
    %v3422 = vsub.s32 %v3292, %v3421
    %v3423 = vrot.slane %v2166, %v3422
    %v3424 = vsel %vm3297, %v3423, %v3419
    %v3425 = vlaneseq
    %v3426 = vshrl.u32 %v3425, 7
    %v3427 = vsub.s32 %v3299, %v3426
    %v3428 = vrot.slane %v2169, %v3427
    %v3429 = vsel %vm3304, %v3428, %v3424
    %v3430 = vlaneseq
    %v3431 = vshrl.u32 %v3430, 7
    %v3432 = vsub.s32 %v3306, %v3431
    %v3433 = vrot.slane %v2172, %v3432
    %v3434 = vsel %vm3311, %v3433, %v3429
    %v3435 = vlaneseq
    %v3436 = vshrl.u32 %v3435, 7
    %v3437 = vsub.s32 %v3313, %v3436
    %v3438 = vrot.slane %v2175, %v3437
    %v3439 = vsel %vm3318, %v3438, %v3434
    %v3440 = vlaneseq
    %v3441 = vshrl.u32 %v3440, 7
    %v3442 = vsub.s32 %v3287, %v3441
    %v3443 = vrot.slane %v2178, %v3442
    %v3444 = vlaneseq
    %v3445 = vshrl.u32 %v3444, 7
    %v3446 = vsub.s32 %v3292, %v3445
    %v3447 = vrot.slane %v2181, %v3446
    %v3448 = vsel %vm3297, %v3447, %v3443
    %v3449 = vlaneseq
    %v3450 = vshrl.u32 %v3449, 7
    %v3451 = vsub.s32 %v3299, %v3450
    %v3452 = vrot.slane %v2184, %v3451
    %v3453 = vsel %vm3304, %v3452, %v3448
    %v3454 = vlaneseq
    %v3455 = vshrl.u32 %v3454, 7
    %v3456 = vsub.s32 %v3306, %v3455
    %v3457 = vrot.slane %v2187, %v3456
    %v3458 = vsel %vm3311, %v3457, %v3453
    %v3459 = vlaneseq
    %v3460 = vshrl.u32 %v3459, 7
    %v3461 = vsub.s32 %v3313, %v3460
    %v3462 = vrot.slane %v2190, %v3461
    %v3463 = vsel %vm3318, %v3462, %v3458
    %v3464 = vlaneseq
    %v3465 = vshrl.u32 %v3464, 7
    %v3466 = vsub.s32 %v3287, %v3465
    %v3467 = vrot.slane %v2193, %v3466
    %v3468 = vlaneseq
    %v3469 = vshrl.u32 %v3468, 7
    %v3470 = vsub.s32 %v3292, %v3469
    %v3471 = vrot.slane %v2196, %v3470
    %v3472 = vsel %vm3297, %v3471, %v3467
    %v3473 = vlaneseq
    %v3474 = vshrl.u32 %v3473, 7
    %v3475 = vsub.s32 %v3299, %v3474
    %v3476 = vrot.slane %v2199, %v3475
    %v3477 = vsel %vm3304, %v3476, %v3472
    %v3478 = vlaneseq
    %v3479 = vshrl.u32 %v3478, 7
    %v3480 = vsub.s32 %v3306, %v3479
    %v3481 = vrot.slane %v2202, %v3480
    %v3482 = vsel %vm3311, %v3481, %v3477
    %v3483 = vlaneseq
    %v3484 = vshrl.u32 %v3483, 7
    %v3485 = vsub.s32 %v3313, %v3484
    %v3486 = vrot.slane %v2205, %v3485
    %v3487 = vsel %vm3318, %v3486, %v3482
    %v3488 = vlaneseq
    %v3489 = vshrl.u32 %v3488, 7
    %v3490 = vsub.s32 %v3287, %v3489
    %v3491 = vrot.slane %v2208, %v3490
    %v3492 = vlaneseq
    %v3493 = vshrl.u32 %v3492, 7
    %v3494 = vsub.s32 %v3292, %v3493
    %v3495 = vrot.slane %v2211, %v3494
    %v3496 = vsel %vm3297, %v3495, %v3491
    %v3497 = vlaneseq
    %v3498 = vshrl.u32 %v3497, 7
    %v3499 = vsub.s32 %v3299, %v3498
    %v3500 = vrot.slane %v2214, %v3499
    %v3501 = vsel %vm3304, %v3500, %v3496
    %v3502 = vlaneseq
    %v3503 = vshrl.u32 %v3502, 7
    %v3504 = vsub.s32 %v3306, %v3503
    %v3505 = vrot.slane %v2217, %v3504
    %v3506 = vsel %vm3311, %v3505, %v3501
    %v3507 = vlaneseq
    %v3508 = vshrl.u32 %v3507, 7
    %v3509 = vsub.s32 %v3313, %v3508
    %v3510 = vrot.slane %v2220, %v3509
    %v3511 = vsel %vm3318, %v3510, %v3506
    %v3512 = vlaneseq
    %v3513 = vshrl.u32 %v3512, 7
    %v3514 = vsub.s32 %v3287, %v3513
    %v3515 = vrot.slane %v2223, %v3514
    %v3516 = vlaneseq
    %v3517 = vshrl.u32 %v3516, 7
    %v3518 = vsub.s32 %v3292, %v3517
    %v3519 = vrot.slane %v2226, %v3518
    %v3520 = vsel %vm3297, %v3519, %v3515
    %v3521 = vlaneseq
    %v3522 = vshrl.u32 %v3521, 7
    %v3523 = vsub.s32 %v3299, %v3522
    %v3524 = vrot.slane %v2229, %v3523
    %v3525 = vsel %vm3304, %v3524, %v3520
    %v3526 = vlaneseq
    %v3527 = vshrl.u32 %v3526, 7
    %v3528 = vsub.s32 %v3306, %v3527
    %v3529 = vrot.slane %v2232, %v3528
    %v3530 = vsel %vm3311, %v3529, %v3525
    %v3531 = vlaneseq
    %v3532 = vshrl.u32 %v3531, 7
    %v3533 = vsub.s32 %v3313, %v3532
    %v3534 = vrot.slane %v2235, %v3533
    %v3535 = vsel %vm3318, %v3534, %v3530
    %v3536 = vlaneseq
    %v3537 = vshrl.u32 %v3536, 7
    %v3538 = vsub.s32 %v3287, %v3537
    %v3539 = vrot.slane %v2238, %v3538
    %v3540 = vlaneseq
    %v3541 = vshrl.u32 %v3540, 7
    %v3542 = vsub.s32 %v3292, %v3541
    %v3543 = vrot.slane %v2241, %v3542
    %v3544 = vsel %vm3297, %v3543, %v3539
    %v3545 = vlaneseq
    %v3546 = vshrl.u32 %v3545, 7
    %v3547 = vsub.s32 %v3299, %v3546
    %v3548 = vrot.slane %v2244, %v3547
    %v3549 = vsel %vm3304, %v3548, %v3544
    %v3550 = vlaneseq
    %v3551 = vshrl.u32 %v3550, 7
    %v3552 = vsub.s32 %v3306, %v3551
    %v3553 = vrot.slane %v2247, %v3552
    %v3554 = vsel %vm3311, %v3553, %v3549
    %v3555 = vlaneseq
    %v3556 = vshrl.u32 %v3555, 7
    %v3557 = vsub.s32 %v3313, %v3556
    %v3558 = vrot.slane %v2250, %v3557
    %v3559 = vsel %vm3318, %v3558, %v3554
    %v3560 = vlaneseq
    %v3561 = vshrl.u32 %v3560, 7
    %v3562 = vsub.s32 %v3287, %v3561
    %v3563 = vrot.slane %v2253, %v3562
    %v3564 = vlaneseq
    %v3565 = vshrl.u32 %v3564, 7
    %v3566 = vsub.s32 %v3292, %v3565
    %v3567 = vrot.slane %v2256, %v3566
    %v3568 = vsel %vm3297, %v3567, %v3563
    %v3569 = vlaneseq
    %v3570 = vshrl.u32 %v3569, 7
    %v3571 = vsub.s32 %v3299, %v3570
    %v3572 = vrot.slane %v2259, %v3571
    %v3573 = vsel %vm3304, %v3572, %v3568
    %v3574 = vlaneseq
    %v3575 = vshrl.u32 %v3574, 7
    %v3576 = vsub.s32 %v3306, %v3575
    %v3577 = vrot.slane %v2262, %v3576
    %v3578 = vsel %vm3311, %v3577, %v3573
    %v3579 = vlaneseq
    %v3580 = vshrl.u32 %v3579, 7
    %v3581 = vsub.s32 %v3313, %v3580
    %v3582 = vrot.slane %v2265, %v3581
    %v3583 = vsel %vm3318, %v3582, %v3578
    %v3584 = vlaneseq
    %v3585 = vshrl.u32 %v3584, 7
    %v3586 = vsub.s32 %v3287, %v3585
    %v3587 = vrot.slane %v2268, %v3586
    %v3588 = vlaneseq
    %v3589 = vshrl.u32 %v3588, 7
    %v3590 = vsub.s32 %v3292, %v3589
    %v3591 = vrot.slane %v2271, %v3590
    %v3592 = vsel %vm3297, %v3591, %v3587
    %v3593 = vlaneseq
    %v3594 = vshrl.u32 %v3593, 7
    %v3595 = vsub.s32 %v3299, %v3594
    %v3596 = vrot.slane %v2274, %v3595
    %v3597 = vsel %vm3304, %v3596, %v3592
    %v3598 = vlaneseq
    %v3599 = vshrl.u32 %v3598, 7
    %v3600 = vsub.s32 %v3306, %v3599
    %v3601 = vrot.slane %v2277, %v3600
    %v3602 = vsel %vm3311, %v3601, %v3597
    %v3603 = vlaneseq
    %v3604 = vshrl.u32 %v3603, 7
    %v3605 = vsub.s32 %v3313, %v3604
    %v3606 = vrot.slane %v2280, %v3605
    %v3607 = vsel %vm3318, %v3606, %v3602
    %v3608 = vlaneseq
    %v3609 = vshrl.u32 %v3608, 7
    %v3610 = vsub.s32 %v3287, %v3609
    %v3611 = vrot.slane %v2283, %v3610
    %v3612 = vlaneseq
    %v3613 = vshrl.u32 %v3612, 7
    %v3614 = vsub.s32 %v3292, %v3613
    %v3615 = vrot.slane %v2286, %v3614
    %v3616 = vsel %vm3297, %v3615, %v3611
    %v3617 = vlaneseq
    %v3618 = vshrl.u32 %v3617, 7
    %v3619 = vsub.s32 %v3299, %v3618
    %v3620 = vrot.slane %v2289, %v3619
    %v3621 = vsel %vm3304, %v3620, %v3616
    %v3622 = vlaneseq
    %v3623 = vshrl.u32 %v3622, 7
    %v3624 = vsub.s32 %v3306, %v3623
    %v3625 = vrot.slane %v2292, %v3624
    %v3626 = vsel %vm3311, %v3625, %v3621
    %v3627 = vlaneseq
    %v3628 = vshrl.u32 %v3627, 7
    %v3629 = vsub.s32 %v3313, %v3628
    %v3630 = vrot.slane %v2295, %v3629
    %v3631 = vsel %vm3318, %v3630, %v3626
    %v3632 = vlaneseq
    %v3633 = vshrl.u32 %v3632, 7
    %v3634 = vsub.s32 %v3287, %v3633
    %v3635 = vrot.slane %v2298, %v3634
    %v3636 = vlaneseq
    %v3637 = vshrl.u32 %v3636, 7
    %v3638 = vsub.s32 %v3292, %v3637
    %v3639 = vrot.slane %v2301, %v3638
    %v3640 = vsel %vm3297, %v3639, %v3635
    %v3641 = vlaneseq
    %v3642 = vshrl.u32 %v3641, 7
    %v3643 = vsub.s32 %v3299, %v3642
    %v3644 = vrot.slane %v2304, %v3643
    %v3645 = vsel %vm3304, %v3644, %v3640
    %v3646 = vlaneseq
    %v3647 = vshrl.u32 %v3646, 7
    %v3648 = vsub.s32 %v3306, %v3647
    %v3649 = vrot.slane %v2307, %v3648
    %v3650 = vsel %vm3311, %v3649, %v3645
    %v3651 = vlaneseq
    %v3652 = vshrl.u32 %v3651, 7
    %v3653 = vsub.s32 %v3313, %v3652
    %v3654 = vrot.slane %v2310, %v3653
    %v3655 = vsel %vm3318, %v3654, %v3650
    %v3656 = vlaneseq
    %v3657 = vshrl.u32 %v3656, 7
    %v3658 = vsub.s32 %v3287, %v3657
    %v3659 = vrot.slane %v2313, %v3658
    %v3660 = vlaneseq
    %v3661 = vshrl.u32 %v3660, 7
    %v3662 = vsub.s32 %v3292, %v3661
    %v3663 = vrot.slane %v2316, %v3662
    %v3664 = vsel %vm3297, %v3663, %v3659
    %v3665 = vlaneseq
    %v3666 = vshrl.u32 %v3665, 7
    %v3667 = vsub.s32 %v3299, %v3666
    %v3668 = vrot.slane %v2319, %v3667
    %v3669 = vsel %vm3304, %v3668, %v3664
    %v3670 = vlaneseq
    %v3671 = vshrl.u32 %v3670, 7
    %v3672 = vsub.s32 %v3306, %v3671
    %v3673 = vrot.slane %v2322, %v3672
    %v3674 = vsel %vm3311, %v3673, %v3669
    %v3675 = vlaneseq
    %v3676 = vshrl.u32 %v3675, 7
    %v3677 = vsub.s32 %v3313, %v3676
    %v3678 = vrot.slane %v2325, %v3677
    %v3679 = vsel %vm3318, %v3678, %v3674
    %v3680 = vlaneseq
    %v3681 = vshrl.u32 %v3680, 7
    %v3682 = vsub.s32 %v3287, %v3681
    %v3683 = vrot.slane %v2328, %v3682
    %v3684 = vlaneseq
    %v3685 = vshrl.u32 %v3684, 7
    %v3686 = vsub.s32 %v3292, %v3685
    %v3687 = vrot.slane %v2331, %v3686
    %v3688 = vsel %vm3297, %v3687, %v3683
    %v3689 = vlaneseq
    %v3690 = vshrl.u32 %v3689, 7
    %v3691 = vsub.s32 %v3299, %v3690
    %v3692 = vrot.slane %v2334, %v3691
    %v3693 = vsel %vm3304, %v3692, %v3688
    %v3694 = vlaneseq
    %v3695 = vshrl.u32 %v3694, 7
    %v3696 = vsub.s32 %v3306, %v3695
    %v3697 = vrot.slane %v2337, %v3696
    %v3698 = vsel %vm3311, %v3697, %v3693
    %v3699 = vlaneseq
    %v3700 = vshrl.u32 %v3699, 7
    %v3701 = vsub.s32 %v3313, %v3700
    %v3702 = vrot.slane %v2340, %v3701
    %v3703 = vsel %vm3318, %v3702, %v3698
    %v3704 = vlaneseq
    %v3705 = vshrl.u32 %v3704, 7
    %v3706 = vsub.s32 %v3287, %v3705
    %v3707 = vrot.slane %v2343, %v3706
    %v3708 = vlaneseq
    %v3709 = vshrl.u32 %v3708, 7
    %v3710 = vsub.s32 %v3292, %v3709
    %v3711 = vrot.slane %v2346, %v3710
    %v3712 = vsel %vm3297, %v3711, %v3707
    %v3713 = vlaneseq
    %v3714 = vshrl.u32 %v3713, 7
    %v3715 = vsub.s32 %v3299, %v3714
    %v3716 = vrot.slane %v2349, %v3715
    %v3717 = vsel %vm3304, %v3716, %v3712
    %v3718 = vlaneseq
    %v3719 = vshrl.u32 %v3718, 7
    %v3720 = vsub.s32 %v3306, %v3719
    %v3721 = vrot.slane %v2352, %v3720
    %v3722 = vsel %vm3311, %v3721, %v3717
    %v3723 = vlaneseq
    %v3724 = vshrl.u32 %v3723, 7
    %v3725 = vsub.s32 %v3313, %v3724
    %v3726 = vrot.slane %v2355, %v3725
    %v3727 = vsel %vm3318, %v3726, %v3722
    %v3728 = vlaneseq
    %v3729 = vshrl.u32 %v3728, 7
    %v3730 = vsub.s32 %v3287, %v3729
    %v3731 = vrot.slane %v2358, %v3730
    %v3732 = vlaneseq
    %v3733 = vshrl.u32 %v3732, 7
    %v3734 = vsub.s32 %v3292, %v3733
    %v3735 = vrot.slane %v2361, %v3734
    %v3736 = vsel %vm3297, %v3735, %v3731
    %v3737 = vlaneseq
    %v3738 = vshrl.u32 %v3737, 7
    %v3739 = vsub.s32 %v3299, %v3738
    %v3740 = vrot.slane %v2364, %v3739
    %v3741 = vsel %vm3304, %v3740, %v3736
    %v3742 = vlaneseq
    %v3743 = vshrl.u32 %v3742, 7
    %v3744 = vsub.s32 %v3306, %v3743
    %v3745 = vrot.slane %v2367, %v3744
    %v3746 = vsel %vm3311, %v3745, %v3741
    %v3747 = vlaneseq
    %v3748 = vshrl.u32 %v3747, 7
    %v3749 = vsub.s32 %v3313, %v3748
    %v3750 = vrot.slane %v2370, %v3749
    %v3751 = vsel %vm3318, %v3750, %v3746
    %v3752 = vlaneseq
    %v3753 = vshrl.u32 %v3752, 7
    %v3754 = vsub.s32 %v3287, %v3753
    %v3755 = vrot.slane %v2373, %v3754
    %v3756 = vlaneseq
    %v3757 = vshrl.u32 %v3756, 7
    %v3758 = vsub.s32 %v3292, %v3757
    %v3759 = vrot.slane %v2376, %v3758
    %v3760 = vsel %vm3297, %v3759, %v3755
    %v3761 = vlaneseq
    %v3762 = vshrl.u32 %v3761, 7
    %v3763 = vsub.s32 %v3299, %v3762
    %v3764 = vrot.slane %v2379, %v3763
    %v3765 = vsel %vm3304, %v3764, %v3760
    %v3766 = vlaneseq
    %v3767 = vshrl.u32 %v3766, 7
    %v3768 = vsub.s32 %v3306, %v3767
    %v3769 = vrot.slane %v2382, %v3768
    %v3770 = vsel %vm3311, %v3769, %v3765
    %v3771 = vlaneseq
    %v3772 = vshrl.u32 %v3771, 7
    %v3773 = vsub.s32 %v3313, %v3772
    %v3774 = vrot.slane %v2385, %v3773
    %v3775 = vsel %vm3318, %v3774, %v3770
    %v3776 = vlaneseq
    %v3777 = vshrl.u32 %v3776, 7
    %v3778 = vsub.s32 %v3287, %v3777
    %v3779 = vrot.slane %v2388, %v3778
    %v3780 = vlaneseq
    %v3781 = vshrl.u32 %v3780, 7
    %v3782 = vsub.s32 %v3292, %v3781
    %v3783 = vrot.slane %v2391, %v3782
    %v3784 = vsel %vm3297, %v3783, %v3779
    %v3785 = vlaneseq
    %v3786 = vshrl.u32 %v3785, 7
    %v3787 = vsub.s32 %v3299, %v3786
    %v3788 = vrot.slane %v2394, %v3787
    %v3789 = vsel %vm3304, %v3788, %v3784
    %v3790 = vlaneseq
    %v3791 = vshrl.u32 %v3790, 7
    %v3792 = vsub.s32 %v3306, %v3791
    %v3793 = vrot.slane %v2397, %v3792
    %v3794 = vsel %vm3311, %v3793, %v3789
    %v3795 = vlaneseq
    %v3796 = vshrl.u32 %v3795, 7
    %v3797 = vsub.s32 %v3313, %v3796
    %v3798 = vrot.slane %v2400, %v3797
    %v3799 = vsel %vm3318, %v3798, %v3794
    %v3800 = vlaneseq
    %v3801 = vshrl.u32 %v3800, 7
    %v3802 = vsub.s32 %v3287, %v3801
    %v3803 = vrot.slane %v2403, %v3802
    %v3804 = vlaneseq
    %v3805 = vshrl.u32 %v3804, 7
    %v3806 = vsub.s32 %v3292, %v3805
    %v3807 = vrot.slane %v2406, %v3806
    %v3808 = vsel %vm3297, %v3807, %v3803
    %v3809 = vlaneseq
    %v3810 = vshrl.u32 %v3809, 7
    %v3811 = vsub.s32 %v3299, %v3810
    %v3812 = vrot.slane %v2409, %v3811
    %v3813 = vsel %vm3304, %v3812, %v3808
    %v3814 = vlaneseq
    %v3815 = vshrl.u32 %v3814, 7
    %v3816 = vsub.s32 %v3306, %v3815
    %v3817 = vrot.slane %v2412, %v3816
    %v3818 = vsel %vm3311, %v3817, %v3813
    %v3819 = vlaneseq
    %v3820 = vshrl.u32 %v3819, 7
    %v3821 = vsub.s32 %v3313, %v3820
    %v3822 = vrot.slane %v2415, %v3821
    %v3823 = vsel %vm3318, %v3822, %v3818
    %v3824 = vlaneseq
    %v3825 = vshrl.u32 %v3824, 7
    %v3826 = vsub.s32 %v3287, %v3825
    %v3827 = vrot.slane %v2418, %v3826
    %v3828 = vlaneseq
    %v3829 = vshrl.u32 %v3828, 7
    %v3830 = vsub.s32 %v3292, %v3829
    %v3831 = vrot.slane %v2421, %v3830
    %v3832 = vsel %vm3297, %v3831, %v3827
    %v3833 = vlaneseq
    %v3834 = vshrl.u32 %v3833, 7
    %v3835 = vsub.s32 %v3299, %v3834
    %v3836 = vrot.slane %v2424, %v3835
    %v3837 = vsel %vm3304, %v3836, %v3832
    %v3838 = vlaneseq
    %v3839 = vshrl.u32 %v3838, 7
    %v3840 = vsub.s32 %v3306, %v3839
    %v3841 = vrot.slane %v2427, %v3840
    %v3842 = vsel %vm3311, %v3841, %v3837
    %v3843 = vlaneseq
    %v3844 = vshrl.u32 %v3843, 7
    %v3845 = vsub.s32 %v3313, %v3844
    %v3846 = vrot.slane %v2430, %v3845
    %v3847 = vsel %vm3318, %v3846, %v3842
    %v3848 = vlaneseq
    %v3849 = vshrl.u32 %v3848, 7
    %v3850 = vsub.s32 %v3287, %v3849
    %v3851 = vrot.slane %v2433, %v3850
    %v3852 = vlaneseq
    %v3853 = vshrl.u32 %v3852, 7
    %v3854 = vsub.s32 %v3292, %v3853
    %v3855 = vrot.slane %v2436, %v3854
    %v3856 = vsel %vm3297, %v3855, %v3851
    %v3857 = vlaneseq
    %v3858 = vshrl.u32 %v3857, 7
    %v3859 = vsub.s32 %v3299, %v3858
    %v3860 = vrot.slane %v2439, %v3859
    %v3861 = vsel %vm3304, %v3860, %v3856
    %v3862 = vlaneseq
    %v3863 = vshrl.u32 %v3862, 7
    %v3864 = vsub.s32 %v3306, %v3863
    %v3865 = vrot.slane %v2442, %v3864
    %v3866 = vsel %vm3311, %v3865, %v3861
    %v3867 = vlaneseq
    %v3868 = vshrl.u32 %v3867, 7
    %v3869 = vsub.s32 %v3313, %v3868
    %v3870 = vrot.slane %v2445, %v3869
    %v3871 = vsel %vm3318, %v3870, %v3866
    %v3872 = vlaneseq
    %v3873 = vshrl.u32 %v3872, 7
    %v3874 = vsub.s32 %v3287, %v3873
    %v3875 = vrot.slane %v2448, %v3874
    %v3876 = vlaneseq
    %v3877 = vshrl.u32 %v3876, 7
    %v3878 = vsub.s32 %v3292, %v3877
    %v3879 = vrot.slane %v2451, %v3878
    %v3880 = vsel %vm3297, %v3879, %v3875
    %v3881 = vlaneseq
    %v3882 = vshrl.u32 %v3881, 7
    %v3883 = vsub.s32 %v3299, %v3882
    %v3884 = vrot.slane %v2454, %v3883
    %v3885 = vsel %vm3304, %v3884, %v3880
    %v3886 = vlaneseq
    %v3887 = vshrl.u32 %v3886, 7
    %v3888 = vsub.s32 %v3306, %v3887
    %v3889 = vrot.slane %v2457, %v3888
    %v3890 = vsel %vm3311, %v3889, %v3885
    %v3891 = vlaneseq
    %v3892 = vshrl.u32 %v3891, 7
    %v3893 = vsub.s32 %v3313, %v3892
    %v3894 = vrot.slane %v2460, %v3893
    %v3895 = vsel %vm3318, %v3894, %v3890
    %v3896 = vlaneseq
    %v3897 = vshrl.u32 %v3896, 7
    %v3898 = vsub.s32 %v3287, %v3897
    %v3899 = vrot.slane %v2463, %v3898
    %v3900 = vlaneseq
    %v3901 = vshrl.u32 %v3900, 7
    %v3902 = vsub.s32 %v3292, %v3901
    %v3903 = vrot.slane %v2466, %v3902
    %v3904 = vsel %vm3297, %v3903, %v3899
    %v3905 = vlaneseq
    %v3906 = vshrl.u32 %v3905, 7
    %v3907 = vsub.s32 %v3299, %v3906
    %v3908 = vrot.slane %v2469, %v3907
    %v3909 = vsel %vm3304, %v3908, %v3904
    %v3910 = vlaneseq
    %v3911 = vshrl.u32 %v3910, 7
    %v3912 = vsub.s32 %v3306, %v3911
    %v3913 = vrot.slane %v2472, %v3912
    %v3914 = vsel %vm3311, %v3913, %v3909
    %v3915 = vlaneseq
    %v3916 = vshrl.u32 %v3915, 7
    %v3917 = vsub.s32 %v3313, %v3916
    %v3918 = vrot.slane %v2475, %v3917
    %v3919 = vsel %vm3318, %v3918, %v3914
    %v3920 = vlaneseq
    %v3921 = vshrl.u32 %v3920, 7
    %v3922 = vsub.s32 %v3287, %v3921
    %v3923 = vrot.slane %v2478, %v3922
    %v3924 = vlaneseq
    %v3925 = vshrl.u32 %v3924, 7
    %v3926 = vsub.s32 %v3292, %v3925
    %v3927 = vrot.slane %v2481, %v3926
    %v3928 = vsel %vm3297, %v3927, %v3923
    %v3929 = vlaneseq
    %v3930 = vshrl.u32 %v3929, 7
    %v3931 = vsub.s32 %v3299, %v3930
    %v3932 = vrot.slane %v2484, %v3931
    %v3933 = vsel %vm3304, %v3932, %v3928
    %v3934 = vlaneseq
    %v3935 = vshrl.u32 %v3934, 7
    %v3936 = vsub.s32 %v3306, %v3935
    %v3937 = vrot.slane %v2487, %v3936
    %v3938 = vsel %vm3311, %v3937, %v3933
    %v3939 = vlaneseq
    %v3940 = vshrl.u32 %v3939, 7
    %v3941 = vsub.s32 %v3313, %v3940
    %v3942 = vrot.slane %v2490, %v3941
    %v3943 = vsel %vm3318, %v3942, %v3938
    %v3944 = vlaneseq
    %v3945 = vshrl.u32 %v3944, 7
    %v3946 = vsub.s32 %v3287, %v3945
    %v3947 = vrot.slane %v2493, %v3946
    %v3948 = vlaneseq
    %v3949 = vshrl.u32 %v3948, 7
    %v3950 = vsub.s32 %v3292, %v3949
    %v3951 = vrot.slane %v2496, %v3950
    %v3952 = vsel %vm3297, %v3951, %v3947
    %v3953 = vlaneseq
    %v3954 = vshrl.u32 %v3953, 7
    %v3955 = vsub.s32 %v3299, %v3954
    %v3956 = vrot.slane %v2499, %v3955
    %v3957 = vsel %vm3304, %v3956, %v3952
    %v3958 = vlaneseq
    %v3959 = vshrl.u32 %v3958, 7
    %v3960 = vsub.s32 %v3306, %v3959
    %v3961 = vrot.slane %v2502, %v3960
    %v3962 = vsel %vm3311, %v3961, %v3957
    %v3963 = vlaneseq
    %v3964 = vshrl.u32 %v3963, 7
    %v3965 = vsub.s32 %v3313, %v3964
    %v3966 = vrot.slane %v2505, %v3965
    %v3967 = vsel %vm3318, %v3966, %v3962
    %v3968 = vlaneseq
    %v3969 = vshrl.u32 %v3968, 7
    %v3970 = vsub.s32 %v3287, %v3969
    %v3971 = vrot.slane %v2508, %v3970
    %v3972 = vlaneseq
    %v3973 = vshrl.u32 %v3972, 7
    %v3974 = vsub.s32 %v3292, %v3973
    %v3975 = vrot.slane %v2511, %v3974
    %v3976 = vsel %vm3297, %v3975, %v3971
    %v3977 = vlaneseq
    %v3978 = vshrl.u32 %v3977, 7
    %v3979 = vsub.s32 %v3299, %v3978
    %v3980 = vrot.slane %v2514, %v3979
    %v3981 = vsel %vm3304, %v3980, %v3976
    %v3982 = vlaneseq
    %v3983 = vshrl.u32 %v3982, 7
    %v3984 = vsub.s32 %v3306, %v3983
    %v3985 = vrot.slane %v2517, %v3984
    %v3986 = vsel %vm3311, %v3985, %v3981
    %v3987 = vlaneseq
    %v3988 = vshrl.u32 %v3987, 7
    %v3989 = vsub.s32 %v3313, %v3988
    %v3990 = vrot.slane %v2520, %v3989
    %v3991 = vsel %vm3318, %v3990, %v3986
    %v3992 = vlaneseq
    %v3993 = vshrl.u32 %v3992, 7
    %v3994 = vsub.s32 %v3287, %v3993
    %v3995 = vrot.slane %v2523, %v3994
    %v3996 = vlaneseq
    %v3997 = vshrl.u32 %v3996, 7
    %v3998 = vsub.s32 %v3292, %v3997
    %v3999 = vrot.slane %v2526, %v3998
    %v4000 = vsel %vm3297, %v3999, %v3995
    %v4001 = vlaneseq
    %v4002 = vshrl.u32 %v4001, 7
    %v4003 = vsub.s32 %v3299, %v4002
    %v4004 = vrot.slane %v2529, %v4003
    %v4005 = vsel %vm3304, %v4004, %v4000
    %v4006 = vlaneseq
    %v4007 = vshrl.u32 %v4006, 7
    %v4008 = vsub.s32 %v3306, %v4007
    %v4009 = vrot.slane %v2532, %v4008
    %v4010 = vsel %vm3311, %v4009, %v4005
    %v4011 = vlaneseq
    %v4012 = vshrl.u32 %v4011, 7
    %v4013 = vsub.s32 %v3313, %v4012
    %v4014 = vrot.slane %v2535, %v4013
    %v4015 = vsel %vm3318, %v4014, %v4010
    %v4016 = vlaneseq
    %v4017 = vshrl.u32 %v4016, 7
    %v4018 = vsub.s32 %v3287, %v4017
    %v4019 = vrot.slane %v2538, %v4018
    %v4020 = vlaneseq
    %v4021 = vshrl.u32 %v4020, 7
    %v4022 = vsub.s32 %v3292, %v4021
    %v4023 = vrot.slane %v2541, %v4022
    %v4024 = vsel %vm3297, %v4023, %v4019
    %v4025 = vlaneseq
    %v4026 = vshrl.u32 %v4025, 7
    %v4027 = vsub.s32 %v3299, %v4026
    %v4028 = vrot.slane %v2544, %v4027
    %v4029 = vsel %vm3304, %v4028, %v4024
    %v4030 = vlaneseq
    %v4031 = vshrl.u32 %v4030, 7
    %v4032 = vsub.s32 %v3306, %v4031
    %v4033 = vrot.slane %v2547, %v4032
    %v4034 = vsel %vm3311, %v4033, %v4029
    %v4035 = vlaneseq
    %v4036 = vshrl.u32 %v4035, 7
    %v4037 = vsub.s32 %v3313, %v4036
    %v4038 = vrot.slane %v2550, %v4037
    %v4039 = vsel %vm3318, %v4038, %v4034
    %v4040 = vlaneseq
    %v4041 = vshrl.u32 %v4040, 7
    %v4042 = vsub.s32 %v3287, %v4041
    %v4043 = vrot.slane %v2553, %v4042
    %v4044 = vlaneseq
    %v4045 = vshrl.u32 %v4044, 7
    %v4046 = vsub.s32 %v3292, %v4045
    %v4047 = vrot.slane %v2556, %v4046
    %v4048 = vsel %vm3297, %v4047, %v4043
    %v4049 = vlaneseq
    %v4050 = vshrl.u32 %v4049, 7
    %v4051 = vsub.s32 %v3299, %v4050
    %v4052 = vrot.slane %v2559, %v4051
    %v4053 = vsel %vm3304, %v4052, %v4048
    %v4054 = vlaneseq
    %v4055 = vshrl.u32 %v4054, 7
    %v4056 = vsub.s32 %v3306, %v4055
    %v4057 = vrot.slane %v2562, %v4056
    %v4058 = vsel %vm3311, %v4057, %v4053
    %v4059 = vlaneseq
    %v4060 = vshrl.u32 %v4059, 7
    %v4061 = vsub.s32 %v3313, %v4060
    %v4062 = vrot.slane %v2565, %v4061
    %v4063 = vsel %vm3318, %v4062, %v4058
    %v4064 = vlaneseq
    %v4065 = vshrl.u32 %v4064, 7
    %v4066 = vsub.s32 %v3287, %v4065
    %v4067 = vrot.slane %v2568, %v4066
    %v4068 = vlaneseq
    %v4069 = vshrl.u32 %v4068, 7
    %v4070 = vsub.s32 %v3292, %v4069
    %v4071 = vrot.slane %v2571, %v4070
    %v4072 = vsel %vm3297, %v4071, %v4067
    %v4073 = vlaneseq
    %v4074 = vshrl.u32 %v4073, 7
    %v4075 = vsub.s32 %v3299, %v4074
    %v4076 = vrot.slane %v2574, %v4075
    %v4077 = vsel %vm3304, %v4076, %v4072
    %v4078 = vlaneseq
    %v4079 = vshrl.u32 %v4078, 7
    %v4080 = vsub.s32 %v3306, %v4079
    %v4081 = vrot.slane %v2577, %v4080
    %v4082 = vsel %vm3311, %v4081, %v4077
    %v4083 = vlaneseq
    %v4084 = vshrl.u32 %v4083, 7
    %v4085 = vsub.s32 %v3313, %v4084
    %v4086 = vrot.slane %v2580, %v4085
    %v4087 = vsel %vm3318, %v4086, %v4082
    %v4088 = vlaneseq
    %v4089 = vshrl.u32 %v4088, 7
    %v4090 = vsub.s32 %v3287, %v4089
    %v4091 = vrot.slane %v2583, %v4090
    %v4092 = vlaneseq
    %v4093 = vshrl.u32 %v4092, 7
    %v4094 = vsub.s32 %v3292, %v4093
    %v4095 = vrot.slane %v2586, %v4094
    %v4096 = vsel %vm3297, %v4095, %v4091
    %v4097 = vlaneseq
    %v4098 = vshrl.u32 %v4097, 7
    %v4099 = vsub.s32 %v3299, %v4098
    %v4100 = vrot.slane %v2589, %v4099
    %v4101 = vsel %vm3304, %v4100, %v4096
    %v4102 = vlaneseq
    %v4103 = vshrl.u32 %v4102, 7
    %v4104 = vsub.s32 %v3306, %v4103
    %v4105 = vrot.slane %v2592, %v4104
    %v4106 = vsel %vm3311, %v4105, %v4101
    %v4107 = vlaneseq
    %v4108 = vshrl.u32 %v4107, 7
    %v4109 = vsub.s32 %v3313, %v4108
    %v4110 = vrot.slane %v2595, %v4109
    %v4111 = vsel %vm3318, %v4110, %v4106
    %v4112 = vlaneseq
    %v4113 = vshrl.u32 %v4112, 7
    %v4114 = vsub.s32 %v3287, %v4113
    %v4115 = vrot.slane %v2598, %v4114
    %v4116 = vlaneseq
    %v4117 = vshrl.u32 %v4116, 7
    %v4118 = vsub.s32 %v3292, %v4117
    %v4119 = vrot.slane %v2601, %v4118
    %v4120 = vsel %vm3297, %v4119, %v4115
    %v4121 = vlaneseq
    %v4122 = vshrl.u32 %v4121, 7
    %v4123 = vsub.s32 %v3299, %v4122
    %v4124 = vrot.slane %v2604, %v4123
    %v4125 = vsel %vm3304, %v4124, %v4120
    %v4126 = vlaneseq
    %v4127 = vshrl.u32 %v4126, 7
    %v4128 = vsub.s32 %v3306, %v4127
    %v4129 = vrot.slane %v2607, %v4128
    %v4130 = vsel %vm3311, %v4129, %v4125
    %v4131 = vlaneseq
    %v4132 = vshrl.u32 %v4131, 7
    %v4133 = vsub.s32 %v3313, %v4132
    %v4134 = vrot.slane %v2610, %v4133
    %v4135 = vsel %vm3318, %v4134, %v4130
    %v4136 = vlaneseq
    %v4137 = vshrl.u32 %v4136, 7
    %v4138 = vsub.s32 %v3287, %v4137
    %v4139 = vrot.slane %v2613, %v4138
    %v4140 = vlaneseq
    %v4141 = vshrl.u32 %v4140, 7
    %v4142 = vsub.s32 %v3292, %v4141
    %v4143 = vrot.slane %v2616, %v4142
    %v4144 = vsel %vm3297, %v4143, %v4139
    %v4145 = vlaneseq
    %v4146 = vshrl.u32 %v4145, 7
    %v4147 = vsub.s32 %v3299, %v4146
    %v4148 = vrot.slane %v2619, %v4147
    %v4149 = vsel %vm3304, %v4148, %v4144
    %v4150 = vlaneseq
    %v4151 = vshrl.u32 %v4150, 7
    %v4152 = vsub.s32 %v3306, %v4151
    %v4153 = vrot.slane %v2622, %v4152
    %v4154 = vsel %vm3311, %v4153, %v4149
    %v4155 = vlaneseq
    %v4156 = vshrl.u32 %v4155, 7
    %v4157 = vsub.s32 %v3313, %v4156
    %v4158 = vrot.slane %v2625, %v4157
    %v4159 = vsel %vm3318, %v4158, %v4154
    %v4160 = vlaneseq
    %v4161 = vshrl.u32 %v4160, 7
    %v4162 = vsub.s32 %v3287, %v4161
    %v4163 = vrot.slane %v2628, %v4162
    %v4164 = vlaneseq
    %v4165 = vshrl.u32 %v4164, 7
    %v4166 = vsub.s32 %v3292, %v4165
    %v4167 = vrot.slane %v2631, %v4166
    %v4168 = vsel %vm3297, %v4167, %v4163
    %v4169 = vlaneseq
    %v4170 = vshrl.u32 %v4169, 7
    %v4171 = vsub.s32 %v3299, %v4170
    %v4172 = vrot.slane %v2634, %v4171
    %v4173 = vsel %vm3304, %v4172, %v4168
    %v4174 = vlaneseq
    %v4175 = vshrl.u32 %v4174, 7
    %v4176 = vsub.s32 %v3306, %v4175
    %v4177 = vrot.slane %v2637, %v4176
    %v4178 = vsel %vm3311, %v4177, %v4173
    %v4179 = vlaneseq
    %v4180 = vshrl.u32 %v4179, 7
    %v4181 = vsub.s32 %v3313, %v4180
    %v4182 = vrot.slane %v2640, %v4181
    %v4183 = vsel %vm3318, %v4182, %v4178
    %v4184 = vlaneseq
    %v4185 = vshrl.u32 %v4184, 7
    %v4186 = vsub.s32 %v3287, %v4185
    %v4187 = vrot.slane %v2643, %v4186
    %v4188 = vlaneseq
    %v4189 = vshrl.u32 %v4188, 7
    %v4190 = vsub.s32 %v3292, %v4189
    %v4191 = vrot.slane %v2646, %v4190
    %v4192 = vsel %vm3297, %v4191, %v4187
    %v4193 = vlaneseq
    %v4194 = vshrl.u32 %v4193, 7
    %v4195 = vsub.s32 %v3299, %v4194
    %v4196 = vrot.slane %v2649, %v4195
    %v4197 = vsel %vm3304, %v4196, %v4192
    %v4198 = vlaneseq
    %v4199 = vshrl.u32 %v4198, 7
    %v4200 = vsub.s32 %v3306, %v4199
    %v4201 = vrot.slane %v2652, %v4200
    %v4202 = vsel %vm3311, %v4201, %v4197
    %v4203 = vlaneseq
    %v4204 = vshrl.u32 %v4203, 7
    %v4205 = vsub.s32 %v3313, %v4204
    %v4206 = vrot.slane %v2655, %v4205
    %v4207 = vsel %vm3318, %v4206, %v4202
    %v4208 = vlaneseq
    %v4209 = vshrl.u32 %v4208, 7
    %v4210 = vsub.s32 %v3287, %v4209
    %v4211 = vrot.slane %v2658, %v4210
    %v4212 = vlaneseq
    %v4213 = vshrl.u32 %v4212, 7
    %v4214 = vsub.s32 %v3292, %v4213
    %v4215 = vrot.slane %v2661, %v4214
    %v4216 = vsel %vm3297, %v4215, %v4211
    %v4217 = vlaneseq
    %v4218 = vshrl.u32 %v4217, 7
    %v4219 = vsub.s32 %v3299, %v4218
    %v4220 = vrot.slane %v2664, %v4219
    %v4221 = vsel %vm3304, %v4220, %v4216
    %v4222 = vlaneseq
    %v4223 = vshrl.u32 %v4222, 7
    %v4224 = vsub.s32 %v3306, %v4223
    %v4225 = vrot.slane %v2667, %v4224
    %v4226 = vsel %vm3311, %v4225, %v4221
    %v4227 = vlaneseq
    %v4228 = vshrl.u32 %v4227, 7
    %v4229 = vsub.s32 %v3313, %v4228
    %v4230 = vrot.slane %v2670, %v4229
    %v4231 = vsel %vm3318, %v4230, %v4226
    %v4232 = vlaneseq
    %v4233 = vshrl.u32 %v4232, 7
    %v4234 = vsub.s32 %v3287, %v4233
    %v4235 = vrot.slane %v2673, %v4234
    %v4236 = vlaneseq
    %v4237 = vshrl.u32 %v4236, 7
    %v4238 = vsub.s32 %v3292, %v4237
    %v4239 = vrot.slane %v2676, %v4238
    %v4240 = vsel %vm3297, %v4239, %v4235
    %v4241 = vlaneseq
    %v4242 = vshrl.u32 %v4241, 7
    %v4243 = vsub.s32 %v3299, %v4242
    %v4244 = vrot.slane %v2679, %v4243
    %v4245 = vsel %vm3304, %v4244, %v4240
    %v4246 = vlaneseq
    %v4247 = vshrl.u32 %v4246, 7
    %v4248 = vsub.s32 %v3306, %v4247
    %v4249 = vrot.slane %v2682, %v4248
    %v4250 = vsel %vm3311, %v4249, %v4245
    %v4251 = vlaneseq
    %v4252 = vshrl.u32 %v4251, 7
    %v4253 = vsub.s32 %v3313, %v4252
    %v4254 = vrot.slane %v2685, %v4253
    %v4255 = vsel %vm3318, %v4254, %v4250
    %v4256 = vlaneseq
    %v4257 = vshrl.u32 %v4256, 7
    %v4258 = vsub.s32 %v3287, %v4257
    %v4259 = vrot.slane %v2688, %v4258
    %v4260 = vlaneseq
    %v4261 = vshrl.u32 %v4260, 7
    %v4262 = vsub.s32 %v3292, %v4261
    %v4263 = vrot.slane %v2691, %v4262
    %v4264 = vsel %vm3297, %v4263, %v4259
    %v4265 = vlaneseq
    %v4266 = vshrl.u32 %v4265, 7
    %v4267 = vsub.s32 %v3299, %v4266
    %v4268 = vrot.slane %v2694, %v4267
    %v4269 = vsel %vm3304, %v4268, %v4264
    %v4270 = vlaneseq
    %v4271 = vshrl.u32 %v4270, 7
    %v4272 = vsub.s32 %v3306, %v4271
    %v4273 = vrot.slane %v2697, %v4272
    %v4274 = vsel %vm3311, %v4273, %v4269
    %v4275 = vlaneseq
    %v4276 = vshrl.u32 %v4275, 7
    %v4277 = vsub.s32 %v3313, %v4276
    %v4278 = vrot.slane %v2700, %v4277
    %v4279 = vsel %vm3318, %v4278, %v4274
    %v4280 = vlaneseq
    %v4281 = vshrl.u32 %v4280, 7
    %v4282 = vsub.s32 %v3287, %v4281
    %v4283 = vrot.slane %v2703, %v4282
    %v4284 = vlaneseq
    %v4285 = vshrl.u32 %v4284, 7
    %v4286 = vsub.s32 %v3292, %v4285
    %v4287 = vrot.slane %v2706, %v4286
    %v4288 = vsel %vm3297, %v4287, %v4283
    %v4289 = vlaneseq
    %v4290 = vshrl.u32 %v4289, 7
    %v4291 = vsub.s32 %v3299, %v4290
    %v4292 = vrot.slane %v2709, %v4291
    %v4293 = vsel %vm3304, %v4292, %v4288
    %v4294 = vlaneseq
    %v4295 = vshrl.u32 %v4294, 7
    %v4296 = vsub.s32 %v3306, %v4295
    %v4297 = vrot.slane %v2712, %v4296
    %v4298 = vsel %vm3311, %v4297, %v4293
    %v4299 = vlaneseq
    %v4300 = vshrl.u32 %v4299, 7
    %v4301 = vsub.s32 %v3313, %v4300
    %v4302 = vrot.slane %v2715, %v4301
    %v4303 = vsel %vm3318, %v4302, %v4298
    %v4304 = vlaneseq
    %v4305 = vshrl.u32 %v4304, 7
    %v4306 = vsub.s32 %v3287, %v4305
    %v4307 = vrot.slane %v2718, %v4306
    %v4308 = vlaneseq
    %v4309 = vshrl.u32 %v4308, 7
    %v4310 = vsub.s32 %v3292, %v4309
    %v4311 = vrot.slane %v2721, %v4310
    %v4312 = vsel %vm3297, %v4311, %v4307
    %v4313 = vlaneseq
    %v4314 = vshrl.u32 %v4313, 7
    %v4315 = vsub.s32 %v3299, %v4314
    %v4316 = vrot.slane %v2724, %v4315
    %v4317 = vsel %vm3304, %v4316, %v4312
    %v4318 = vlaneseq
    %v4319 = vshrl.u32 %v4318, 7
    %v4320 = vsub.s32 %v3306, %v4319
    %v4321 = vrot.slane %v2727, %v4320
    %v4322 = vsel %vm3311, %v4321, %v4317
    %v4323 = vlaneseq
    %v4324 = vshrl.u32 %v4323, 7
    %v4325 = vsub.s32 %v3313, %v4324
    %v4326 = vrot.slane %v2730, %v4325
    %v4327 = vsel %vm3318, %v4326, %v4322
    %v4328 = vlaneseq
    %v4329 = vshrl.u32 %v4328, 7
    %v4330 = vsub.s32 %v3287, %v4329
    %v4331 = vrot.slane %v2733, %v4330
    %v4332 = vlaneseq
    %v4333 = vshrl.u32 %v4332, 7
    %v4334 = vsub.s32 %v3292, %v4333
    %v4335 = vrot.slane %v2736, %v4334
    %v4336 = vsel %vm3297, %v4335, %v4331
    %v4337 = vlaneseq
    %v4338 = vshrl.u32 %v4337, 7
    %v4339 = vsub.s32 %v3299, %v4338
    %v4340 = vrot.slane %v2739, %v4339
    %v4341 = vsel %vm3304, %v4340, %v4336
    %v4342 = vlaneseq
    %v4343 = vshrl.u32 %v4342, 7
    %v4344 = vsub.s32 %v3306, %v4343
    %v4345 = vrot.slane %v2742, %v4344
    %v4346 = vsel %vm3311, %v4345, %v4341
    %v4347 = vlaneseq
    %v4348 = vshrl.u32 %v4347, 7
    %v4349 = vsub.s32 %v3313, %v4348
    %v4350 = vrot.slane %v2745, %v4349
    %v4351 = vsel %vm3318, %v4350, %v4346
    %v4352 = vlaneseq
    %v4353 = vshrl.u32 %v4352, 7
    %v4354 = vsub.s32 %v3287, %v4353
    %v4355 = vrot.slane %v2748, %v4354
    %v4356 = vlaneseq
    %v4357 = vshrl.u32 %v4356, 7
    %v4358 = vsub.s32 %v3292, %v4357
    %v4359 = vrot.slane %v2751, %v4358
    %v4360 = vsel %vm3297, %v4359, %v4355
    %v4361 = vlaneseq
    %v4362 = vshrl.u32 %v4361, 7
    %v4363 = vsub.s32 %v3299, %v4362
    %v4364 = vrot.slane %v2754, %v4363
    %v4365 = vsel %vm3304, %v4364, %v4360
    %v4366 = vlaneseq
    %v4367 = vshrl.u32 %v4366, 7
    %v4368 = vsub.s32 %v3306, %v4367
    %v4369 = vrot.slane %v2757, %v4368
    %v4370 = vsel %vm3311, %v4369, %v4365
    %v4371 = vlaneseq
    %v4372 = vshrl.u32 %v4371, 7
    %v4373 = vsub.s32 %v3313, %v4372
    %v4374 = vrot.slane %v2760, %v4373
    %v4375 = vsel %vm3318, %v4374, %v4370
    %v4376 = vlaneseq
    %v4377 = vshrl.u32 %v4376, 7
    %v4378 = vsub.s32 %v3287, %v4377
    %v4379 = vrot.slane %v2763, %v4378
    %v4380 = vlaneseq
    %v4381 = vshrl.u32 %v4380, 7
    %v4382 = vsub.s32 %v3292, %v4381
    %v4383 = vrot.slane %v2766, %v4382
    %v4384 = vsel %vm3297, %v4383, %v4379
    %v4385 = vlaneseq
    %v4386 = vshrl.u32 %v4385, 7
    %v4387 = vsub.s32 %v3299, %v4386
    %v4388 = vrot.slane %v2769, %v4387
    %v4389 = vsel %vm3304, %v4388, %v4384
    %v4390 = vlaneseq
    %v4391 = vshrl.u32 %v4390, 7
    %v4392 = vsub.s32 %v3306, %v4391
    %v4393 = vrot.slane %v2772, %v4392
    %v4394 = vsel %vm3311, %v4393, %v4389
    %v4395 = vlaneseq
    %v4396 = vshrl.u32 %v4395, 7
    %v4397 = vsub.s32 %v3313, %v4396
    %v4398 = vrot.slane %v2775, %v4397
    %v4399 = vsel %vm3318, %v4398, %v4394
    %v4400 = vlaneseq
    %v4401 = vshrl.u32 %v4400, 7
    %v4402 = vsub.s32 %v3287, %v4401
    %v4403 = vrot.slane %v2778, %v4402
    %v4404 = vlaneseq
    %v4405 = vshrl.u32 %v4404, 7
    %v4406 = vsub.s32 %v3292, %v4405
    %v4407 = vrot.slane %v2781, %v4406
    %v4408 = vsel %vm3297, %v4407, %v4403
    %v4409 = vlaneseq
    %v4410 = vshrl.u32 %v4409, 7
    %v4411 = vsub.s32 %v3299, %v4410
    %v4412 = vrot.slane %v2784, %v4411
    %v4413 = vsel %vm3304, %v4412, %v4408
    %v4414 = vlaneseq
    %v4415 = vshrl.u32 %v4414, 7
    %v4416 = vsub.s32 %v3306, %v4415
    %v4417 = vrot.slane %v2787, %v4416
    %v4418 = vsel %vm3311, %v4417, %v4413
    %v4419 = vlaneseq
    %v4420 = vshrl.u32 %v4419, 7
    %v4421 = vsub.s32 %v3313, %v4420
    %v4422 = vrot.slane %v2790, %v4421
    %v4423 = vsel %vm3318, %v4422, %v4418
    %v4424 = vlaneseq
    %v4425 = vshrl.u32 %v4424, 7
    %v4426 = vsub.s32 %v3287, %v4425
    %v4427 = vrot.slane %v2793, %v4426
    %v4428 = vlaneseq
    %v4429 = vshrl.u32 %v4428, 7
    %v4430 = vsub.s32 %v3292, %v4429
    %v4431 = vrot.slane %v2796, %v4430
    %v4432 = vsel %vm3297, %v4431, %v4427
    %v4433 = vlaneseq
    %v4434 = vshrl.u32 %v4433, 7
    %v4435 = vsub.s32 %v3299, %v4434
    %v4436 = vrot.slane %v2799, %v4435
    %v4437 = vsel %vm3304, %v4436, %v4432
    %v4438 = vlaneseq
    %v4439 = vshrl.u32 %v4438, 7
    %v4440 = vsub.s32 %v3306, %v4439
    %v4441 = vrot.slane %v2802, %v4440
    %v4442 = vsel %vm3311, %v4441, %v4437
    %v4443 = vlaneseq
    %v4444 = vshrl.u32 %v4443, 7
    %v4445 = vsub.s32 %v3313, %v4444
    %v4446 = vrot.slane %v2805, %v4445
    %v4447 = vsel %vm3318, %v4446, %v4442
    %v4448 = vlaneseq
    %v4449 = vshrl.u32 %v4448, 7
    %v4450 = vsub.s32 %v3287, %v4449
    %v4451 = vrot.slane %v2808, %v4450
    %v4452 = vlaneseq
    %v4453 = vshrl.u32 %v4452, 7
    %v4454 = vsub.s32 %v3292, %v4453
    %v4455 = vrot.slane %v2811, %v4454
    %v4456 = vsel %vm3297, %v4455, %v4451
    %v4457 = vlaneseq
    %v4458 = vshrl.u32 %v4457, 7
    %v4459 = vsub.s32 %v3299, %v4458
    %v4460 = vrot.slane %v2814, %v4459
    %v4461 = vsel %vm3304, %v4460, %v4456
    %v4462 = vlaneseq
    %v4463 = vshrl.u32 %v4462, 7
    %v4464 = vsub.s32 %v3306, %v4463
    %v4465 = vrot.slane %v2817, %v4464
    %v4466 = vsel %vm3311, %v4465, %v4461
    %v4467 = vlaneseq
    %v4468 = vshrl.u32 %v4467, 7
    %v4469 = vsub.s32 %v3313, %v4468
    %v4470 = vrot.slane %v2820, %v4469
    %v4471 = vsel %vm3318, %v4470, %v4466
    %v4472 = vlaneseq
    %v4473 = vshrl.u32 %v4472, 7
    %v4474 = vsub.s32 %v3287, %v4473
    %v4475 = vrot.slane %v2823, %v4474
    %v4476 = vlaneseq
    %v4477 = vshrl.u32 %v4476, 7
    %v4478 = vsub.s32 %v3292, %v4477
    %v4479 = vrot.slane %v2826, %v4478
    %v4480 = vsel %vm3297, %v4479, %v4475
    %v4481 = vlaneseq
    %v4482 = vshrl.u32 %v4481, 7
    %v4483 = vsub.s32 %v3299, %v4482
    %v4484 = vrot.slane %v2829, %v4483
    %v4485 = vsel %vm3304, %v4484, %v4480
    %v4486 = vlaneseq
    %v4487 = vshrl.u32 %v4486, 7
    %v4488 = vsub.s32 %v3306, %v4487
    %v4489 = vrot.slane %v2832, %v4488
    %v4490 = vsel %vm3311, %v4489, %v4485
    %v4491 = vlaneseq
    %v4492 = vshrl.u32 %v4491, 7
    %v4493 = vsub.s32 %v3313, %v4492
    %v4494 = vrot.slane %v2835, %v4493
    %v4495 = vsel %vm3318, %v4494, %v4490
    %v4496 = vlaneseq
    %v4497 = vshrl.u32 %v4496, 7
    %v4498 = vsub.s32 %v3287, %v4497
    %v4499 = vrot.slane %v2838, %v4498
    %v4500 = vlaneseq
    %v4501 = vshrl.u32 %v4500, 7
    %v4502 = vsub.s32 %v3292, %v4501
    %v4503 = vrot.slane %v2841, %v4502
    %v4504 = vsel %vm3297, %v4503, %v4499
    %v4505 = vlaneseq
    %v4506 = vshrl.u32 %v4505, 7
    %v4507 = vsub.s32 %v3299, %v4506
    %v4508 = vrot.slane %v2844, %v4507
    %v4509 = vsel %vm3304, %v4508, %v4504
    %v4510 = vlaneseq
    %v4511 = vshrl.u32 %v4510, 7
    %v4512 = vsub.s32 %v3306, %v4511
    %v4513 = vrot.slane %v2847, %v4512
    %v4514 = vsel %vm3311, %v4513, %v4509
    %v4515 = vlaneseq
    %v4516 = vshrl.u32 %v4515, 7
    %v4517 = vsub.s32 %v3313, %v4516
    %v4518 = vrot.slane %v2850, %v4517
    %v4519 = vsel %vm3318, %v4518, %v4514
    %v4520 = vlaneseq
    %v4521 = vshrl.u32 %v4520, 7
    %v4522 = vsub.s32 %v3287, %v4521
    %v4523 = vrot.slane %v2853, %v4522
    %v4524 = vlaneseq
    %v4525 = vshrl.u32 %v4524, 7
    %v4526 = vsub.s32 %v3292, %v4525
    %v4527 = vrot.slane %v2856, %v4526
    %v4528 = vsel %vm3297, %v4527, %v4523
    %v4529 = vlaneseq
    %v4530 = vshrl.u32 %v4529, 7
    %v4531 = vsub.s32 %v3299, %v4530
    %v4532 = vrot.slane %v2859, %v4531
    %v4533 = vsel %vm3304, %v4532, %v4528
    %v4534 = vlaneseq
    %v4535 = vshrl.u32 %v4534, 7
    %v4536 = vsub.s32 %v3306, %v4535
    %v4537 = vrot.slane %v2862, %v4536
    %v4538 = vsel %vm3311, %v4537, %v4533
    %v4539 = vlaneseq
    %v4540 = vshrl.u32 %v4539, 7
    %v4541 = vsub.s32 %v3313, %v4540
    %v4542 = vrot.slane %v2865, %v4541
    %v4543 = vsel %vm3318, %v4542, %v4538
    %v4544 = vlaneseq
    %v4545 = vshrl.u32 %v4544, 7
    %v4546 = vsub.s32 %v3287, %v4545
    %v4547 = vrot.slane %v2868, %v4546
    %v4548 = vlaneseq
    %v4549 = vshrl.u32 %v4548, 7
    %v4550 = vsub.s32 %v3292, %v4549
    %v4551 = vrot.slane %v2871, %v4550
    %v4552 = vsel %vm3297, %v4551, %v4547
    %v4553 = vlaneseq
    %v4554 = vshrl.u32 %v4553, 7
    %v4555 = vsub.s32 %v3299, %v4554
    %v4556 = vrot.slane %v2874, %v4555
    %v4557 = vsel %vm3304, %v4556, %v4552
    %v4558 = vlaneseq
    %v4559 = vshrl.u32 %v4558, 7
    %v4560 = vsub.s32 %v3306, %v4559
    %v4561 = vrot.slane %v2877, %v4560
    %v4562 = vsel %vm3311, %v4561, %v4557
    %v4563 = vlaneseq
    %v4564 = vshrl.u32 %v4563, 7
    %v4565 = vsub.s32 %v3313, %v4564
    %v4566 = vrot.slane %v2880, %v4565
    %v4567 = vsel %vm3318, %v4566, %v4562
    %v4568 = vlaneseq
    %v4569 = vshrl.u32 %v4568, 7
    %v4570 = vsub.s32 %v3287, %v4569
    %v4571 = vrot.slane %v2883, %v4570
    %v4572 = vlaneseq
    %v4573 = vshrl.u32 %v4572, 7
    %v4574 = vsub.s32 %v3292, %v4573
    %v4575 = vrot.slane %v2886, %v4574
    %v4576 = vsel %vm3297, %v4575, %v4571
    %v4577 = vlaneseq
    %v4578 = vshrl.u32 %v4577, 7
    %v4579 = vsub.s32 %v3299, %v4578
    %v4580 = vrot.slane %v2889, %v4579
    %v4581 = vsel %vm3304, %v4580, %v4576
    %v4582 = vlaneseq
    %v4583 = vshrl.u32 %v4582, 7
    %v4584 = vsub.s32 %v3306, %v4583
    %v4585 = vrot.slane %v2892, %v4584
    %v4586 = vsel %vm3311, %v4585, %v4581
    %v4587 = vlaneseq
    %v4588 = vshrl.u32 %v4587, 7
    %v4589 = vsub.s32 %v3313, %v4588
    %v4590 = vrot.slane %v2895, %v4589
    %v4591 = vsel %vm3318, %v4590, %v4586
    %v4592 = vlaneseq
    %v4593 = vshrl.u32 %v4592, 7
    %v4594 = vsub.s32 %v3287, %v4593
    %v4595 = vrot.slane %v2898, %v4594
    %v4596 = vlaneseq
    %v4597 = vshrl.u32 %v4596, 7
    %v4598 = vsub.s32 %v3292, %v4597
    %v4599 = vrot.slane %v2901, %v4598
    %v4600 = vsel %vm3297, %v4599, %v4595
    %v4601 = vlaneseq
    %v4602 = vshrl.u32 %v4601, 7
    %v4603 = vsub.s32 %v3299, %v4602
    %v4604 = vrot.slane %v2904, %v4603
    %v4605 = vsel %vm3304, %v4604, %v4600
    %v4606 = vlaneseq
    %v4607 = vshrl.u32 %v4606, 7
    %v4608 = vsub.s32 %v3306, %v4607
    %v4609 = vrot.slane %v2907, %v4608
    %v4610 = vsel %vm3311, %v4609, %v4605
    %v4611 = vlaneseq
    %v4612 = vshrl.u32 %v4611, 7
    %v4613 = vsub.s32 %v3313, %v4612
    %v4614 = vrot.slane %v2910, %v4613
    %v4615 = vsel %vm3318, %v4614, %v4610
    %v4616 = vlaneseq
    %v4617 = vshrl.u32 %v4616, 7
    %v4618 = vsub.s32 %v3287, %v4617
    %v4619 = vrot.slane %v2913, %v4618
    %v4620 = vlaneseq
    %v4621 = vshrl.u32 %v4620, 7
    %v4622 = vsub.s32 %v3292, %v4621
    %v4623 = vrot.slane %v2916, %v4622
    %v4624 = vsel %vm3297, %v4623, %v4619
    %v4625 = vlaneseq
    %v4626 = vshrl.u32 %v4625, 7
    %v4627 = vsub.s32 %v3299, %v4626
    %v4628 = vrot.slane %v2919, %v4627
    %v4629 = vsel %vm3304, %v4628, %v4624
    %v4630 = vlaneseq
    %v4631 = vshrl.u32 %v4630, 7
    %v4632 = vsub.s32 %v3306, %v4631
    %v4633 = vrot.slane %v2922, %v4632
    %v4634 = vsel %vm3311, %v4633, %v4629
    %v4635 = vlaneseq
    %v4636 = vshrl.u32 %v4635, 7
    %v4637 = vsub.s32 %v3313, %v4636
    %v4638 = vrot.slane %v2925, %v4637
    %v4639 = vsel %vm3318, %v4638, %v4634
    %v4640 = vlaneseq
    %v4641 = vshrl.u32 %v4640, 7
    %v4642 = vsub.s32 %v3287, %v4641
    %v4643 = vrot.slane %v2928, %v4642
    %v4644 = vlaneseq
    %v4645 = vshrl.u32 %v4644, 7
    %v4646 = vsub.s32 %v3292, %v4645
    %v4647 = vrot.slane %v2931, %v4646
    %v4648 = vsel %vm3297, %v4647, %v4643
    %v4649 = vlaneseq
    %v4650 = vshrl.u32 %v4649, 7
    %v4651 = vsub.s32 %v3299, %v4650
    %v4652 = vrot.slane %v2934, %v4651
    %v4653 = vsel %vm3304, %v4652, %v4648
    %v4654 = vlaneseq
    %v4655 = vshrl.u32 %v4654, 7
    %v4656 = vsub.s32 %v3306, %v4655
    %v4657 = vrot.slane %v2937, %v4656
    %v4658 = vsel %vm3311, %v4657, %v4653
    %v4659 = vlaneseq
    %v4660 = vshrl.u32 %v4659, 7
    %v4661 = vsub.s32 %v3313, %v4660
    %v4662 = vrot.slane %v2940, %v4661
    %v4663 = vsel %vm3318, %v4662, %v4658
    %v4664 = vlaneseq
    %v4665 = vshrl.u32 %v4664, 7
    %v4666 = vsub.s32 %v3287, %v4665
    %v4667 = vrot.slane %v2943, %v4666
    %v4668 = vlaneseq
    %v4669 = vshrl.u32 %v4668, 7
    %v4670 = vsub.s32 %v3292, %v4669
    %v4671 = vrot.slane %v2946, %v4670
    %v4672 = vsel %vm3297, %v4671, %v4667
    %v4673 = vlaneseq
    %v4674 = vshrl.u32 %v4673, 7
    %v4675 = vsub.s32 %v3299, %v4674
    %v4676 = vrot.slane %v2949, %v4675
    %v4677 = vsel %vm3304, %v4676, %v4672
    %v4678 = vlaneseq
    %v4679 = vshrl.u32 %v4678, 7
    %v4680 = vsub.s32 %v3306, %v4679
    %v4681 = vrot.slane %v2952, %v4680
    %v4682 = vsel %vm3311, %v4681, %v4677
    %v4683 = vlaneseq
    %v4684 = vshrl.u32 %v4683, 7
    %v4685 = vsub.s32 %v3313, %v4684
    %v4686 = vrot.slane %v2955, %v4685
    %v4687 = vsel %vm3318, %v4686, %v4682
    %v4688 = vlaneseq
    %v4689 = vshrl.u32 %v4688, 7
    %v4690 = vsub.s32 %v3287, %v4689
    %v4691 = vrot.slane %v2958, %v4690
    %v4692 = vlaneseq
    %v4693 = vshrl.u32 %v4692, 7
    %v4694 = vsub.s32 %v3292, %v4693
    %v4695 = vrot.slane %v2961, %v4694
    %v4696 = vsel %vm3297, %v4695, %v4691
    %v4697 = vlaneseq
    %v4698 = vshrl.u32 %v4697, 7
    %v4699 = vsub.s32 %v3299, %v4698
    %v4700 = vrot.slane %v2964, %v4699
    %v4701 = vsel %vm3304, %v4700, %v4696
    %v4702 = vlaneseq
    %v4703 = vshrl.u32 %v4702, 7
    %v4704 = vsub.s32 %v3306, %v4703
    %v4705 = vrot.slane %v2967, %v4704
    %v4706 = vsel %vm3311, %v4705, %v4701
    %v4707 = vlaneseq
    %v4708 = vshrl.u32 %v4707, 7
    %v4709 = vsub.s32 %v3313, %v4708
    %v4710 = vrot.slane %v2970, %v4709
    %v4711 = vsel %vm3318, %v4710, %v4706
    %v4712 = vlaneseq
    %v4713 = vshrl.u32 %v4712, 7
    %v4714 = vsub.s32 %v3287, %v4713
    %v4715 = vrot.slane %v2973, %v4714
    %v4716 = vlaneseq
    %v4717 = vshrl.u32 %v4716, 7
    %v4718 = vsub.s32 %v3292, %v4717
    %v4719 = vrot.slane %v2976, %v4718
    %v4720 = vsel %vm3297, %v4719, %v4715
    %v4721 = vlaneseq
    %v4722 = vshrl.u32 %v4721, 7
    %v4723 = vsub.s32 %v3299, %v4722
    %v4724 = vrot.slane %v2979, %v4723
    %v4725 = vsel %vm3304, %v4724, %v4720
    %v4726 = vlaneseq
    %v4727 = vshrl.u32 %v4726, 7
    %v4728 = vsub.s32 %v3306, %v4727
    %v4729 = vrot.slane %v2982, %v4728
    %v4730 = vsel %vm3311, %v4729, %v4725
    %v4731 = vlaneseq
    %v4732 = vshrl.u32 %v4731, 7
    %v4733 = vsub.s32 %v3313, %v4732
    %v4734 = vrot.slane %v2985, %v4733
    %v4735 = vsel %vm3318, %v4734, %v4730
    %v4736 = vlaneseq
    %v4737 = vshrl.u32 %v4736, 7
    %v4738 = vsub.s32 %v3287, %v4737
    %v4739 = vrot.slane %v2988, %v4738
    %v4740 = vlaneseq
    %v4741 = vshrl.u32 %v4740, 7
    %v4742 = vsub.s32 %v3292, %v4741
    %v4743 = vrot.slane %v2991, %v4742
    %v4744 = vsel %vm3297, %v4743, %v4739
    %v4745 = vlaneseq
    %v4746 = vshrl.u32 %v4745, 7
    %v4747 = vsub.s32 %v3299, %v4746
    %v4748 = vrot.slane %v2994, %v4747
    %v4749 = vsel %vm3304, %v4748, %v4744
    %v4750 = vlaneseq
    %v4751 = vshrl.u32 %v4750, 7
    %v4752 = vsub.s32 %v3306, %v4751
    %v4753 = vrot.slane %v2997, %v4752
    %v4754 = vsel %vm3311, %v4753, %v4749
    %v4755 = vlaneseq
    %v4756 = vshrl.u32 %v4755, 7
    %v4757 = vsub.s32 %v3313, %v4756
    %v4758 = vrot.slane %v3000, %v4757
    %v4759 = vsel %vm3318, %v4758, %v4754
    %v4760 = vlaneseq
    %v4761 = vshrl.u32 %v4760, 7
    %v4762 = vsub.s32 %v3287, %v4761
    %v4763 = vrot.slane %v3003, %v4762
    %v4764 = vlaneseq
    %v4765 = vshrl.u32 %v4764, 7
    %v4766 = vsub.s32 %v3292, %v4765
    %v4767 = vrot.slane %v3006, %v4766
    %v4768 = vsel %vm3297, %v4767, %v4763
    %v4769 = vlaneseq
    %v4770 = vshrl.u32 %v4769, 7
    %v4771 = vsub.s32 %v3299, %v4770
    %v4772 = vrot.slane %v3009, %v4771
    %v4773 = vsel %vm3304, %v4772, %v4768
    %v4774 = vlaneseq
    %v4775 = vshrl.u32 %v4774, 7
    %v4776 = vsub.s32 %v3306, %v4775
    %v4777 = vrot.slane %v3012, %v4776
    %v4778 = vsel %vm3311, %v4777, %v4773
    %v4779 = vlaneseq
    %v4780 = vshrl.u32 %v4779, 7
    %v4781 = vsub.s32 %v3313, %v4780
    %v4782 = vrot.slane %v3015, %v4781
    %v4783 = vsel %vm3318, %v4782, %v4778
    %v4784 = vlaneseq
    %v4785 = vshrl.u32 %v4784, 7
    %v4786 = vsub.s32 %v3287, %v4785
    %v4787 = vrot.slane %v3018, %v4786
    %v4788 = vlaneseq
    %v4789 = vshrl.u32 %v4788, 7
    %v4790 = vsub.s32 %v3292, %v4789
    %v4791 = vrot.slane %v3021, %v4790
    %v4792 = vsel %vm3297, %v4791, %v4787
    %v4793 = vlaneseq
    %v4794 = vshrl.u32 %v4793, 7
    %v4795 = vsub.s32 %v3299, %v4794
    %v4796 = vrot.slane %v3024, %v4795
    %v4797 = vsel %vm3304, %v4796, %v4792
    %v4798 = vlaneseq
    %v4799 = vshrl.u32 %v4798, 7
    %v4800 = vsub.s32 %v3306, %v4799
    %v4801 = vrot.slane %v3027, %v4800
    %v4802 = vsel %vm3311, %v4801, %v4797
    %v4803 = vlaneseq
    %v4804 = vshrl.u32 %v4803, 7
    %v4805 = vsub.s32 %v3313, %v4804
    %v4806 = vrot.slane %v3030, %v4805
    %v4807 = vsel %vm3318, %v4806, %v4802
    %v4808 = vlaneseq
    %v4809 = vshrl.u32 %v4808, 7
    %v4810 = vsub.s32 %v3287, %v4809
    %v4811 = vrot.slane %v3033, %v4810
    %v4812 = vlaneseq
    %v4813 = vshrl.u32 %v4812, 7
    %v4814 = vsub.s32 %v3292, %v4813
    %v4815 = vrot.slane %v3036, %v4814
    %v4816 = vsel %vm3297, %v4815, %v4811
    %v4817 = vlaneseq
    %v4818 = vshrl.u32 %v4817, 7
    %v4819 = vsub.s32 %v3299, %v4818
    %v4820 = vrot.slane %v3039, %v4819
    %v4821 = vsel %vm3304, %v4820, %v4816
    %v4822 = vlaneseq
    %v4823 = vshrl.u32 %v4822, 7
    %v4824 = vsub.s32 %v3306, %v4823
    %v4825 = vrot.slane %v3042, %v4824
    %v4826 = vsel %vm3311, %v4825, %v4821
    %v4827 = vlaneseq
    %v4828 = vshrl.u32 %v4827, 7
    %v4829 = vsub.s32 %v3313, %v4828
    %v4830 = vrot.slane %v3045, %v4829
    %v4831 = vsel %vm3318, %v4830, %v4826
    %v4832 = vlaneseq
    %v4833 = vshrl.u32 %v4832, 7
    %v4834 = vsub.s32 %v3287, %v4833
    %v4835 = vrot.slane %v3048, %v4834
    %v4836 = vlaneseq
    %v4837 = vshrl.u32 %v4836, 7
    %v4838 = vsub.s32 %v3292, %v4837
    %v4839 = vrot.slane %v3051, %v4838
    %v4840 = vsel %vm3297, %v4839, %v4835
    %v4841 = vlaneseq
    %v4842 = vshrl.u32 %v4841, 7
    %v4843 = vsub.s32 %v3299, %v4842
    %v4844 = vrot.slane %v3054, %v4843
    %v4845 = vsel %vm3304, %v4844, %v4840
    %v4846 = vlaneseq
    %v4847 = vshrl.u32 %v4846, 7
    %v4848 = vsub.s32 %v3306, %v4847
    %v4849 = vrot.slane %v3057, %v4848
    %v4850 = vsel %vm3311, %v4849, %v4845
    %v4851 = vlaneseq
    %v4852 = vshrl.u32 %v4851, 7
    %v4853 = vsub.s32 %v3313, %v4852
    %v4854 = vrot.slane %v3060, %v4853
    %v4855 = vsel %vm3318, %v4854, %v4850
    %v4856 = vlaneseq
    %v4857 = vshrl.u32 %v4856, 7
    %v4858 = vsub.s32 %v3287, %v4857
    %v4859 = vrot.slane %v3063, %v4858
    %v4860 = vlaneseq
    %v4861 = vshrl.u32 %v4860, 7
    %v4862 = vsub.s32 %v3292, %v4861
    %v4863 = vrot.slane %v3066, %v4862
    %v4864 = vsel %vm3297, %v4863, %v4859
    %v4865 = vlaneseq
    %v4866 = vshrl.u32 %v4865, 7
    %v4867 = vsub.s32 %v3299, %v4866
    %v4868 = vrot.slane %v3069, %v4867
    %v4869 = vsel %vm3304, %v4868, %v4864
    %v4870 = vlaneseq
    %v4871 = vshrl.u32 %v4870, 7
    %v4872 = vsub.s32 %v3306, %v4871
    %v4873 = vrot.slane %v3072, %v4872
    %v4874 = vsel %vm3311, %v4873, %v4869
    %v4875 = vlaneseq
    %v4876 = vshrl.u32 %v4875, 7
    %v4877 = vsub.s32 %v3313, %v4876
    %v4878 = vrot.slane %v3075, %v4877
    %v4879 = vsel %vm3318, %v4878, %v4874
    %v4880 = vlaneseq
    %v4881 = vshrl.u32 %v4880, 7
    %v4882 = vsub.s32 %v3287, %v4881
    %v4883 = vrot.slane %v3078, %v4882
    %v4884 = vlaneseq
    %v4885 = vshrl.u32 %v4884, 7
    %v4886 = vsub.s32 %v3292, %v4885
    %v4887 = vrot.slane %v3081, %v4886
    %v4888 = vsel %vm3297, %v4887, %v4883
    %v4889 = vlaneseq
    %v4890 = vshrl.u32 %v4889, 7
    %v4891 = vsub.s32 %v3299, %v4890
    %v4892 = vrot.slane %v3084, %v4891
    %v4893 = vsel %vm3304, %v4892, %v4888
    %v4894 = vlaneseq
    %v4895 = vshrl.u32 %v4894, 7
    %v4896 = vsub.s32 %v3306, %v4895
    %v4897 = vrot.slane %v3087, %v4896
    %v4898 = vsel %vm3311, %v4897, %v4893
    %v4899 = vlaneseq
    %v4900 = vshrl.u32 %v4899, 7
    %v4901 = vsub.s32 %v3313, %v4900
    %v4902 = vrot.slane %v3090, %v4901
    %v4903 = vsel %vm3318, %v4902, %v4898
    %v4904 = vlaneseq
    %v4905 = vshrl.u32 %v4904, 7
    %v4906 = vsub.s32 %v3287, %v4905
    %v4907 = vrot.slane %v3093, %v4906
    %v4908 = vlaneseq
    %v4909 = vshrl.u32 %v4908, 7
    %v4910 = vsub.s32 %v3292, %v4909
    %v4911 = vrot.slane %v3096, %v4910
    %v4912 = vsel %vm3297, %v4911, %v4907
    %v4913 = vlaneseq
    %v4914 = vshrl.u32 %v4913, 7
    %v4915 = vsub.s32 %v3299, %v4914
    %v4916 = vrot.slane %v3099, %v4915
    %v4917 = vsel %vm3304, %v4916, %v4912
    %v4918 = vlaneseq
    %v4919 = vshrl.u32 %v4918, 7
    %v4920 = vsub.s32 %v3306, %v4919
    %v4921 = vrot.slane %v3102, %v4920
    %v4922 = vsel %vm3311, %v4921, %v4917
    %v4923 = vlaneseq
    %v4924 = vshrl.u32 %v4923, 7
    %v4925 = vsub.s32 %v3313, %v4924
    %v4926 = vrot.slane %v3105, %v4925
    %v4927 = vsel %vm3318, %v4926, %v4922
    %v4928 = vlaneseq
    %v4929 = vshrl.u32 %v4928, 7
    %v4930 = vsub.s32 %v3287, %v4929
    %v4931 = vrot.slane %v3108, %v4930
    %v4932 = vlaneseq
    %v4933 = vshrl.u32 %v4932, 7
    %v4934 = vsub.s32 %v3292, %v4933
    %v4935 = vrot.slane %v3111, %v4934
    %v4936 = vsel %vm3297, %v4935, %v4931
    %v4937 = vlaneseq
    %v4938 = vshrl.u32 %v4937, 7
    %v4939 = vsub.s32 %v3299, %v4938
    %v4940 = vrot.slane %v3114, %v4939
    %v4941 = vsel %vm3304, %v4940, %v4936
    %v4942 = vlaneseq
    %v4943 = vshrl.u32 %v4942, 7
    %v4944 = vsub.s32 %v3306, %v4943
    %v4945 = vrot.slane %v3117, %v4944
    %v4946 = vsel %vm3311, %v4945, %v4941
    %v4947 = vlaneseq
    %v4948 = vshrl.u32 %v4947, 7
    %v4949 = vsub.s32 %v3313, %v4948
    %v4950 = vrot.slane %v3120, %v4949
    %v4951 = vsel %vm3318, %v4950, %v4946
    %v4952 = vlaneseq
    %v4953 = vshrl.u32 %v4952, 7
    %v4954 = vsub.s32 %v3287, %v4953
    %v4955 = vrot.slane %v3123, %v4954
    %v4956 = vlaneseq
    %v4957 = vshrl.u32 %v4956, 7
    %v4958 = vsub.s32 %v3292, %v4957
    %v4959 = vrot.slane %v3126, %v4958
    %v4960 = vsel %vm3297, %v4959, %v4955
    %v4961 = vlaneseq
    %v4962 = vshrl.u32 %v4961, 7
    %v4963 = vsub.s32 %v3299, %v4962
    %v4964 = vrot.slane %v3129, %v4963
    %v4965 = vsel %vm3304, %v4964, %v4960
    %v4966 = vlaneseq
    %v4967 = vshrl.u32 %v4966, 7
    %v4968 = vsub.s32 %v3306, %v4967
    %v4969 = vrot.slane %v3132, %v4968
    %v4970 = vsel %vm3311, %v4969, %v4965
    %v4971 = vlaneseq
    %v4972 = vshrl.u32 %v4971, 7
    %v4973 = vsub.s32 %v3313, %v4972
    %v4974 = vrot.slane %v3135, %v4973
    %v4975 = vsel %vm3318, %v4974, %v4970
    %v4976 = vlaneseq
    %v4977 = vshrl.u32 %v4976, 7
    %v4978 = vsub.s32 %v3287, %v4977
    %v4979 = vrot.slane %v3138, %v4978
    %v4980 = vlaneseq
    %v4981 = vshrl.u32 %v4980, 7
    %v4982 = vsub.s32 %v3292, %v4981
    %v4983 = vrot.slane %v3141, %v4982
    %v4984 = vsel %vm3297, %v4983, %v4979
    %v4985 = vlaneseq
    %v4986 = vshrl.u32 %v4985, 7
    %v4987 = vsub.s32 %v3299, %v4986
    %v4988 = vrot.slane %v3144, %v4987
    %v4989 = vsel %vm3304, %v4988, %v4984
    %v4990 = vlaneseq
    %v4991 = vshrl.u32 %v4990, 7
    %v4992 = vsub.s32 %v3306, %v4991
    %v4993 = vrot.slane %v3147, %v4992
    %v4994 = vsel %vm3311, %v4993, %v4989
    %v4995 = vlaneseq
    %v4996 = vshrl.u32 %v4995, 7
    %v4997 = vsub.s32 %v3313, %v4996
    %v4998 = vrot.slane %v3150, %v4997
    %v4999 = vsel %vm3318, %v4998, %v4994
    %v5000 = vlaneseq
    %v5001 = vshrl.u32 %v5000, 7
    %v5002 = vsub.s32 %v3287, %v5001
    %v5003 = vrot.slane %v3153, %v5002
    %v5004 = vlaneseq
    %v5005 = vshrl.u32 %v5004, 7
    %v5006 = vsub.s32 %v3292, %v5005
    %v5007 = vrot.slane %v3156, %v5006
    %v5008 = vsel %vm3297, %v5007, %v5003
    %v5009 = vlaneseq
    %v5010 = vshrl.u32 %v5009, 7
    %v5011 = vsub.s32 %v3299, %v5010
    %v5012 = vrot.slane %v3159, %v5011
    %v5013 = vsel %vm3304, %v5012, %v5008
    %v5014 = vlaneseq
    %v5015 = vshrl.u32 %v5014, 7
    %v5016 = vsub.s32 %v3306, %v5015
    %v5017 = vrot.slane %v3162, %v5016
    %v5018 = vsel %vm3311, %v5017, %v5013
    %v5019 = vlaneseq
    %v5020 = vshrl.u32 %v5019, 7
    %v5021 = vsub.s32 %v3313, %v5020
    %v5022 = vrot.slane %v3165, %v5021
    %v5023 = vsel %vm3318, %v5022, %v5018
    %v5024 = vlaneseq
    %v5025 = vshrl.u32 %v5024, 7
    %v5026 = vsub.s32 %v3287, %v5025
    %v5027 = vrot.slane %v3168, %v5026
    %v5028 = vlaneseq
    %v5029 = vshrl.u32 %v5028, 7
    %v5030 = vsub.s32 %v3292, %v5029
    %v5031 = vrot.slane %v3171, %v5030
    %v5032 = vsel %vm3297, %v5031, %v5027
    %v5033 = vlaneseq
    %v5034 = vshrl.u32 %v5033, 7
    %v5035 = vsub.s32 %v3299, %v5034
    %v5036 = vrot.slane %v3174, %v5035
    %v5037 = vsel %vm3304, %v5036, %v5032
    %v5038 = vlaneseq
    %v5039 = vshrl.u32 %v5038, 7
    %v5040 = vsub.s32 %v3306, %v5039
    %v5041 = vrot.slane %v3177, %v5040
    %v5042 = vsel %vm3311, %v5041, %v5037
    %v5043 = vlaneseq
    %v5044 = vshrl.u32 %v5043, 7
    %v5045 = vsub.s32 %v3313, %v5044
    %v5046 = vrot.slane %v3180, %v5045
    %v5047 = vsel %vm3318, %v5046, %v5042
    %v5048 = vlaneseq
    %v5049 = vshrl.u32 %v5048, 7
    %v5050 = vsub.s32 %v3287, %v5049
    %v5051 = vrot.slane %v3183, %v5050
    %v5052 = vlaneseq
    %v5053 = vshrl.u32 %v5052, 7
    %v5054 = vsub.s32 %v3292, %v5053
    %v5055 = vrot.slane %v3186, %v5054
    %v5056 = vsel %vm3297, %v5055, %v5051
    %v5057 = vlaneseq
    %v5058 = vshrl.u32 %v5057, 7
    %v5059 = vsub.s32 %v3299, %v5058
    %v5060 = vrot.slane %v3189, %v5059
    %v5061 = vsel %vm3304, %v5060, %v5056
    %v5062 = vlaneseq
    %v5063 = vshrl.u32 %v5062, 7
    %v5064 = vsub.s32 %v3306, %v5063
    %v5065 = vrot.slane %v3192, %v5064
    %v5066 = vsel %vm3311, %v5065, %v5061
    %v5067 = vlaneseq
    %v5068 = vshrl.u32 %v5067, 7
    %v5069 = vsub.s32 %v3313, %v5068
    %v5070 = vrot.slane %v3195, %v5069
    %v5071 = vsel %vm3318, %v5070, %v5066
    %v5072 = vlaneseq
    %v5073 = vshrl.u32 %v5072, 7
    %v5074 = vsub.s32 %v3287, %v5073
    %v5075 = vrot.slane %v3198, %v5074
    %v5076 = vlaneseq
    %v5077 = vshrl.u32 %v5076, 7
    %v5078 = vsub.s32 %v3292, %v5077
    %v5079 = vrot.slane %v3201, %v5078
    %v5080 = vsel %vm3297, %v5079, %v5075
    %v5081 = vlaneseq
    %v5082 = vshrl.u32 %v5081, 7
    %v5083 = vsub.s32 %v3299, %v5082
    %v5084 = vrot.slane %v3204, %v5083
    %v5085 = vsel %vm3304, %v5084, %v5080
    %v5086 = vlaneseq
    %v5087 = vshrl.u32 %v5086, 7
    %v5088 = vsub.s32 %v3306, %v5087
    %v5089 = vrot.slane %v3207, %v5088
    %v5090 = vsel %vm3311, %v5089, %v5085
    %v5091 = vlaneseq
    %v5092 = vshrl.u32 %v5091, 7
    %v5093 = vsub.s32 %v3313, %v5092
    %v5094 = vrot.slane %v3210, %v5093
    %v5095 = vsel %vm3318, %v5094, %v5090
    %v5096 = vlaneseq
    %v5097 = vshrl.u32 %v5096, 7
    %v5098 = vsub.s32 %v3287, %v5097
    %v5099 = vrot.slane %v3213, %v5098
    %v5100 = vlaneseq
    %v5101 = vshrl.u32 %v5100, 7
    %v5102 = vsub.s32 %v3292, %v5101
    %v5103 = vrot.slane %v3216, %v5102
    %v5104 = vsel %vm3297, %v5103, %v5099
    %v5105 = vlaneseq
    %v5106 = vshrl.u32 %v5105, 7
    %v5107 = vsub.s32 %v3299, %v5106
    %v5108 = vrot.slane %v3219, %v5107
    %v5109 = vsel %vm3304, %v5108, %v5104
    %v5110 = vlaneseq
    %v5111 = vshrl.u32 %v5110, 7
    %v5112 = vsub.s32 %v3306, %v5111
    %v5113 = vrot.slane %v3222, %v5112
    %v5114 = vsel %vm3311, %v5113, %v5109
    %v5115 = vlaneseq
    %v5116 = vshrl.u32 %v5115, 7
    %v5117 = vsub.s32 %v3313, %v5116
    %v5118 = vrot.slane %v3225, %v5117
    %v5119 = vsel %vm3318, %v5118, %v5114
    %v5120 = vlaneseq
    %v5121 = vshrl.u32 %v5120, 7
    %v5122 = vsub.s32 %v3287, %v5121
    %v5123 = vrot.slane %v3228, %v5122
    %v5124 = vlaneseq
    %v5125 = vshrl.u32 %v5124, 7
    %v5126 = vsub.s32 %v3292, %v5125
    %v5127 = vrot.slane %v3231, %v5126
    %v5128 = vsel %vm3297, %v5127, %v5123
    %v5129 = vlaneseq
    %v5130 = vshrl.u32 %v5129, 7
    %v5131 = vsub.s32 %v3299, %v5130
    %v5132 = vrot.slane %v3234, %v5131
    %v5133 = vsel %vm3304, %v5132, %v5128
    %v5134 = vlaneseq
    %v5135 = vshrl.u32 %v5134, 7
    %v5136 = vsub.s32 %v3306, %v5135
    %v5137 = vrot.slane %v3237, %v5136
    %v5138 = vsel %vm3311, %v5137, %v5133
    %v5139 = vlaneseq
    %v5140 = vshrl.u32 %v5139, 7
    %v5141 = vsub.s32 %v3313, %v5140
    %v5142 = vrot.slane %v3240, %v5141
    %v5143 = vsel %vm3318, %v5142, %v5138
    %v5144 = vlaneseq
    %v5145 = vshrl.u32 %v5144, 7
    %v5146 = vsub.s32 %v3287, %v5145
    %v5147 = vrot.slane %v3243, %v5146
    %v5148 = vlaneseq
    %v5149 = vshrl.u32 %v5148, 7
    %v5150 = vsub.s32 %v3292, %v5149
    %v5151 = vrot.slane %v3246, %v5150
    %v5152 = vsel %vm3297, %v5151, %v5147
    %v5153 = vlaneseq
    %v5154 = vshrl.u32 %v5153, 7
    %v5155 = vsub.s32 %v3299, %v5154
    %v5156 = vrot.slane %v3249, %v5155
    %v5157 = vsel %vm3304, %v5156, %v5152
    %v5158 = vlaneseq
    %v5159 = vshrl.u32 %v5158, 7
    %v5160 = vsub.s32 %v3306, %v5159
    %v5161 = vrot.slane %v3252, %v5160
    %v5162 = vsel %vm3311, %v5161, %v5157
    %v5163 = vlaneseq
    %v5164 = vshrl.u32 %v5163, 7
    %v5165 = vsub.s32 %v3313, %v5164
    %v5166 = vrot.slane %v3255, %v5165
    %v5167 = vsel %vm3318, %v5166, %v5162
    %v5168 = vlaneseq
    %v5169 = vshrl.u32 %v5168, 7
    %v5170 = vsub.s32 %v3287, %v5169
    %v5171 = vrot.slane %v3258, %v5170
    %v5172 = vlaneseq
    %v5173 = vshrl.u32 %v5172, 7
    %v5174 = vsub.s32 %v3292, %v5173
    %v5175 = vrot.slane %v3261, %v5174
    %v5176 = vsel %vm3297, %v5175, %v5171
    %v5177 = vlaneseq
    %v5178 = vshrl.u32 %v5177, 7
    %v5179 = vsub.s32 %v3299, %v5178
    %v5180 = vrot.slane %v3264, %v5179
    %v5181 = vsel %vm3304, %v5180, %v5176
    %v5182 = vlaneseq
    %v5183 = vshrl.u32 %v5182, 7
    %v5184 = vsub.s32 %v3306, %v5183
    %v5185 = vrot.slane %v3267, %v5184
    %v5186 = vsel %vm3311, %v5185, %v5181
    %v5187 = vlaneseq
    %v5188 = vshrl.u32 %v5187, 7
    %v5189 = vsub.s32 %v3313, %v5188
    %v5190 = vrot.slane %v3270, %v5189
    %v5191 = vsel %vm3318, %v5190, %v5186
    %v5192 = vlaneseq
    %v5193 = vshrl.u32 %v5192, 7
    %v5194 = vsub.s32 %v3287, %v5193
    %v5195 = vrot.slane %v3273, %v5194
    %v5196 = vlaneseq
    %v5197 = vshrl.u32 %v5196, 7
    %v5198 = vsub.s32 %v3292, %v5197
    %v5199 = vrot.slane %v3276, %v5198
    %v5200 = vsel %vm3297, %v5199, %v5195
    %v5201 = vlaneseq
    %v5202 = vshrl.u32 %v5201, 7
    %v5203 = vsub.s32 %v3299, %v5202
    %v5204 = vrot.slane %v3279, %v5203
    %v5205 = vsel %vm3304, %v5204, %v5200
    %v5206 = vlaneseq
    %v5207 = vshrl.u32 %v5206, 7
    %v5208 = vsub.s32 %v3306, %v5207
    %v5209 = vrot.slane %v3282, %v5208
    %v5210 = vsel %vm3311, %v5209, %v5205
    %v5211 = vlaneseq
    %v5212 = vshrl.u32 %v5211, 7
    %v5213 = vsub.s32 %v3313, %v5212
    %v5214 = vrot.slane %v3285, %v5213
    %v5215 = vsel %vm3318, %v5214, %v5210
    %vm5216 = vcmask 1041409
    %v5217 = vsel %vm5216, %v3343, %v3319
    %vm5218 = vcmask 1042434
    %v5219 = vsel %vm5218, %v3367, %v5217
    %vm5220 = vcmask 1043459
    %v5221 = vsel %vm5220, %v3391, %v5219
    %vm5222 = vcmask 1044484
    %v5223 = vsel %vm5222, %v3415, %v5221
    %vm5224 = vcmask 1045509
    %v5225 = vsel %vm5224, %v3439, %v5223
    %vm5226 = vcmask 1046534
    %v5227 = vsel %vm5226, %v3463, %v5225
    %vm5228 = vcmask 1047559
    %v5229 = vsel %vm5228, %v3487, %v5227
    %v5230 = vsel %vm5216, %v3535, %v3511
    %v5231 = vsel %vm5218, %v3559, %v5230
    %v5232 = vsel %vm5220, %v3583, %v5231
    %v5233 = vsel %vm5222, %v3607, %v5232
    %v5234 = vsel %vm5224, %v3631, %v5233
    %v5235 = vsel %vm5226, %v3655, %v5234
    %v5236 = vsel %vm5228, %v3679, %v5235
    %v5237 = vsel %vm5216, %v3727, %v3703
    %v5238 = vsel %vm5218, %v3751, %v5237
    %v5239 = vsel %vm5220, %v3775, %v5238
    %v5240 = vsel %vm5222, %v3799, %v5239
    %v5241 = vsel %vm5224, %v3823, %v5240
    %v5242 = vsel %vm5226, %v3847, %v5241
    %v5243 = vsel %vm5228, %v3871, %v5242
    %v5244 = vsel %vm5216, %v3919, %v3895
    %v5245 = vsel %vm5218, %v3943, %v5244
    %v5246 = vsel %vm5220, %v3967, %v5245
    %v5247 = vsel %vm5222, %v3991, %v5246
    %v5248 = vsel %vm5224, %v4015, %v5247
    %v5249 = vsel %vm5226, %v4039, %v5248
    %v5250 = vsel %vm5228, %v4063, %v5249
    %v5251 = vsel %vm5216, %v4111, %v4087
    %v5252 = vsel %vm5218, %v4135, %v5251
    %v5253 = vsel %vm5220, %v4159, %v5252
    %v5254 = vsel %vm5222, %v4183, %v5253
    %v5255 = vsel %vm5224, %v4207, %v5254
    %v5256 = vsel %vm5226, %v4231, %v5255
    %v5257 = vsel %vm5228, %v4255, %v5256
    %v5258 = vsel %vm5216, %v4303, %v4279
    %v5259 = vsel %vm5218, %v4327, %v5258
    %v5260 = vsel %vm5220, %v4351, %v5259
    %v5261 = vsel %vm5222, %v4375, %v5260
    %v5262 = vsel %vm5224, %v4399, %v5261
    %v5263 = vsel %vm5226, %v4423, %v5262
    %v5264 = vsel %vm5228, %v4447, %v5263
    %v5265 = vsel %vm5216, %v4495, %v4471
    %v5266 = vsel %vm5218, %v4519, %v5265
    %v5267 = vsel %vm5220, %v4543, %v5266
    %v5268 = vsel %vm5222, %v4567, %v5267
    %v5269 = vsel %vm5224, %v4591, %v5268
    %v5270 = vsel %vm5226, %v4615, %v5269
    %v5271 = vsel %vm5228, %v4639, %v5270
    %v5272 = vsel %vm5216, %v4687, %v4663
    %v5273 = vsel %vm5218, %v4711, %v5272
    %v5274 = vsel %vm5220, %v4735, %v5273
    %v5275 = vsel %vm5222, %v4759, %v5274
    %v5276 = vsel %vm5224, %v4783, %v5275
    %v5277 = vsel %vm5226, %v4807, %v5276
    %v5278 = vsel %vm5228, %v4831, %v5277
    %v5279 = vsel %vm5216, %v4879, %v4855
    %v5280 = vsel %vm5218, %v4903, %v5279
    %v5281 = vsel %vm5220, %v4927, %v5280
    %v5282 = vsel %vm5222, %v4951, %v5281
    %v5283 = vsel %vm5224, %v4975, %v5282
    %v5284 = vsel %vm5226, %v4999, %v5283
    %v5285 = vsel %vm5228, %v5023, %v5284
    %v5286 = vsel %vm5216, %v5071, %v5047
    %v5287 = vsel %vm5218, %v5095, %v5286
    %v5288 = vsel %vm5220, %v5119, %v5287
    %v5289 = vsel %vm5222, %v5143, %v5288
    %v5290 = vsel %vm5224, %v5167, %v5289
    %v5291 = vsel %vm5226, %v5191, %v5290
    %v5292 = vsel %vm5228, %v5215, %v5291
    %vm5303 = vcmask 326656
    %v5304 = vsel %vm5303, %v5229, 0.0
    %5305 = vadd.xlane.f32.xlu0 %v5304
    %v5306 = vpop.xlane.xlu0 %5305
    %v5307 = vsel %vm5303, %v5236, 0.0
    %5308 = vadd.xlane.f32.xlu0 %v5307
    %v5309 = vpop.xlane.xlu0 %5308
    %v5310 = vsel %vm5303, %v5243, 0.0
    %5311 = vadd.xlane.f32.xlu0 %v5310
    %v5312 = vpop.xlane.xlu0 %5311
    %v5313 = vsel %vm5303, %v5250, 0.0
    %5314 = vadd.xlane.f32.xlu0 %v5313
    %v5315 = vpop.xlane.xlu0 %5314
    %v5316 = vsel %vm5303, %v5257, 0.0
    %5317 = vadd.xlane.f32.xlu0 %v5316
    %v5318 = vpop.xlane.xlu0 %5317
    %v5319 = vsel %vm5303, %v5264, 0.0
    %5320 = vadd.xlane.f32.xlu0 %v5319
    %v5321 = vpop.xlane.xlu0 %5320
    %v5322 = vsel %vm5303, %v5271, 0.0
    %5323 = vadd.xlane.f32.xlu0 %v5322
    %v5324 = vpop.xlane.xlu0 %5323
    %v5325 = vsel %vm5303, %v5278, 0.0
    %5326 = vadd.xlane.f32.xlu0 %v5325
    %v5327 = vpop.xlane.xlu0 %5326
    %v5328 = vsel %vm5303, %v5285, 0.0
    %5329 = vadd.xlane.f32.xlu0 %v5328
    %v5330 = vpop.xlane.xlu0 %5329
    %v5331 = vsel %vm5303, %v5292, 0.0
    %5332 = vadd.xlane.f32.xlu0 %v5331
    %v5333 = vpop.xlane.xlu0 %5332
    %v5334 = vmax.f32 %v5306, 0.0
    %v5335 = vmax.f32 %v5309, 0.0
    %v5336 = vmax.f32 %v5312, 0.0
    %v5337 = vmax.f32 %v5315, 0.0
    %v5338 = vmax.f32 %v5318, 0.0
    %v5339 = vmax.f32 %v5321, 0.0
    %v5340 = vmax.f32 %v5324, 0.0
    %v5341 = vmax.f32 %v5327, 0.0
    %v5342 = vmax.f32 %v5330, 0.0
    %v5343 = vmax.f32 %v5333, 0.0
    %v5354 = vlaneseq
    %v5355 = vshrl.u32 %v5354, 7
    %v5356 = vsub.s32 %v3287, %v5355
    %v5357 = vrot.slane %v5334, %v5356
    %v5358 = vlaneseq
    %v5359 = vshrl.u32 %v5358, 7
    %v5360 = vsub.s32 %v3292, %v5359
    %v5361 = vrot.slane %v5335, %v5360
    %v5362 = vsel %vm3297, %v5361, %v5357
    %v5363 = vlaneseq
    %v5364 = vshrl.u32 %v5363, 7
    %v5365 = vsub.s32 %v3299, %v5364
    %v5366 = vrot.slane %v5336, %v5365
    %v5367 = vsel %vm3304, %v5366, %v5362
    %v5368 = vlaneseq
    %v5369 = vshrl.u32 %v5368, 7
    %v5370 = vsub.s32 %v3306, %v5369
    %v5371 = vrot.slane %v5337, %v5370
    %v5372 = vsel %vm3311, %v5371, %v5367
    %v5373 = vlaneseq
    %v5374 = vshrl.u32 %v5373, 7
    %v5375 = vsub.s32 %v3313, %v5374
    %v5376 = vrot.slane %v5338, %v5375
    %v5377 = vsel %vm3318, %v5376, %v5372
    %v5378 = vlaneseq
    %v5379 = vshrl.u32 %v5378, 7
    %v5380 = vsub.s32 %v3287, %v5379
    %v5381 = vrot.slane %v5339, %v5380
    %v5382 = vlaneseq
    %v5383 = vshrl.u32 %v5382, 7
    %v5384 = vsub.s32 %v3292, %v5383
    %v5385 = vrot.slane %v5340, %v5384
    %v5386 = vsel %vm3297, %v5385, %v5381
    %v5387 = vlaneseq
    %v5388 = vshrl.u32 %v5387, 7
    %v5389 = vsub.s32 %v3299, %v5388
    %v5390 = vrot.slane %v5341, %v5389
    %v5391 = vsel %vm3304, %v5390, %v5386
    %v5392 = vlaneseq
    %v5393 = vshrl.u32 %v5392, 7
    %v5394 = vsub.s32 %v3306, %v5393
    %v5395 = vrot.slane %v5342, %v5394
    %v5396 = vsel %vm3311, %v5395, %v5391
    %v5397 = vlaneseq
    %v5398 = vshrl.u32 %v5397, 7
    %v5399 = vsub.s32 %v3313, %v5398
    %v5400 = vrot.slane %v5343, %v5399
    %v5401 = vsel %vm3318, %v5400, %v5396
    %v5402 = vsel %vm5218, %v5377, %v5377
    %v5403 = vsel %vm5220, %v5377, %v5402
    %v5404 = vsel %vm5222, %v5377, %v5403
    %v5405 = vsel %vm5224, %v5377, %v5404
    %v5406 = vsel %vm5226, %v5377, %v5405
    %v5407 = vsel %vm5228, %v5377, %v5406
    %v5408 = vsel %vm5218, %v5401, %v5401
    %v5409 = vsel %vm5220, %v5401, %v5408
    %v5410 = vsel %vm5222, %v5401, %v5409
    %v5411 = vsel %vm5224, %v5401, %v5410
    %v5412 = vsel %vm5226, %v5401, %v5411
    %v5413 = vsel %vm5228, %v5401, %v5412
    %v5416 = vmul.f32 %v5334, %v5407
    %v5417 = vmul.f32 %v5335, %v5407
    %v5418 = vmul.f32 %v5336, %v5407
    %v5419 = vmul.f32 %v5337, %v5407
    %v5420 = vmul.f32 %v5338, %v5407
    %v5421 = vmul.f32 %v5339, %v5413
    %v5422 = vmul.f32 %v5340, %v5413
    %v5423 = vmul.f32 %v5341, %v5413
    %v5424 = vmul.f32 %v5342, %v5413
    %v5425 = vmul.f32 %v5343, %v5413
    %v5426 = vsel %vm5303, %v5416, -inf
    %v5427 = vsel %vm5303, %v5421, -inf
    %v5428 = vmax.f32 %v5426, %v5427
    %v5429 = vsel %vm5303, %v5417, -inf
    %v5430 = vsel %vm5303, %v5422, -inf
    %v5431 = vmax.f32 %v5429, %v5430
    %v5432 = vsel %vm5303, %v5418, -inf
    %v5433 = vsel %vm5303, %v5423, -inf
    %v5434 = vmax.f32 %v5432, %v5433
    %v5435 = vsel %vm5303, %v5419, -inf
    %v5436 = vsel %vm5303, %v5424, -inf
    %v5437 = vmax.f32 %v5435, %v5436
    %v5438 = vsel %vm5303, %v5420, -inf
    %v5439 = vsel %vm5303, %v5425, -inf
    %v5440 = vmax.f32 %v5438, %v5439
    %v5441 = vsub.f32 %v5416, %v5428
    %v5442 = vsub.f32 %v5417, %v5431
    %v5443 = vsub.f32 %v5418, %v5434
    %v5444 = vsub.f32 %v5419, %v5437
    %v5445 = vsub.f32 %v5420, %v5440
    %v5446 = vsub.f32 %v5421, %v5428
    %v5447 = vsub.f32 %v5422, %v5431
    %v5448 = vsub.f32 %v5423, %v5434
    %v5449 = vsub.f32 %v5424, %v5437
    %v5450 = vsub.f32 %v5425, %v5440
    %v5451 = vmul.f32 %v5441, 1.442695
    %v5452 = vpow.pop %v5451
    %v5453 = vmul.f32 %v5442, 1.442695
    %v5454 = vpow.pop %v5453
    %v5455 = vmul.f32 %v5443, 1.442695
    %v5456 = vpow.pop %v5455
    %v5457 = vmul.f32 %v5444, 1.442695
    %v5458 = vpow.pop %v5457
    %v5459 = vmul.f32 %v5445, 1.442695
    %v5460 = vpow.pop %v5459
    %v5461 = vmul.f32 %v5446, 1.442695
    %v5462 = vpow.pop %v5461
    %v5463 = vmul.f32 %v5447, 1.442695
    %v5464 = vpow.pop %v5463
    %v5465 = vmul.f32 %v5448, 1.442695
    %v5466 = vpow.pop %v5465
    %v5467 = vmul.f32 %v5449, 1.442695
    %v5468 = vpow.pop %v5467
    %v5469 = vmul.f32 %v5450, 1.442695
    %v5470 = vpow.pop %v5469
    %v5471 = vsel %vm5303, %v5452, 0.0
    %v5472 = vsel %vm5303, %v5462, 0.0
    %v5473 = vadd.f32 %v5471, %v5472
    %v5474 = vsel %vm5303, %v5454, 0.0
    %v5475 = vsel %vm5303, %v5464, 0.0
    %v5476 = vadd.f32 %v5474, %v5475
    %v5477 = vsel %vm5303, %v5456, 0.0
    %v5478 = vsel %vm5303, %v5466, 0.0
    %v5479 = vadd.f32 %v5477, %v5478
    %v5480 = vsel %vm5303, %v5458, 0.0
    %v5481 = vsel %vm5303, %v5468, 0.0
    %v5482 = vadd.f32 %v5480, %v5481
    %v5483 = vsel %vm5303, %v5460, 0.0
    %v5484 = vsel %vm5303, %v5470, 0.0
    %v5485 = vadd.f32 %v5483, %v5484
    %v5486 = vrcp.pop %v5473
    %v5487 = vmul.f32 %v5452, %v5486
    %v5488 = vrcp.pop %v5476
    %v5489 = vmul.f32 %v5454, %v5488
    %v5490 = vrcp.pop %v5479
    %v5491 = vmul.f32 %v5456, %v5490
    %v5492 = vrcp.pop %v5482
    %v5493 = vmul.f32 %v5458, %v5492
    %v5494 = vrcp.pop %v5485
    %v5495 = vmul.f32 %v5460, %v5494
    %v5496 = vmul.f32 %v5462, %v5486
    %v5497 = vmul.f32 %v5464, %v5488
    %v5498 = vmul.f32 %v5466, %v5490
    %v5499 = vmul.f32 %v5468, %v5492
    %v5500 = vmul.f32 %v5470, %v5494
    %v5501 = vmul.f32 %v5487, %v5407
    %v5502 = vmul.f32 %v5489, %v5407
    %v5503 = vmul.f32 %v5491, %v5407
    %v5504 = vmul.f32 %v5493, %v5407
    %v5505 = vmul.f32 %v5495, %v5407
    %v5506 = vmul.f32 %v5496, %v5413
    %v5507 = vmul.f32 %v5497, %v5413
    %v5508 = vmul.f32 %v5498, %v5413
    %v5509 = vmul.f32 %v5499, %v5413
    %v5510 = vmul.f32 %v5500, %v5413
    %v5511 = vsel %vm5303, %v5501, 0.0
    %5512 = vadd.xlane.f32.xlu0 %v5511
    %v5513 = vpop.xlane.xlu0 %5512
    %v5514 = vsel %vm5303, %v5502, 0.0
    %5515 = vadd.xlane.f32.xlu0 %v5514
    %v5516 = vpop.xlane.xlu0 %5515
    %v5517 = vsel %vm5303, %v5503, 0.0
    %5518 = vadd.xlane.f32.xlu0 %v5517
    %v5519 = vpop.xlane.xlu0 %5518
    %v5520 = vsel %vm5303, %v5504, 0.0
    %5521 = vadd.xlane.f32.xlu0 %v5520
    %v5522 = vpop.xlane.xlu0 %5521
    %v5523 = vsel %vm5303, %v5505, 0.0
    %5524 = vadd.xlane.f32.xlu0 %v5523
    %v5525 = vpop.xlane.xlu0 %5524
    %v5526 = vsel %vm5303, %v5506, 0.0
    %5527 = vadd.xlane.f32.xlu0 %v5526
    %v5528 = vpop.xlane.xlu0 %5527
    %v5529 = vsel %vm5303, %v5507, 0.0
    %5530 = vadd.xlane.f32.xlu0 %v5529
    %v5531 = vpop.xlane.xlu0 %5530
    %v5532 = vsel %vm5303, %v5508, 0.0
    %5533 = vadd.xlane.f32.xlu0 %v5532
    %v5534 = vpop.xlane.xlu0 %5533
    %v5535 = vsel %vm5303, %v5509, 0.0
    %5536 = vadd.xlane.f32.xlu0 %v5535
    %v5537 = vpop.xlane.xlu0 %5536
    %v5538 = vsel %vm5303, %v5510, 0.0
    %5539 = vadd.xlane.f32.xlu0 %v5538
    %v5540 = vpop.xlane.xlu0 %5539
    %vm5541 = vcmask 7168
    %5542 = vst.msk [vmem:[%s3] sm:$0xff] %vm5541, %v5513
    %5543 = vst.msk [vmem:[%s3 + $0x8] sm:$0xff] %vm5541, %v5516
    %5544 = vst.msk [vmem:[%s3 + $0x10] sm:$0xff] %vm5541, %v5519
    %5545 = vst.msk [vmem:[%s3 + $0x18] sm:$0xff] %vm5541, %v5522
    %5546 = vst.msk [vmem:[%s3 + $0x20] sm:$0xff] %vm5541, %v5525
    %5547 = vst.msk [vmem:[%s3 + $0x28] sm:$0xff] %vm5541, %v5528
    %5548 = vst.msk [vmem:[%s3 + $0x30] sm:$0xff] %vm5541, %v5531
    %5549 = vst.msk [vmem:[%s3 + $0x38] sm:$0xff] %vm5541, %v5534
    %5550 = vst.msk [vmem:[%s3 + $0x40] sm:$0xff] %vm5541, %v5537
    %5551 = vst.msk [vmem:[%s3 + $0x48] sm:$0xff] %vm5541, %v5540
    // Predicated region
    $region26: #{tpu_custom_call.1} parent=1 // pred_check
      _
    $region27: #{tpu_custom_call.1} parent=1 // pred_check_branch
      %5553 = sbr.rel (0) target = $region29
    $region28: #{tpu_custom_call.1} parent=1 // pred_region
      _
    $region29: #{tpu_custom_call.1} parent=1 // pred_fallthru
      _
    // Predicated region
    $region30: #{tpu_custom_call.1} parent=1 // pred_check
      _
    $region31: #{tpu_custom_call.1} parent=1 // pred_check_branch
      %5555 = sbr.rel (0) target = $region33
    $region32: #{tpu_custom_call.1} parent=1 // pred_region
      _
    $region33: #{tpu_custom_call.1} parent=1 // pred_fallthru
      _
    %5556 = vsyncpa [#allocation3], 1
    %5557 = vsyncpa [#allocation5], 1

</llo_original>
